<compile_context>
chip_gen: v7x
topology: tpu7x:2x2x1
jax: 0.10.0
libtpu: 0.0.40
codegen_flags: <defaults>
</compile_context>

<pallas_src>
import math
from functools import partial

import jax
import jax.numpy as jnp
from jax.experimental import pallas as pl
from jax.experimental.pallas import tpu as pltpu


# ----------------------------------------------------------------------------
# Positional encoding (same math as positionalencoding1d in the reference).
# ----------------------------------------------------------------------------
def positionalencoding1d(d_model, length):
    if d_model % 2 != 0:
        raise ValueError("d_model must be even")
    position = jnp.arange(0, length, dtype=jnp.float32)[:, None]          # (L, 1)
    div_term = jnp.exp(
        jnp.arange(0, d_model, 2, dtype=jnp.float32) * -(math.log(10000.0) / d_model)
    )                                                                      # (D/2,)
    pe = jnp.zeros((length, d_model), jnp.float32)
    pe = pe.at[:, 0::2].set(jnp.sin(position * div_term))
    pe = pe.at[:, 1::2].set(jnp.cos(position * div_term))
    return pe


# ----------------------------------------------------------------------------
# In-kernel helpers.
# ----------------------------------------------------------------------------
def _linear_bf16(x, w_bf16, b_f32):
    # y = x @ W^T + b ; W stored (out_features, in_features) in bf16, accumulate f32.
    y = jax.lax.dot_general(
        x.astype(jnp.bfloat16), w_bf16,
        dimension_numbers=(((1,), (1,)), ((), ())),
        preferred_element_type=jnp.float32,
    )
    return y + b_f32


def _layernorm(x, gamma, beta, eps=1e-5):
    mu = jnp.mean(x, axis=-1, keepdims=True)
    var = jnp.mean((x - mu) ** 2, axis=-1, keepdims=True)
    return (x - mu) * jax.lax.rsqrt(var + eps) * gamma + beta


# ----------------------------------------------------------------------------
# Fused Pallas kernel: all encoder layers (grid over layers) + output head.
# ----------------------------------------------------------------------------
def fused_encoder_kernel(x_ref, pe_ref,
                         wqkv_ref, bqkv_ref, wo_ref, bo_ref,
                         g1_ref, beta1_ref, w1_ref, b1_ref,
                         w2_ref, b2_ref, g2_ref, beta2_ref,
                         hw1_ref, hb1_ref, hw2_ref, hb2_ref,
                         o_ref, x_sc, *, nhead):
    layer = pl.program_id(0)
    nlayers = pl.num_programs(0)

    # First layer: load the embedded tokens and add positional encoding once.
    @pl.when(layer == 0)
    def _():
        x_sc[...] = x_ref[...] + pe_ref[...][None, :, :]

    x = x_sc[...]                                   # (B, S, D) f32 carried activation
    B, S, D = x.shape
    dh = D // nhead
    scale = 1.0 / math.sqrt(dh)

    xf = x.reshape(B * S, D)

    # Combined QKV projection (PyTorch in_proj_weight: (3D, D)).
    qkv = _linear_bf16(xf, wqkv_ref[...], bqkv_ref[...])          # (B*S, 3D) f32
    q = (qkv[:, 0 * D:1 * D] * scale).reshape(B, S, D)
    k = qkv[:, 1 * D:2 * D].reshape(B, S, D)
    v = qkv[:, 2 * D:3 * D].reshape(B, S, D)

    # Multi-head attention: fold each head's context straight into the output
    # projection (avoids the lane-dim concat of head outputs).
    wo = wo_ref[...]                                              # (D, D) bf16
    attn = jnp.zeros((B * S, D), jnp.float32)
    for h in range(nhead):
        sl = slice(h * dh, (h + 1) * dh)
        qh = q[..., sl].astype(jnp.bfloat16)                      # (B, S, dh)
        kh = k[..., sl].astype(jnp.bfloat16)
        vh = v[..., sl].astype(jnp.bfloat16)
        s = jnp.einsum("bqd,bkd->bqk", qh, kh,
                       preferred_element_type=jnp.float32)        # (B, S, S) f32
        m = jnp.max(s, axis=-1, keepdims=True)
        e = jnp.exp(s - m)
        p = e * pl.reciprocal(jnp.sum(e, axis=-1, keepdims=True), approx=True)
        ctx = jnp.einsum("bqk,bkd->bqd", p.astype(jnp.bfloat16), vh,
                         preferred_element_type=jnp.float32)      # (B, S, dh)
        attn = attn + jax.lax.dot_general(
            ctx.reshape(B * S, dh).astype(jnp.bfloat16), wo[:, sl],
            dimension_numbers=(((1,), (1,)), ((), ())),
            preferred_element_type=jnp.float32)
    attn = attn + bo_ref[...]

    # Residual + LayerNorm (post-norm), f32.
    y = _layernorm(xf + attn, g1_ref[...], beta1_ref[...])

    # Feed-forward + residual + LayerNorm.
    h1 = jnp.maximum(_linear_bf16(y, w1_ref[...], b1_ref[...]), 0.0)
    ff = _linear_bf16(h1, w2_ref[...], b2_ref[...])
    y2 = _layernorm(y + ff, g2_ref[...], beta2_ref[...])

    x_sc[...] = y2.reshape(B, S, D)

    # Last layer: apply the MLP head to token 0 and emit the final output.
    @pl.when(layer == nlayers - 1)
    def _():
        rep0 = y2.reshape(B, S, D)[:, 0, :]                       # (B, D)
        hh = jnp.maximum(_linear_bf16(rep0, hw1_ref[...], hb1_ref[...]), 0.0)
        o_ref[...] = _linear_bf16(hh, hw2_ref[...], hb2_ref[...])


# ----------------------------------------------------------------------------
# Wrapper: embedding / start-token glue + the fused pallas_call.
# ----------------------------------------------------------------------------
def encoder_only_forward(data, action, params, *, nhead):
    # `action` is accepted but unused — same as the PyTorch forward.
    del action
    B = data.shape[0]
    start = jnp.full((B, 1), 25, dtype=data.dtype)                # 25.0 -> .long() -> 25
    tokens = jnp.concatenate([start, data], axis=1)               # (B, S)
    x = params["embed"][tokens]                                   # (B, S, D) gather (glue)
    _, S, D = x.shape
    pe = params["pe"][:S]                                         # (S, D)

    st, hd = params["stack"], params["head"]
    L = st["wqkv"].shape[0]
    d_hid = st["w1"].shape[1]
    out_width = hd["w2"].shape[0]

    # Per-layer blocked specs (leading layer dim squeezed) and constant specs.
    def lyr(*shp):
        n = len(shp)
        return pl.BlockSpec((None,) + tuple(shp),
                            lambda l, n=n: (l,) + (0,) * n)

    def const(*shp):
        n = len(shp)
        return pl.BlockSpec(tuple(shp), lambda l, n=n: (0,) * n)

    grid_spec = pltpu.PrefetchScalarGridSpec(
        num_scalar_prefetch=0,
        grid=(L,),
        in_specs=[
            const(B, S, D),               # x (embedded tokens)
            const(S, D),                  # positional encoding
            lyr(3 * D, D),                # wqkv (bf16)
            lyr(1, 3 * D),                # bqkv
            lyr(D, D),                    # wo (bf16)
            lyr(1, D),                    # bo
            lyr(1, D),                    # gamma1
            lyr(1, D),                    # beta1
            lyr(d_hid, D),                # w1 (bf16)
            lyr(1, d_hid),                # b1
            lyr(D, d_hid),                # w2 (bf16)
            lyr(1, D),                    # b2
            lyr(1, D),                    # gamma2
            lyr(1, D),                    # beta2
            const(1024, D),               # head w1 (bf16)
            const(1, 1024),               # head b1
            const(out_width, 1024),       # head w2 (bf16)
            const(1, out_width),          # head b2
        ],
        out_specs=pl.BlockSpec((B, out_width), lambda l: (0, 0)),
        scratch_shapes=[pltpu.VMEM((B, S, D), jnp.float32)],
    )

    return pl.pallas_call(
        partial(fused_encoder_kernel, nhead=nhead),
        out_shape=jax.ShapeDtypeStruct((B, out_width), jnp.float32),
        grid_spec=grid_spec,
        compiler_params=pltpu.CompilerParams(
            dimension_semantics=("arbitrary",),
            vmem_limit_bytes=64 << 20,
        ),
    )(x, pe,
      st["wqkv"], st["bqkv"], st["wo"], st["bo"],
      st["g1"], st["beta1"], st["w1"], st["b1"],
      st["w2"], st["b2"], st["g2"], st["beta2"],
      hd["w1"], hd["b1"], hd["w2"], hd["b2"])


# ----------------------------------------------------------------------------
# Parameter init (deterministic, synthetic). Matmul weights stored in bf16;
# biases / LayerNorm params / embeddings stay f32.
# ----------------------------------------------------------------------------
def init_params(key, *, vocab, d_model, nhead, d_hid, nlayers, out_width):
    def nrm(k, shape, scale=0.02):
        return scale * jax.random.normal(k, shape, dtype=jnp.float32)

    keys = iter(jax.random.split(key, 4 + 4 * nlayers))
    embed = nrm(next(keys), (vocab, d_model))
    pe = positionalencoding1d(d_model, 70)

    wqkv, wo, w1, w2 = [], [], [], []
    for _ in range(nlayers):
        wqkv.append(nrm(next(keys), (3 * d_model, d_model)))
        wo.append(nrm(next(keys), (d_model, d_model)))
        w1.append(nrm(next(keys), (d_hid, d_model)))
        w2.append(nrm(next(keys), (d_model, d_hid)))

    L = nlayers
    stack = {
        "wqkv": jnp.stack(wqkv).astype(jnp.bfloat16),
        "bqkv": jnp.zeros((L, 1, 3 * d_model), jnp.float32),
        "wo": jnp.stack(wo).astype(jnp.bfloat16),
        "bo": jnp.zeros((L, 1, d_model), jnp.float32),
        "g1": jnp.ones((L, 1, d_model), jnp.float32),
        "beta1": jnp.zeros((L, 1, d_model), jnp.float32),
        "w1": jnp.stack(w1).astype(jnp.bfloat16),
        "b1": jnp.zeros((L, 1, d_hid), jnp.float32),
        "w2": jnp.stack(w2).astype(jnp.bfloat16),
        "b2": jnp.zeros((L, 1, d_model), jnp.float32),
        "g2": jnp.ones((L, 1, d_model), jnp.float32),
        "beta2": jnp.zeros((L, 1, d_model), jnp.float32),
    }
    head = {
        "w1": nrm(next(keys), (1024, d_model)).astype(jnp.bfloat16),
        "b1": jnp.zeros((1, 1024), jnp.float32),
        "w2": nrm(next(keys), (out_width, 1024)).astype(jnp.bfloat16),
        "b2": jnp.zeros((1, out_width), jnp.float32),
    }
    return {"embed": embed, "pe": pe, "stack": stack, "head": head}


# ----------------------------------------------------------------------------
if __name__ == "__main__":
    # Shapes consistent with the module defaults (d_model=256, nhead=4,
    # d_hid=128, nlayers=6); seq=15 so total length after the start token is 16.
    B, SEQ = 2, 15
    D_MODEL, NHEAD, D_HID, NLAYERS = 256, 4, 128, 6
    VOCAB = 32          # input_rep.width()  (must exceed start token id 25)
    OUT_WIDTH = 64      # output_rep.width()

    key = jax.random.PRNGKey(0)
    k_data, k_act, k_params = jax.random.split(key, 3)
    data = jax.random.randint(k_data, (B, SEQ), 0, VOCAB, dtype=jnp.int32)
    action = jax.random.randint(k_act, (B,), 0, OUT_WIDTH, dtype=jnp.int32)
    params = init_params(k_params, vocab=VOCAB, d_model=D_MODEL, nhead=NHEAD,
                         d_hid=D_HID, nlayers=NLAYERS, out_width=OUT_WIDTH)

    fwd = jax.jit(partial(encoder_only_forward, nhead=NHEAD))
    out = jax.block_until_ready(fwd(data, action, params))

    assert out.shape == (B, OUT_WIDTH), out.shape
    assert out.dtype == jnp.float32
    assert bool(jnp.all(jnp.isfinite(out)))
    print("KERNEL_OK")
</pallas_src>

<mosaic_0001>
module attributes {stable_mosaic.version = 11 : i64} {
  func.func @fused_encoder_kernel(%arg0: i32, %arg1: memref<2x16x256xf32, #tpu.memory_space<vmem>>, %arg2: memref<16x256xf32, #tpu.memory_space<vmem>>, %arg3: memref<1x768x256xbf16, #tpu.memory_space<vmem>>, %arg4: memref<1x1x768xf32, #tpu.memory_space<vmem>>, %arg5: memref<1x256x256xbf16, #tpu.memory_space<vmem>>, %arg6: memref<1x1x256xf32, #tpu.memory_space<vmem>>, %arg7: memref<1x1x256xf32, #tpu.memory_space<vmem>>, %arg8: memref<1x1x256xf32, #tpu.memory_space<vmem>>, %arg9: memref<1x128x256xbf16, #tpu.memory_space<vmem>>, %arg10: memref<1x1x128xf32, #tpu.memory_space<vmem>>, %arg11: memref<1x256x128xbf16, #tpu.memory_space<vmem>>, %arg12: memref<1x1x256xf32, #tpu.memory_space<vmem>>, %arg13: memref<1x1x256xf32, #tpu.memory_space<vmem>>, %arg14: memref<1x1x256xf32, #tpu.memory_space<vmem>>, %arg15: memref<1024x256xbf16, #tpu.memory_space<vmem>>, %arg16: memref<1x1024xf32, #tpu.memory_space<vmem>>, %arg17: memref<64x1024xbf16, #tpu.memory_space<vmem>>, %arg18: memref<1x64xf32, #tpu.memory_space<vmem>>, %arg19: memref<2x64xf32, #tpu.memory_space<vmem>>, %arg20: memref<2x16x256xf32, #tpu.memory_space<vmem>>) attributes {dimension_semantics = [#tpu.dimension_semantics<arbitrary>], iteration_bounds = array<i64: 6>, scalar_prefetch = 0 : i64, scratch_operands = 1 : i64, tpu.core_type = #tpu.core_type<tc>, window_params = [{pipeline_mode = #tpu.pipeline_mode<synchronous>, transform_indices = @transform_0, window_bounds = array<i64: 2, 16, 256>}, {pipeline_mode = #tpu.pipeline_mode<synchronous>, transform_indices = @transform_1, window_bounds = array<i64: 16, 256>}, {transform_indices = @transform_2, window_bounds = array<i64: 1, 768, 256>}, {transform_indices = @transform_3, window_bounds = array<i64: 1, 1, 768>}, {transform_indices = @transform_4, window_bounds = array<i64: 1, 256, 256>}, {transform_indices = @transform_5, window_bounds = array<i64: 1, 1, 256>}, {transform_indices = @transform_6, window_bounds = array<i64: 1, 1, 256>}, {transform_indices = @transform_7, window_bounds = array<i64: 1, 1, 256>}, {transform_indices = @transform_8, window_bounds = array<i64: 1, 128, 256>}, {transform_indices = @transform_9, window_bounds = array<i64: 1, 1, 128>}, {transform_indices = @transform_10, window_bounds = array<i64: 1, 256, 128>}, {transform_indices = @transform_11, window_bounds = array<i64: 1, 1, 256>}, {transform_indices = @transform_12, window_bounds = array<i64: 1, 1, 256>}, {transform_indices = @transform_13, window_bounds = array<i64: 1, 1, 256>}, {pipeline_mode = #tpu.pipeline_mode<synchronous>, transform_indices = @transform_14, window_bounds = array<i64: 1024, 256>}, {pipeline_mode = #tpu.pipeline_mode<synchronous>, transform_indices = @transform_15, window_bounds = array<i64: 1, 1024>}, {pipeline_mode = #tpu.pipeline_mode<synchronous>, transform_indices = @transform_16, window_bounds = array<i64: 64, 1024>}, {pipeline_mode = #tpu.pipeline_mode<synchronous>, transform_indices = @transform_17, window_bounds = array<i64: 1, 64>}, {pipeline_mode = #tpu.pipeline_mode<synchronous>, transform_indices = @transform_18, window_bounds = array<i64: 2, 64>}]} {
    %c0_i32 = arith.constant 0 : i32
    %0 = arith.cmpi eq, %arg0, %c0_i32 : i32
    %1 = arith.extui %0 : i1 to i32
    %c0_i32_0 = arith.constant 0 : i32
    %2 = arith.cmpi ne, %1, %c0_i32_0 : i32
    scf.if %2 {
      %c0_78 = arith.constant 0 : index
      %c0_79 = arith.constant 0 : index
      %c0_80 = arith.constant 0 : index
      %201 = vector.load %arg1[%c0_78, %c0_79, %c0_80] : memref<2x16x256xf32, #tpu.memory_space<vmem>>, vector<2x16x256xf32>
      %c0_81 = arith.constant 0 : index
      %c0_82 = arith.constant 0 : index
      %202 = vector.load %arg2[%c0_81, %c0_82] : memref<16x256xf32, #tpu.memory_space<vmem>>, vector<16x256xf32>
      %203 = vector.shape_cast %202 : vector<16x256xf32> to vector<1x16x256xf32>
      %204 = vector.broadcast %203 : vector<1x16x256xf32> to vector<2x16x256xf32>
      %205 = arith.addf %201, %204 : vector<2x16x256xf32>
      %c0_83 = arith.constant 0 : index
      %c0_84 = arith.constant 0 : index
      %c0_85 = arith.constant 0 : index
      %206 = vector.load %arg20[%c0_83, %c0_84, %c0_85] : memref<2x16x256xf32, #tpu.memory_space<vmem>>, vector<2x16x256xf32>
      tpu.vector_store %arg20[%c0_83, %c0_84, %c0_85], %205 {strides = array<i32>} : memref<2x16x256xf32, #tpu.memory_space<vmem>>, vector<2x16x256xf32>,
    } else {
    }
    %c0 = arith.constant 0 : index
    %c0_1 = arith.constant 0 : index
    %c0_2 = arith.constant 0 : index
    %3 = vector.load %arg20[%c0, %c0_1, %c0_2] : memref<2x16x256xf32, #tpu.memory_space<vmem>>, vector<2x16x256xf32>
    %4 = vector.shape_cast %3 : vector<2x16x256xf32> to vector<32x256xf32>
    %c0_3 = arith.constant 0 : index
    %c0_4 = arith.constant 0 : index
    %c0_5 = arith.constant 0 : index
    %5 = vector.load %arg3[%c0_3, %c0_4, %c0_5] : memref<1x768x256xbf16, #tpu.memory_space<vmem>>, vector<1x768x256xbf16>
    %6 = vector.shape_cast %5 : vector<1x768x256xbf16> to vector<768x256xbf16>
    %c0_6 = arith.constant 0 : index
    %c0_7 = arith.constant 0 : index
    %c0_8 = arith.constant 0 : index
    %7 = vector.load %arg4[%c0_6, %c0_7, %c0_8] : memref<1x1x768xf32, #tpu.memory_space<vmem>>, vector<1x1x768xf32>
    %8 = vector.shape_cast %7 : vector<1x1x768xf32> to vector<1x768xf32>
    %9 = arith.truncf %4 : vector<32x256xf32> to vector<32x256xbf16>
    %cst = arith.constant dense<0.000000e+00> : vector<32x768xf32>
    %10 = tpu.matmul %9, %6, %cst {dimension_numbers = #tpu.dot_dimension_numbers<[1], [1], [0], [0], [0, 0, 1, 0], [], []>} : vector<32x256xbf16>, vector<768x256xbf16>, vector<32x768xf32> -> vector<32x768xf32>
    %11 = vector.broadcast %8 : vector<1x768xf32> to vector<32x768xf32>
    %12 = arith.addf %10, %11 : vector<32x768xf32>
    %13 = vector.extract_strided_slice %12 {offsets = [0, 0], sizes = [32, 256], strides = [1, 1]} : vector<32x768xf32> to vector<32x256xf32>
    %cst_9 = arith.constant 1.250000e-01 : f32
    %14 = vector.broadcast %cst_9 : f32 to vector<32x256xf32>
    %15 = arith.mulf %13, %14 : vector<32x256xf32>
    %16 = vector.shape_cast %15 : vector<32x256xf32> to vector<2x16x256xf32>
    %17 = vector.extract_strided_slice %12 {offsets = [0, 256], sizes = [32, 256], strides = [1, 1]} : vector<32x768xf32> to vector<32x256xf32>
    %18 = vector.shape_cast %17 : vector<32x256xf32> to vector<2x16x256xf32>
    %19 = vector.extract_strided_slice %12 {offsets = [0, 512], sizes = [32, 256], strides = [1, 1]} : vector<32x768xf32> to vector<32x256xf32>
    %20 = vector.shape_cast %19 : vector<32x256xf32> to vector<2x16x256xf32>
    %c0_10 = arith.constant 0 : index
    %c0_11 = arith.constant 0 : index
    %c0_12 = arith.constant 0 : index
    %21 = vector.load %arg5[%c0_10, %c0_11, %c0_12] : memref<1x256x256xbf16, #tpu.memory_space<vmem>>, vector<1x256x256xbf16>
    %22 = vector.shape_cast %21 : vector<1x256x256xbf16> to vector<256x256xbf16>
    %cst_13 = arith.constant 0.000000e+00 : f32
    %23 = vector.broadcast %cst_13 : f32 to vector<32x256xf32>
    %24 = vector.extract_strided_slice %16 {offsets = [0, 0, 0], sizes = [2, 16, 64], strides = [1, 1, 1]} : vector<2x16x256xf32> to vector<2x16x64xf32>
    %25 = arith.truncf %24 : vector<2x16x64xf32> to vector<2x16x64xbf16>
    %26 = vector.extract_strided_slice %18 {offsets = [0, 0, 0], sizes = [2, 16, 64], strides = [1, 1, 1]} : vector<2x16x256xf32> to vector<2x16x64xf32>
    %27 = arith.truncf %26 : vector<2x16x64xf32> to vector<2x16x64xbf16>
    %28 = vector.extract_strided_slice %20 {offsets = [0, 0, 0], sizes = [2, 16, 64], strides = [1, 1, 1]} : vector<2x16x256xf32> to vector<2x16x64xf32>
    %29 = arith.truncf %28 : vector<2x16x64xf32> to vector<2x16x64xbf16>
    "tpu.trace_start"() <{level = 10 : i32, message = "bqd,bkd->bqk"}> : () -> ()
    %cst_14 = arith.constant dense<0.000000e+00> : vector<2x16x16xf32>
    %30 = tpu.matmul %25, %27, %cst_14 {dimension_numbers = #tpu.dot_dimension_numbers<[2], [2], [1], [1], [0, 0, 0, 1, 1, 1], [0], [0]>} : vector<2x16x64xbf16>, vector<2x16x64xbf16>, vector<2x16x16xf32> -> vector<2x16x16xf32>
    "tpu.trace_stop"() : () -> ()
    %cst_15 = arith.constant dense<0xFF800000> : vector<2x16xf32>
    %31 = vector.multi_reduction <maximumf>, %30, %cst_15 [2] : vector<2x16x16xf32> to vector<2x16xf32>
    %32 = vector.shape_cast %31 : vector<2x16xf32> to vector<2x16x1xf32>
    %33 = vector.broadcast %32 : vector<2x16x1xf32> to vector<2x16x16xf32>
    %34 = arith.subf %30, %33 : vector<2x16x16xf32>
    %35 = math.exp %34 : vector<2x16x16xf32>
    %cst_16 = arith.constant dense<0.000000e+00> : vector<2x16xf32>
    %36 = vector.multi_reduction <add>, %35, %cst_16 [2] : vector<2x16x16xf32> to vector<2x16xf32>
    %37 = vector.shape_cast %36 : vector<2x16xf32> to vector<2x16x1xf32>
    %38 = tpu.reciprocal %37 {approx = true} : vector<2x16x1xf32> -> vector<2x16x1xf32>
    %39 = vector.broadcast %38 : vector<2x16x1xf32> to vector<2x16x16xf32>
    %40 = arith.mulf %35, %39 : vector<2x16x16xf32>
    %41 = arith.truncf %40 : vector<2x16x16xf32> to vector<2x16x16xbf16>
    "tpu.trace_start"() <{level = 10 : i32, message = "bqk,bkd->bqd"}> : () -> ()
    %cst_17 = arith.constant dense<0.000000e+00> : vector<2x16x64xf32>
    %42 = tpu.matmul %41, %29, %cst_17 {dimension_numbers = #tpu.dot_dimension_numbers<[2], [1], [1], [2], [0, 0, 0, 1, 1, 2], [0], [0]>} : vector<2x16x16xbf16>, vector<2x16x64xbf16>, vector<2x16x64xf32> -> vector<2x16x64xf32>
    "tpu.trace_stop"() : () -> ()
    %43 = vector.shape_cast %42 : vector<2x16x64xf32> to vector<32x64xf32>
    %44 = arith.truncf %43 : vector<32x64xf32> to vector<32x64xbf16>
    %45 = vector.extract_strided_slice %22 {offsets = [0, 0], sizes = [256, 64], strides = [1, 1]} : vector<256x256xbf16> to vector<256x64xbf16>
    %cst_18 = arith.constant dense<0.000000e+00> : vector<32x256xf32>
    %46 = tpu.matmul %44, %45, %cst_18 {dimension_numbers = #tpu.dot_dimension_numbers<[1], [1], [0], [0], [0, 0, 1, 0], [], []>} : vector<32x64xbf16>, vector<256x64xbf16>, vector<32x256xf32> -> vector<32x256xf32>
    %47 = arith.addf %23, %46 : vector<32x256xf32>
    %48 = vector.extract_strided_slice %16 {offsets = [0, 0, 64], sizes = [2, 16, 64], strides = [1, 1, 1]} : vector<2x16x256xf32> to vector<2x16x64xf32>
    %49 = arith.truncf %48 : vector<2x16x64xf32> to vector<2x16x64xbf16>
    %50 = vector.extract_strided_slice %18 {offsets = [0, 0, 64], sizes = [2, 16, 64], strides = [1, 1, 1]} : vector<2x16x256xf32> to vector<2x16x64xf32>
    %51 = arith.truncf %50 : vector<2x16x64xf32> to vector<2x16x64xbf16>
    %52 = vector.extract_strided_slice %20 {offsets = [0, 0, 64], sizes = [2, 16, 64], strides = [1, 1, 1]} : vector<2x16x256xf32> to vector<2x16x64xf32>
    %53 = arith.truncf %52 : vector<2x16x64xf32> to vector<2x16x64xbf16>
    "tpu.trace_start"() <{level = 10 : i32, message = "bqd,bkd->bqk"}> : () -> ()
    %cst_19 = arith.constant dense<0.000000e+00> : vector<2x16x16xf32>
    %54 = tpu.matmul %49, %51, %cst_19 {dimension_numbers = #tpu.dot_dimension_numbers<[2], [2], [1], [1], [0, 0, 0, 1, 1, 1], [0], [0]>} : vector<2x16x64xbf16>, vector<2x16x64xbf16>, vector<2x16x16xf32> -> vector<2x16x16xf32>
    "tpu.trace_stop"() : () -> ()
    %cst_20 = arith.constant dense<0xFF800000> : vector<2x16xf32>
    %55 = vector.multi_reduction <maximumf>, %54, %cst_20 [2] : vector<2x16x16xf32> to vector<2x16xf32>
    %56 = vector.shape_cast %55 : vector<2x16xf32> to vector<2x16x1xf32>
    %57 = vector.broadcast %56 : vector<2x16x1xf32> to vector<2x16x16xf32>
    %58 = arith.subf %54, %57 : vector<2x16x16xf32>
    %59 = math.exp %58 : vector<2x16x16xf32>
    %cst_21 = arith.constant dense<0.000000e+00> : vector<2x16xf32>
    %60 = vector.multi_reduction <add>, %59, %cst_21 [2] : vector<2x16x16xf32> to vector<2x16xf32>
    %61 = vector.shape_cast %60 : vector<2x16xf32> to vector<2x16x1xf32>
    %62 = tpu.reciprocal %61 {approx = true} : vector<2x16x1xf32> -> vector<2x16x1xf32>
    %63 = vector.broadcast %62 : vector<2x16x1xf32> to vector<2x16x16xf32>
    %64 = arith.mulf %59, %63 : vector<2x16x16xf32>
    %65 = arith.truncf %64 : vector<2x16x16xf32> to vector<2x16x16xbf16>
    "tpu.trace_start"() <{level = 10 : i32, message = "bqk,bkd->bqd"}> : () -> ()
    %cst_22 = arith.constant dense<0.000000e+00> : vector<2x16x64xf32>
    %66 = tpu.matmul %65, %53, %cst_22 {dimension_numbers = #tpu.dot_dimension_numbers<[2], [1], [1], [2], [0, 0, 0, 1, 1, 2], [0], [0]>} : vector<2x16x16xbf16>, vector<2x16x64xbf16>, vector<2x16x64xf32> -> vector<2x16x64xf32>
    "tpu.trace_stop"() : () -> ()
    %67 = vector.shape_cast %66 : vector<2x16x64xf32> to vector<32x64xf32>
    %68 = arith.truncf %67 : vector<32x64xf32> to vector<32x64xbf16>
    %69 = vector.extract_strided_slice %22 {offsets = [0, 64], sizes = [256, 64], strides = [1, 1]} : vector<256x256xbf16> to vector<256x64xbf16>
    %cst_23 = arith.constant dense<0.000000e+00> : vector<32x256xf32>
    %70 = tpu.matmul %68, %69, %cst_23 {dimension_numbers = #tpu.dot_dimension_numbers<[1], [1], [0], [0], [0, 0, 1, 0], [], []>} : vector<32x64xbf16>, vector<256x64xbf16>, vector<32x256xf32> -> vector<32x256xf32>
    %71 = arith.addf %47, %70 : vector<32x256xf32>
    %72 = vector.extract_strided_slice %16 {offsets = [0, 0, 128], sizes = [2, 16, 64], strides = [1, 1, 1]} : vector<2x16x256xf32> to vector<2x16x64xf32>
    %73 = arith.truncf %72 : vector<2x16x64xf32> to vector<2x16x64xbf16>
    %74 = vector.extract_strided_slice %18 {offsets = [0, 0, 128], sizes = [2, 16, 64], strides = [1, 1, 1]} : vector<2x16x256xf32> to vector<2x16x64xf32>
    %75 = arith.truncf %74 : vector<2x16x64xf32> to vector<2x16x64xbf16>
    %76 = vector.extract_strided_slice %20 {offsets = [0, 0, 128], sizes = [2, 16, 64], strides = [1, 1, 1]} : vector<2x16x256xf32> to vector<2x16x64xf32>
    %77 = arith.truncf %76 : vector<2x16x64xf32> to vector<2x16x64xbf16>
    "tpu.trace_start"() <{level = 10 : i32, message = "bqd,bkd->bqk"}> : () -> ()
    %cst_24 = arith.constant dense<0.000000e+00> : vector<2x16x16xf32>
    %78 = tpu.matmul %73, %75, %cst_24 {dimension_numbers = #tpu.dot_dimension_numbers<[2], [2], [1], [1], [0, 0, 0, 1, 1, 1], [0], [0]>} : vector<2x16x64xbf16>, vector<2x16x64xbf16>, vector<2x16x16xf32> -> vector<2x16x16xf32>
    "tpu.trace_stop"() : () -> ()
    %cst_25 = arith.constant dense<0xFF800000> : vector<2x16xf32>
    %79 = vector.multi_reduction <maximumf>, %78, %cst_25 [2] : vector<2x16x16xf32> to vector<2x16xf32>
    %80 = vector.shape_cast %79 : vector<2x16xf32> to vector<2x16x1xf32>
    %81 = vector.broadcast %80 : vector<2x16x1xf32> to vector<2x16x16xf32>
    %82 = arith.subf %78, %81 : vector<2x16x16xf32>
    %83 = math.exp %82 : vector<2x16x16xf32>
    %cst_26 = arith.constant dense<0.000000e+00> : vector<2x16xf32>
    %84 = vector.multi_reduction <add>, %83, %cst_26 [2] : vector<2x16x16xf32> to vector<2x16xf32>
    %85 = vector.shape_cast %84 : vector<2x16xf32> to vector<2x16x1xf32>
    %86 = tpu.reciprocal %85 {approx = true} : vector<2x16x1xf32> -> vector<2x16x1xf32>
    %87 = vector.broadcast %86 : vector<2x16x1xf32> to vector<2x16x16xf32>
    %88 = arith.mulf %83, %87 : vector<2x16x16xf32>
    %89 = arith.truncf %88 : vector<2x16x16xf32> to vector<2x16x16xbf16>
    "tpu.trace_start"() <{level = 10 : i32, message = "bqk,bkd->bqd"}> : () -> ()
    %cst_27 = arith.constant dense<0.000000e+00> : vector<2x16x64xf32>
    %90 = tpu.matmul %89, %77, %cst_27 {dimension_numbers = #tpu.dot_dimension_numbers<[2], [1], [1], [2], [0, 0, 0, 1, 1, 2], [0], [0]>} : vector<2x16x16xbf16>, vector<2x16x64xbf16>, vector<2x16x64xf32> -> vector<2x16x64xf32>
    "tpu.trace_stop"() : () -> ()
    %91 = vector.shape_cast %90 : vector<2x16x64xf32> to vector<32x64xf32>
    %92 = arith.truncf %91 : vector<32x64xf32> to vector<32x64xbf16>
    %93 = vector.extract_strided_slice %22 {offsets = [0, 128], sizes = [256, 64], strides = [1, 1]} : vector<256x256xbf16> to vector<256x64xbf16>
    %cst_28 = arith.constant dense<0.000000e+00> : vector<32x256xf32>
    %94 = tpu.matmul %92, %93, %cst_28 {dimension_numbers = #tpu.dot_dimension_numbers<[1], [1], [0], [0], [0, 0, 1, 0], [], []>} : vector<32x64xbf16>, vector<256x64xbf16>, vector<32x256xf32> -> vector<32x256xf32>
    %95 = arith.addf %71, %94 : vector<32x256xf32>
    %96 = vector.extract_strided_slice %16 {offsets = [0, 0, 192], sizes = [2, 16, 64], strides = [1, 1, 1]} : vector<2x16x256xf32> to vector<2x16x64xf32>
    %97 = arith.truncf %96 : vector<2x16x64xf32> to vector<2x16x64xbf16>
    %98 = vector.extract_strided_slice %18 {offsets = [0, 0, 192], sizes = [2, 16, 64], strides = [1, 1, 1]} : vector<2x16x256xf32> to vector<2x16x64xf32>
    %99 = arith.truncf %98 : vector<2x16x64xf32> to vector<2x16x64xbf16>
    %100 = vector.extract_strided_slice %20 {offsets = [0, 0, 192], sizes = [2, 16, 64], strides = [1, 1, 1]} : vector<2x16x256xf32> to vector<2x16x64xf32>
    %101 = arith.truncf %100 : vector<2x16x64xf32> to vector<2x16x64xbf16>
    "tpu.trace_start"() <{level = 10 : i32, message = "bqd,bkd->bqk"}> : () -> ()
    %cst_29 = arith.constant dense<0.000000e+00> : vector<2x16x16xf32>
    %102 = tpu.matmul %97, %99, %cst_29 {dimension_numbers = #tpu.dot_dimension_numbers<[2], [2], [1], [1], [0, 0, 0, 1, 1, 1], [0], [0]>} : vector<2x16x64xbf16>, vector<2x16x64xbf16>, vector<2x16x16xf32> -> vector<2x16x16xf32>
    "tpu.trace_stop"() : () -> ()
    %cst_30 = arith.constant dense<0xFF800000> : vector<2x16xf32>
    %103 = vector.multi_reduction <maximumf>, %102, %cst_30 [2] : vector<2x16x16xf32> to vector<2x16xf32>
    %104 = vector.shape_cast %103 : vector<2x16xf32> to vector<2x16x1xf32>
    %105 = vector.broadcast %104 : vector<2x16x1xf32> to vector<2x16x16xf32>
    %106 = arith.subf %102, %105 : vector<2x16x16xf32>
    %107 = math.exp %106 : vector<2x16x16xf32>
    %cst_31 = arith.constant dense<0.000000e+00> : vector<2x16xf32>
    %108 = vector.multi_reduction <add>, %107, %cst_31 [2] : vector<2x16x16xf32> to vector<2x16xf32>
    %109 = vector.shape_cast %108 : vector<2x16xf32> to vector<2x16x1xf32>
    %110 = tpu.reciprocal %109 {approx = true} : vector<2x16x1xf32> -> vector<2x16x1xf32>
    %111 = vector.broadcast %110 : vector<2x16x1xf32> to vector<2x16x16xf32>
    %112 = arith.mulf %107, %111 : vector<2x16x16xf32>
    %113 = arith.truncf %112 : vector<2x16x16xf32> to vector<2x16x16xbf16>
    "tpu.trace_start"() <{level = 10 : i32, message = "bqk,bkd->bqd"}> : () -> ()
    %cst_32 = arith.constant dense<0.000000e+00> : vector<2x16x64xf32>
    %114 = tpu.matmul %113, %101, %cst_32 {dimension_numbers = #tpu.dot_dimension_numbers<[2], [1], [1], [2], [0, 0, 0, 1, 1, 2], [0], [0]>} : vector<2x16x16xbf16>, vector<2x16x64xbf16>, vector<2x16x64xf32> -> vector<2x16x64xf32>
    "tpu.trace_stop"() : () -> ()
    %115 = vector.shape_cast %114 : vector<2x16x64xf32> to vector<32x64xf32>
    %116 = arith.truncf %115 : vector<32x64xf32> to vector<32x64xbf16>
    %117 = vector.extract_strided_slice %22 {offsets = [0, 192], sizes = [256, 64], strides = [1, 1]} : vector<256x256xbf16> to vector<256x64xbf16>
    %cst_33 = arith.constant dense<0.000000e+00> : vector<32x256xf32>
    %118 = tpu.matmul %116, %117, %cst_33 {dimension_numbers = #tpu.dot_dimension_numbers<[1], [1], [0], [0], [0, 0, 1, 0], [], []>} : vector<32x64xbf16>, vector<256x64xbf16>, vector<32x256xf32> -> vector<32x256xf32>
    %119 = arith.addf %95, %118 : vector<32x256xf32>
    %c0_34 = arith.constant 0 : index
    %c0_35 = arith.constant 0 : index
    %c0_36 = arith.constant 0 : index
    %120 = vector.load %arg6[%c0_34, %c0_35, %c0_36] : memref<1x1x256xf32, #tpu.memory_space<vmem>>, vector<1x1x256xf32>
    %121 = vector.shape_cast %120 : vector<1x1x256xf32> to vector<1x256xf32>
    %122 = vector.broadcast %121 : vector<1x256xf32> to vector<32x256xf32>
    %123 = arith.addf %119, %122 : vector<32x256xf32>
    %124 = arith.addf %4, %123 : vector<32x256xf32>
    %c0_37 = arith.constant 0 : index
    %c0_38 = arith.constant 0 : index
    %c0_39 = arith.constant 0 : index
    %125 = vector.load %arg7[%c0_37, %c0_38, %c0_39] : memref<1x1x256xf32, #tpu.memory_space<vmem>>, vector<1x1x256xf32>
    %126 = vector.shape_cast %125 : vector<1x1x256xf32> to vector<1x256xf32>
    %c0_40 = arith.constant 0 : index
    %c0_41 = arith.constant 0 : index
    %c0_42 = arith.constant 0 : index
    %127 = vector.load %arg8[%c0_40, %c0_41, %c0_42] : memref<1x1x256xf32, #tpu.memory_space<vmem>>, vector<1x1x256xf32>
    %128 = vector.shape_cast %127 : vector<1x1x256xf32> to vector<1x256xf32>
    %cst_43 = arith.constant dense<0.000000e+00> : vector<32xf32>
    %129 = vector.multi_reduction <add>, %124, %cst_43 [1] : vector<32x256xf32> to vector<32xf32>
    %130 = vector.shape_cast %129 : vector<32xf32> to vector<32x1xf32>
    %cst_44 = arith.constant 2.560000e+02 : f32
    %131 = vector.broadcast %cst_44 : f32 to vector<32x1xf32>
    %132 = arith.divf %130, %131 : vector<32x1xf32>
    %133 = vector.broadcast %132 : vector<32x1xf32> to vector<32x256xf32>
    %134 = arith.subf %124, %133 : vector<32x256xf32>
    %135 = arith.mulf %134, %134 : vector<32x256xf32>
    %cst_45 = arith.constant dense<0.000000e+00> : vector<32xf32>
    %136 = vector.multi_reduction <add>, %135, %cst_45 [1] : vector<32x256xf32> to vector<32xf32>
    %137 = vector.shape_cast %136 : vector<32xf32> to vector<32x1xf32>
    %cst_46 = arith.constant 2.560000e+02 : f32
    %138 = vector.broadcast %cst_46 : f32 to vector<32x1xf32>
    %139 = arith.divf %137, %138 : vector<32x1xf32>
    %140 = vector.broadcast %132 : vector<32x1xf32> to vector<32x256xf32>
    %141 = arith.subf %124, %140 : vector<32x256xf32>
    %cst_47 = arith.constant 9.99999974E-6 : f32
    %142 = vector.broadcast %cst_47 : f32 to vector<32x1xf32>
    %143 = arith.addf %139, %142 : vector<32x1xf32>
    %144 = math.rsqrt %143 : vector<32x1xf32>
    %145 = vector.broadcast %144 : vector<32x1xf32> to vector<32x256xf32>
    %146 = arith.mulf %141, %145 : vector<32x256xf32>
    %147 = vector.broadcast %126 : vector<1x256xf32> to vector<32x256xf32>
    %148 = arith.mulf %146, %147 : vector<32x256xf32>
    %149 = vector.broadcast %128 : vector<1x256xf32> to vector<32x256xf32>
    %150 = arith.addf %148, %149 : vector<32x256xf32>
    %c0_48 = arith.constant 0 : index
    %c0_49 = arith.constant 0 : index
    %c0_50 = arith.constant 0 : index
    %151 = vector.load %arg9[%c0_48, %c0_49, %c0_50] : memref<1x128x256xbf16, #tpu.memory_space<vmem>>, vector<1x128x256xbf16>
    %152 = vector.shape_cast %151 : vector<1x128x256xbf16> to vector<128x256xbf16>
    %c0_51 = arith.constant 0 : index
    %c0_52 = arith.constant 0 : index
    %c0_53 = arith.constant 0 : index
    %153 = vector.load %arg10[%c0_51, %c0_52, %c0_53] : memref<1x1x128xf32, #tpu.memory_space<vmem>>, vector<1x1x128xf32>
    %154 = vector.shape_cast %153 : vector<1x1x128xf32> to vector<1x128xf32>
    %155 = arith.truncf %150 : vector<32x256xf32> to vector<32x256xbf16>
    %cst_54 = arith.constant dense<0.000000e+00> : vector<32x128xf32>
    %156 = tpu.matmul %155, %152, %cst_54 {dimension_numbers = #tpu.dot_dimension_numbers<[1], [1], [0], [0], [0, 0, 1, 0], [], []>} : vector<32x256xbf16>, vector<128x256xbf16>, vector<32x128xf32> -> vector<32x128xf32>
    %157 = vector.broadcast %154 : vector<1x128xf32> to vector<32x128xf32>
    %158 = arith.addf %156, %157 : vector<32x128xf32>
    %cst_55 = arith.constant 0.000000e+00 : f32
    %159 = vector.broadcast %cst_55 : f32 to vector<32x128xf32>
    %160 = arith.maximumf %158, %159 : vector<32x128xf32>
    %c0_56 = arith.constant 0 : index
    %c0_57 = arith.constant 0 : index
    %c0_58 = arith.constant 0 : index
    %161 = vector.load %arg11[%c0_56, %c0_57, %c0_58] : memref<1x256x128xbf16, #tpu.memory_space<vmem>>, vector<1x256x128xbf16>
    %162 = vector.shape_cast %161 : vector<1x256x128xbf16> to vector<256x128xbf16>
    %c0_59 = arith.constant 0 : index
    %c0_60 = arith.constant 0 : index
    %c0_61 = arith.constant 0 : index
    %163 = vector.load %arg12[%c0_59, %c0_60, %c0_61] : memref<1x1x256xf32, #tpu.memory_space<vmem>>, vector<1x1x256xf32>
    %164 = vector.shape_cast %163 : vector<1x1x256xf32> to vector<1x256xf32>
    %165 = arith.truncf %160 : vector<32x128xf32> to vector<32x128xbf16>
    %cst_62 = arith.constant dense<0.000000e+00> : vector<32x256xf32>
    %166 = tpu.matmul %165, %162, %cst_62 {dimension_numbers = #tpu.dot_dimension_numbers<[1], [1], [0], [0], [0, 0, 1, 0], [], []>} : vector<32x128xbf16>, vector<256x128xbf16>, vector<32x256xf32> -> vector<32x256xf32>
    %167 = vector.broadcast %164 : vector<1x256xf32> to vector<32x256xf32>
    %168 = arith.addf %166, %167 : vector<32x256xf32>
    %169 = arith.addf %150, %168 : vector<32x256xf32>
    %c0_63 = arith.constant 0 : index
    %c0_64 = arith.constant 0 : index
    %c0_65 = arith.constant 0 : index
    %170 = vector.load %arg13[%c0_63, %c0_64, %c0_65] : memref<1x1x256xf32, #tpu.memory_space<vmem>>, vector<1x1x256xf32>
    %171 = vector.shape_cast %170 : vector<1x1x256xf32> to vector<1x256xf32>
    %c0_66 = arith.constant 0 : index
    %c0_67 = arith.constant 0 : index
    %c0_68 = arith.constant 0 : index
    %172 = vector.load %arg14[%c0_66, %c0_67, %c0_68] : memref<1x1x256xf32, #tpu.memory_space<vmem>>, vector<1x1x256xf32>
    %173 = vector.shape_cast %172 : vector<1x1x256xf32> to vector<1x256xf32>
    %cst_69 = arith.constant dense<0.000000e+00> : vector<32xf32>
    %174 = vector.multi_reduction <add>, %169, %cst_69 [1] : vector<32x256xf32> to vector<32xf32>
    %175 = vector.shape_cast %174 : vector<32xf32> to vector<32x1xf32>
    %cst_70 = arith.constant 2.560000e+02 : f32
    %176 = vector.broadcast %cst_70 : f32 to vector<32x1xf32>
    %177 = arith.divf %175, %176 : vector<32x1xf32>
    %178 = vector.broadcast %177 : vector<32x1xf32> to vector<32x256xf32>
    %179 = arith.subf %169, %178 : vector<32x256xf32>
    %180 = arith.mulf %179, %179 : vector<32x256xf32>
    %cst_71 = arith.constant dense<0.000000e+00> : vector<32xf32>
    %181 = vector.multi_reduction <add>, %180, %cst_71 [1] : vector<32x256xf32> to vector<32xf32>
    %182 = vector.shape_cast %181 : vector<32xf32> to vector<32x1xf32>
    %cst_72 = arith.constant 2.560000e+02 : f32
    %183 = vector.broadcast %cst_72 : f32 to vector<32x1xf32>
    %184 = arith.divf %182, %183 : vector<32x1xf32>
    %185 = vector.broadcast %177 : vector<32x1xf32> to vector<32x256xf32>
    %186 = arith.subf %169, %185 : vector<32x256xf32>
    %cst_73 = arith.constant 9.99999974E-6 : f32
    %187 = vector.broadcast %cst_73 : f32 to vector<32x1xf32>
    %188 = arith.addf %184, %187 : vector<32x1xf32>
    %189 = math.rsqrt %188 : vector<32x1xf32>
    %190 = vector.broadcast %189 : vector<32x1xf32> to vector<32x256xf32>
    %191 = arith.mulf %186, %190 : vector<32x256xf32>
    %192 = vector.broadcast %171 : vector<1x256xf32> to vector<32x256xf32>
    %193 = arith.mulf %191, %192 : vector<32x256xf32>
    %194 = vector.broadcast %173 : vector<1x256xf32> to vector<32x256xf32>
    %195 = arith.addf %193, %194 : vector<32x256xf32>
    %196 = vector.shape_cast %195 : vector<32x256xf32> to vector<2x16x256xf32>
    %c0_74 = arith.constant 0 : index
    %c0_75 = arith.constant 0 : index
    %c0_76 = arith.constant 0 : index
    %197 = vector.load %arg20[%c0_74, %c0_75, %c0_76] : memref<2x16x256xf32, #tpu.memory_space<vmem>>, vector<2x16x256xf32>
    tpu.vector_store %arg20[%c0_74, %c0_75, %c0_76], %196 {strides = array<i32>} : memref<2x16x256xf32, #tpu.memory_space<vmem>>, vector<2x16x256xf32>,
    %c5_i32 = arith.constant 5 : i32
    %198 = arith.cmpi eq, %arg0, %c5_i32 : i32
    %199 = arith.extui %198 : i1 to i32
    %c0_i32_77 = arith.constant 0 : i32
    %200 = arith.cmpi ne, %199, %c0_i32_77 : i32
    scf.if %200 {
      %201 = vector.shape_cast %195 : vector<32x256xf32> to vector<2x16x256xf32>
      %202 = vector.extract_strided_slice %201 {offsets = [0, 0, 0], sizes = [2, 1, 256], strides = [1, 1, 1]} : vector<2x16x256xf32> to vector<2x1x256xf32>
      %203 = vector.shape_cast %202 : vector<2x1x256xf32> to vector<2x256xf32>
      %c0_78 = arith.constant 0 : index
      %c0_79 = arith.constant 0 : index
      %204 = vector.load %arg15[%c0_78, %c0_79] : memref<1024x256xbf16, #tpu.memory_space<vmem>>, vector<1024x256xbf16>
      %c0_80 = arith.constant 0 : index
      %c0_81 = arith.constant 0 : index
      %205 = vector.load %arg16[%c0_80, %c0_81] : memref<1x1024xf32, #tpu.memory_space<vmem>>, vector<1x1024xf32>
      %206 = arith.truncf %203 : vector<2x256xf32> to vector<2x256xbf16>
      %cst_82 = arith.constant dense<0.000000e+00> : vector<2x1024xf32>
      %207 = tpu.matmul %206, %204, %cst_82 {dimension_numbers = #tpu.dot_dimension_numbers<[1], [1], [0], [0], [0, 0, 1, 0], [], []>} : vector<2x256xbf16>, vector<1024x256xbf16>, vector<2x1024xf32> -> vector<2x1024xf32>
      %208 = vector.broadcast %205 : vector<1x1024xf32> to vector<2x1024xf32>
      %209 = arith.addf %207, %208 : vector<2x1024xf32>
      %cst_83 = arith.constant 0.000000e+00 : f32
      %210 = vector.broadcast %cst_83 : f32 to vector<2x1024xf32>
      %211 = arith.maximumf %209, %210 : vector<2x1024xf32>
      %c0_84 = arith.constant 0 : index
      %c0_85 = arith.constant 0 : index
      %212 = vector.load %arg17[%c0_84, %c0_85] : memref<64x1024xbf16, #tpu.memory_space<vmem>>, vector<64x1024xbf16>
      %c0_86 = arith.constant 0 : index
      %c0_87 = arith.constant 0 : index
      %213 = vector.load %arg18[%c0_86, %c0_87] : memref<1x64xf32, #tpu.memory_space<vmem>>, vector<1x64xf32>
      %214 = arith.truncf %211 : vector<2x1024xf32> to vector<2x1024xbf16>
      %cst_88 = arith.constant dense<0.000000e+00> : vector<2x64xf32>
      %215 = tpu.matmul %214, %212, %cst_88 {dimension_numbers = #tpu.dot_dimension_numbers<[1], [1], [0], [0], [0, 0, 1, 0], [], []>} : vector<2x1024xbf16>, vector<64x1024xbf16>, vector<2x64xf32> -> vector<2x64xf32>
      %216 = vector.broadcast %213 : vector<1x64xf32> to vector<2x64xf32>
      %217 = arith.addf %215, %216 : vector<2x64xf32>
      %c0_89 = arith.constant 0 : index
      %c0_90 = arith.constant 0 : index
      %218 = vector.load %arg19[%c0_89, %c0_90] : memref<2x64xf32, #tpu.memory_space<vmem>>, vector<2x64xf32>
      tpu.vector_store %arg19[%c0_89, %c0_90], %217 {strides = array<i32>} : memref<2x64xf32, #tpu.memory_space<vmem>>, vector<2x64xf32>,
    } else {
    }
    return
  }
  func.func @transform_0(%arg0: i32) -> (i32, i32, i32) {
    %c0_i32 = arith.constant 0 : i32
    %c0_i32_0 = arith.constant 0 : i32
    %c0_i32_1 = arith.constant 0 : i32
    %c0_i32_2 = arith.constant 0 : i32
    return %c0_i32, %c0_i32_0, %c0_i32_1 : i32, i32, i32
  }
  func.func @transform_1(%arg0: i32) -> (i32, i32) {
    %c0_i32 = arith.constant 0 : i32
    %c0_i32_0 = arith.constant 0 : i32
    %c0_i32_1 = arith.constant 0 : i32
    return %c0_i32, %c0_i32_0 : i32, i32
  }
  func.func @transform_2(%arg0: i32) -> (i32, i32, i32) {
    %c0_i32 = arith.constant 0 : i32
    %c0_i32_0 = arith.constant 0 : i32
    %c0_i32_1 = arith.constant 0 : i32
    return %arg0, %c0_i32, %c0_i32_0 : i32, i32, i32
  }
  func.func @transform_3(%arg0: i32) -> (i32, i32, i32) {
    %c0_i32 = arith.constant 0 : i32
    %c0_i32_0 = arith.constant 0 : i32
    %c0_i32_1 = arith.constant 0 : i32
    return %arg0, %c0_i32, %c0_i32_0 : i32, i32, i32
  }
  func.func @transform_4(%arg0: i32) -> (i32, i32, i32) {
    %c0_i32 = arith.constant 0 : i32
    %c0_i32_0 = arith.constant 0 : i32
    %c0_i32_1 = arith.constant 0 : i32
    return %arg0, %c0_i32, %c0_i32_0 : i32, i32, i32
  }
  func.func @transform_5(%arg0: i32) -> (i32, i32, i32) {
    %c0_i32 = arith.constant 0 : i32
    %c0_i32_0 = arith.constant 0 : i32
    %c0_i32_1 = arith.constant 0 : i32
    return %arg0, %c0_i32, %c0_i32_0 : i32, i32, i32
  }
  func.func @transform_6(%arg0: i32) -> (i32, i32, i32) {
    %c0_i32 = arith.constant 0 : i32
    %c0_i32_0 = arith.constant 0 : i32
    %c0_i32_1 = arith.constant 0 : i32
    return %arg0, %c0_i32, %c0_i32_0 : i32, i32, i32
  }
  func.func @transform_7(%arg0: i32) -> (i32, i32, i32) {
    %c0_i32 = arith.constant 0 : i32
    %c0_i32_0 = arith.constant 0 : i32
    %c0_i32_1 = arith.constant 0 : i32
    return %arg0, %c0_i32, %c0_i32_0 : i32, i32, i32
  }
  func.func @transform_8(%arg0: i32) -> (i32, i32, i32) {
    %c0_i32 = arith.constant 0 : i32
    %c0_i32_0 = arith.constant 0 : i32
    %c0_i32_1 = arith.constant 0 : i32
    return %arg0, %c0_i32, %c0_i32_0 : i32, i32, i32
  }
  func.func @transform_9(%arg0: i32) -> (i32, i32, i32) {
    %c0_i32 = arith.constant 0 : i32
    %c0_i32_0 = arith.constant 0 : i32
    %c0_i32_1 = arith.constant 0 : i32
    return %arg0, %c0_i32, %c0_i32_0 : i32, i32, i32
  }
  func.func @transform_10(%arg0: i32) -> (i32, i32, i32) {
    %c0_i32 = arith.constant 0 : i32
    %c0_i32_0 = arith.constant 0 : i32
    %c0_i32_1 = arith.constant 0 : i32
    return %arg0, %c0_i32, %c0_i32_0 : i32, i32, i32
  }
  func.func @transform_11(%arg0: i32) -> (i32, i32, i32) {
    %c0_i32 = arith.constant 0 : i32
    %c0_i32_0 = arith.constant 0 : i32
    %c0_i32_1 = arith.constant 0 : i32
    return %arg0, %c0_i32, %c0_i32_0 : i32, i32, i32
  }
  func.func @transform_12(%arg0: i32) -> (i32, i32, i32) {
    %c0_i32 = arith.constant 0 : i32
    %c0_i32_0 = arith.constant 0 : i32
    %c0_i32_1 = arith.constant 0 : i32
    return %arg0, %c0_i32, %c0_i32_0 : i32, i32, i32
  }
  func.func @transform_13(%arg0: i32) -> (i32, i32, i32) {
    %c0_i32 = arith.constant 0 : i32
    %c0_i32_0 = arith.constant 0 : i32
    %c0_i32_1 = arith.constant 0 : i32
    return %arg0, %c0_i32, %c0_i32_0 : i32, i32, i32
  }
  func.func @transform_14(%arg0: i32) -> (i32, i32) {
    %c0_i32 = arith.constant 0 : i32
    %c0_i32_0 = arith.constant 0 : i32
    %c0_i32_1 = arith.constant 0 : i32
    return %c0_i32, %c0_i32_0 : i32, i32
  }
  func.func @transform_15(%arg0: i32) -> (i32, i32) {
    %c0_i32 = arith.constant 0 : i32
    %c0_i32_0 = arith.constant 0 : i32
    %c0_i32_1 = arith.constant 0 : i32
    return %c0_i32, %c0_i32_0 : i32, i32
  }
  func.func @transform_16(%arg0: i32) -> (i32, i32) {
    %c0_i32 = arith.constant 0 : i32
    %c0_i32_0 = arith.constant 0 : i32
    %c0_i32_1 = arith.constant 0 : i32
    return %c0_i32, %c0_i32_0 : i32, i32
  }
  func.func @transform_17(%arg0: i32) -> (i32, i32) {
    %c0_i32 = arith.constant 0 : i32
    %c0_i32_0 = arith.constant 0 : i32
    %c0_i32_1 = arith.constant 0 : i32
    return %c0_i32, %c0_i32_0 : i32, i32
  }
  func.func @transform_18(%arg0: i32) -> (i32, i32) {
    %c0_i32 = arith.constant 0 : i32
    %c0_i32_0 = arith.constant 0 : i32
    %c0_i32_1 = arith.constant 0 : i32
    return %c0_i32, %c0_i32_0 : i32, i32
  }
}

</mosaic_0001>

<llo_original>
// kernel: encoder_only_forward.1
$region0: #{encoder_only_forward.1}
  #allocation0 [shape = 'u32[]', space=smem, size = 0x4, offset = 0x4, fixed_abs, tag = 'smem constant byte address 0x4 - core index']
  #allocation1 [shape = 'u32[144,128]{1,0:T(1,128)}', space=vmem, size = 0x12000, scoped, tag = 'internal scratch']
  #allocation2 [shape = 'f32[2,16,256]{2,1,0:T(8,128)}', space=vmem, size = 0x8000, scoped, tag = 'scratch operand']
  %s0 = inlined_call_operand.hbm [shape: f32[2,16,256], index: 0, kind: input, shape index: {}]
  %s1 = inlined_call_operand.hbm [shape: f32[16,256], index: 1, kind: input, shape index: {}]
  %s2 = inlined_call_operand.hbm [shape: bf16[6,768,256], index: 2, kind: input, shape index: {}]
  %s3 = inlined_call_operand.hbm [shape: f32[6,1,768], index: 3, kind: input, shape index: {}]
  %s4 = inlined_call_operand.hbm [shape: bf16[6,256,256], index: 4, kind: input, shape index: {}]
  %s5 = inlined_call_operand.hbm [shape: f32[6,1,256], index: 5, kind: input, shape index: {}]
  %s6 = inlined_call_operand.hbm [shape: f32[6,1,256], index: 6, kind: input, shape index: {}]
  %s7 = inlined_call_operand.hbm [shape: f32[6,1,256], index: 7, kind: input, shape index: {}]
  %s8 = inlined_call_operand.hbm [shape: bf16[6,128,256], index: 8, kind: input, shape index: {}]
  %s9 = inlined_call_operand.hbm [shape: f32[6,1,128], index: 9, kind: input, shape index: {}]
  %s10 = inlined_call_operand.hbm [shape: bf16[6,256,128], index: 10, kind: input, shape index: {}]
  %s11 = inlined_call_operand.hbm [shape: f32[6,1,256], index: 11, kind: input, shape index: {}]
  %s12 = inlined_call_operand.hbm [shape: f32[6,1,256], index: 12, kind: input, shape index: {}]
  %s13 = inlined_call_operand.hbm [shape: f32[6,1,256], index: 13, kind: input, shape index: {}]
  %s14 = inlined_call_operand.hbm [shape: bf16[1024,256], index: 14, kind: input, shape index: {}]
  %s15 = inlined_call_operand.hbm [shape: f32[1,1024], index: 15, kind: input, shape index: {}]
  %s16 = inlined_call_operand.hbm [shape: bf16[64,1024], index: 16, kind: input, shape index: {}]
  %s17 = inlined_call_operand.hbm [shape: f32[1,64], index: 17, kind: input, shape index: {}]
  %s18 = inlined_call_operand.hbm [shape: f32[2,64], index: 18, kind: output, shape index: {}]
  %s19 = sld [smem:[#allocation0]]
  $region185: #{encoder_only_forward.1} parent=0
    _
  %s21 = ssub.s32 1, %s19
  %s22 = scalar_select 0, %s21, %s19
  $region1: #{encoder_only_forward.1} parent=0
    #allocation3 [shape = 'u8[32768]{0}', space=vmem, size = 0x8000, scoped, tag = 'input window, operand 0, single buffered']
    #allocation4 [shape = 's32[2]{0}', space=sflag, size = 0x8, scoped, tag = 'scoped memory for encoder_only_forward.1']
    #allocation5 [shape = 's32[2]{0}', space=sflag, size = 0x8, scoped, tag = 'scoped memory for encoder_only_forward.1']
    #allocation6 [shape = 'u8[16384]{0}', space=vmem, size = 0x4000, scoped, tag = 'input window, operand 1, single buffered']
    #allocation7 [shape = 's32[1]{0}', space=sflag, size = 0x4, scoped, tag = 'scoped memory for encoder_only_forward.1']
    #allocation8 [shape = 'u8[786432]{0}', space=vmem, size = 0xc0000, scoped, tag = 'input window, operand 2']
    #allocation9 [shape = 'u8[6144]{0}', space=vmem, size = 0x1800, scoped, tag = 'input window, operand 3']
    #allocation10 [shape = 'u8[262144]{0}', space=vmem, size = 0x40000, scoped, tag = 'input window, operand 4']
    #allocation11 [shape = 'u8[2048]{0}', space=vmem, size = 0x800, scoped, tag = 'input window, operand 5']
    #allocation12 [shape = 'u8[2048]{0}', space=vmem, size = 0x800, scoped, tag = 'input window, operand 6']
    #allocation13 [shape = 'u8[2048]{0}', space=vmem, size = 0x800, scoped, tag = 'input window, operand 7']
    #allocation14 [shape = 'u8[131072]{0}', space=vmem, size = 0x20000, scoped, tag = 'input window, operand 8']
    #allocation15 [shape = 'u8[1024]{0}', space=vmem, size = 0x400, scoped, tag = 'input window, operand 9']
    #allocation16 [shape = 'u8[131072]{0}', space=vmem, size = 0x20000, scoped, tag = 'input window, operand 10']
    #allocation17 [shape = 'u8[2048]{0}', space=vmem, size = 0x800, scoped, tag = 'input window, operand 11']
    #allocation18 [shape = 'u8[2048]{0}', space=vmem, size = 0x800, scoped, tag = 'input window, operand 12']
    #allocation19 [shape = 'u8[2048]{0}', space=vmem, size = 0x800, scoped, tag = 'input window, operand 13']
    #allocation20 [shape = 'u8[524288]{0}', space=vmem, size = 0x80000, scoped, tag = 'input window, operand 14, single buffered']
    #allocation21 [shape = 'u8[4096]{0}', space=vmem, size = 0x1000, scoped, tag = 'input window, operand 15, single buffered']
    #allocation22 [shape = 's32[1]{0}', space=sflag, size = 0x4, scoped, tag = 'scoped memory for encoder_only_forward.1']
    #allocation23 [shape = 'u8[131072]{0}', space=vmem, size = 0x20000, scoped, tag = 'input window, operand 16, single buffered']
    #allocation24 [shape = 'u8[512]{0}', space=vmem, size = 0x400, scoped, tag = 'input window, operand 17, single buffered']
    #allocation25 [shape = 's32[1]{0}', space=sflag, size = 0x4, scoped, tag = 'scoped memory for encoder_only_forward.1']
    #allocation26 [shape = 'u8[1024]{0}', space=vmem, size = 0x400, scoped, tag = 'output window, operand 0, single buffered']
    %23 = vsyncpa [#allocation4], 0
    %24 = vsyncpa [#allocation7], 0
    %25 = vsyncpa [#allocation22], 0
    %26 = vsyncpa [#allocation25], 0
    %27 = vsyncpa [#allocation5], 0
    loop: start=0, step=1, limit=8
    $region2: #{encoder_only_forward.1} parent=1 // loop_pre_header
      _
    $region3: #{encoder_only_forward.1} parent=1 // loop_header
      %s29 = sphi 0, %s33
      %p30 = scmp.ge.s32.totalorder %s29, 8
      %s37 = sphi 0, %s37
      %s39 = sphi 0, %s37
      %s40 = sphi 0, %s39
      %s54 = sphi 0, %s40
      %s58 = sphi 0, %s58
      %s60 = sphi 0, %s58
      %s61 = sphi 0, %s60
      %s75 = sphi 0, %s61
      %s81 = sphi 0, %s83
      %s84 = sphi 0, %s81
      %s85 = sphi 0, %s84
      %s101 = sphi 0, %s85
      %s107 = sphi 0, %s109
      %s110 = sphi 0, %s107
      %s111 = sphi 0, %s110
      %s127 = sphi 0, %s111
      %s133 = sphi 0, %s135
      %s136 = sphi 0, %s133
      %s137 = sphi 0, %s136
      %s153 = sphi 0, %s137
      %s159 = sphi 0, %s161
      %s162 = sphi 0, %s159
      %s163 = sphi 0, %s162
      %s179 = sphi 0, %s163
      %s185 = sphi 0, %s187
      %s188 = sphi 0, %s185
      %s189 = sphi 0, %s188
      %s205 = sphi 0, %s189
      %s211 = sphi 0, %s213
      %s214 = sphi 0, %s211
      %s215 = sphi 0, %s214
      %s231 = sphi 0, %s215
      %s237 = sphi 0, %s239
      %s240 = sphi 0, %s237
      %s241 = sphi 0, %s240
      %s257 = sphi 0, %s241
      %s263 = sphi 0, %s265
      %s266 = sphi 0, %s263
      %s267 = sphi 0, %s266
      %s283 = sphi 0, %s267
      %s289 = sphi 0, %s291
      %s292 = sphi 0, %s289
      %s293 = sphi 0, %s292
      %s309 = sphi 0, %s293
      %s315 = sphi 0, %s317
      %s318 = sphi 0, %s315
      %s319 = sphi 0, %s318
      %s335 = sphi 0, %s319
      %s341 = sphi 0, %s343
      %s344 = sphi 0, %s341
      %s345 = sphi 0, %s344
      %s361 = sphi 0, %s345
      %s367 = sphi 0, %s369
      %s370 = sphi 0, %s367
      %s371 = sphi 0, %s370
      %s387 = sphi 0, %s371
      %s391 = sphi 0, %s391
      %s393 = sphi 0, %s391
      %s394 = sphi 0, %s393
      %s408 = sphi 0, %s394
      %s412 = sphi 0, %s412
      %s414 = sphi 0, %s412
      %s415 = sphi 0, %s414
      %s429 = sphi 0, %s415
      %s433 = sphi 0, %s433
      %s435 = sphi 0, %s433
      %s436 = sphi 0, %s435
      %s450 = sphi 0, %s436
      %s454 = sphi 0, %s454
      %s456 = sphi 0, %s454
      %s457 = sphi 0, %s456
      %s471 = sphi 0, %s457
      %s475 = sphi 0, %s475
      %s477 = sphi 0, %s475
      %s478 = sphi 0, %s477
      %s492 = sphi 0, %s478
    $region4: #{encoder_only_forward.1} parent=1 // loop_header_branch
      %32 = sbr.rel (%p30) target = $region8
    $region5: #{encoder_only_forward.1} parent=1 // loop_body
      %s34 = ssub.s32 %s29, 1
      %s35 = ssub.s32 %s29, 2
      %s36 = sadd.s32 %s29, 1
      %s38 = sadd.s32 %s37, 1
      %p41 = scmp.eq.s32.totalorder %s29, 5
      %p42 = scmp.ne.s32.totalorder %s37, %s39
      %p43 = scmp.eq.s32.totalorder %s29, 0
      %p44 = por %p42, %p43
      %p45 = scmp.ne.s32.totalorder %s37, %s39
      %p46 = scmp.eq.s32.totalorder %s34, 5
      %p47 = por %p45, %p46
      %p48 = scmp.ne.s32.totalorder %s39, %s40
      %p49 = scmp.eq.s32.totalorder %s34, 0
      %p50 = por %p48, %p49
      %p51 = scmp.ne.s32.totalorder %s39, %s40
      %p52 = scmp.eq.s32.totalorder %s35, 5
      %p53 = por %p51, %p52
      %p55 = scmp.ne.s32.totalorder %s40, %s54
      %p56 = scmp.eq.s32.totalorder %s35, 0
      %p57 = por %p55, %p56
      %s59 = sadd.s32 %s58, 1
      %p62 = scmp.eq.s32.totalorder %s29, 5
      %p63 = scmp.ne.s32.totalorder %s58, %s60
      %p64 = scmp.eq.s32.totalorder %s29, 0
      %p65 = por %p63, %p64
      %p66 = scmp.ne.s32.totalorder %s58, %s60
      %p67 = scmp.eq.s32.totalorder %s34, 5
      %p68 = por %p66, %p67
      %p69 = scmp.ne.s32.totalorder %s60, %s61
      %p70 = scmp.eq.s32.totalorder %s34, 0
      %p71 = por %p69, %p70
      %p72 = scmp.ne.s32.totalorder %s60, %s61
      %p73 = scmp.eq.s32.totalorder %s35, 5
      %p74 = por %p72, %p73
      %p76 = scmp.ne.s32.totalorder %s61, %s75
      %p77 = scmp.eq.s32.totalorder %s35, 0
      %p78 = por %p76, %p77
      %s79 = ssub.s32 %s29, %s36
      %p80 = scmp.eq.s32.totalorder %s79, 0
      %s82 = sadd.s32 %s81, 1
      %s83 = scalar_select %p80, %s81, %s82
      %p86 = pneg %p80
      %p87 = scmp.eq.s32.totalorder %s29, 5
      %p88 = por %p86, %p87
      %p89 = scmp.ne.s32.totalorder %s81, %s84
      %p90 = scmp.eq.s32.totalorder %s29, 0
      %p91 = por %p89, %p90
      %p92 = scmp.ne.s32.totalorder %s81, %s84
      %p93 = scmp.eq.s32.totalorder %s34, 5
      %p94 = por %p92, %p93
      %p95 = scmp.ne.s32.totalorder %s84, %s85
      %p96 = scmp.eq.s32.totalorder %s34, 0
      %p97 = por %p95, %p96
      %p98 = scmp.ne.s32.totalorder %s84, %s85
      %p99 = scmp.eq.s32.totalorder %s35, 5
      %p100 = por %p98, %p99
      %p102 = scmp.ne.s32.totalorder %s85, %s101
      %p103 = scmp.eq.s32.totalorder %s35, 0
      %p104 = por %p102, %p103
      %s105 = ssub.s32 %s29, %s36
      %p106 = scmp.eq.s32.totalorder %s105, 0
      %s108 = sadd.s32 %s107, 1
      %s109 = scalar_select %p106, %s107, %s108
      %p112 = pneg %p106
      %p113 = scmp.eq.s32.totalorder %s29, 5
      %p114 = por %p112, %p113
      %p115 = scmp.ne.s32.totalorder %s107, %s110
      %p116 = scmp.eq.s32.totalorder %s29, 0
      %p117 = por %p115, %p116
      %p118 = scmp.ne.s32.totalorder %s107, %s110
      %p119 = scmp.eq.s32.totalorder %s34, 5
      %p120 = por %p118, %p119
      %p121 = scmp.ne.s32.totalorder %s110, %s111
      %p122 = scmp.eq.s32.totalorder %s34, 0
      %p123 = por %p121, %p122
      %p124 = scmp.ne.s32.totalorder %s110, %s111
      %p125 = scmp.eq.s32.totalorder %s35, 5
      %p126 = por %p124, %p125
      %p128 = scmp.ne.s32.totalorder %s111, %s127
      %p129 = scmp.eq.s32.totalorder %s35, 0
      %p130 = por %p128, %p129
      %s131 = ssub.s32 %s29, %s36
      %p132 = scmp.eq.s32.totalorder %s131, 0
      %s134 = sadd.s32 %s133, 1
      %s135 = scalar_select %p132, %s133, %s134
      %p138 = pneg %p132
      %p139 = scmp.eq.s32.totalorder %s29, 5
      %p140 = por %p138, %p139
      %p141 = scmp.ne.s32.totalorder %s133, %s136
      %p142 = scmp.eq.s32.totalorder %s29, 0
      %p143 = por %p141, %p142
      %p144 = scmp.ne.s32.totalorder %s133, %s136
      %p145 = scmp.eq.s32.totalorder %s34, 5
      %p146 = por %p144, %p145
      %p147 = scmp.ne.s32.totalorder %s136, %s137
      %p148 = scmp.eq.s32.totalorder %s34, 0
      %p149 = por %p147, %p148
      %p150 = scmp.ne.s32.totalorder %s136, %s137
      %p151 = scmp.eq.s32.totalorder %s35, 5
      %p152 = por %p150, %p151
      %p154 = scmp.ne.s32.totalorder %s137, %s153
      %p155 = scmp.eq.s32.totalorder %s35, 0
      %p156 = por %p154, %p155
      %s157 = ssub.s32 %s29, %s36
      %p158 = scmp.eq.s32.totalorder %s157, 0
      %s160 = sadd.s32 %s159, 1
      %s161 = scalar_select %p158, %s159, %s160
      %p164 = pneg %p158
      %p165 = scmp.eq.s32.totalorder %s29, 5
      %p166 = por %p164, %p165
      %p167 = scmp.ne.s32.totalorder %s159, %s162
      %p168 = scmp.eq.s32.totalorder %s29, 0
      %p169 = por %p167, %p168
      %p170 = scmp.ne.s32.totalorder %s159, %s162
      %p171 = scmp.eq.s32.totalorder %s34, 5
      %p172 = por %p170, %p171
      %p173 = scmp.ne.s32.totalorder %s162, %s163
      %p174 = scmp.eq.s32.totalorder %s34, 0
      %p175 = por %p173, %p174
      %p176 = scmp.ne.s32.totalorder %s162, %s163
      %p177 = scmp.eq.s32.totalorder %s35, 5
      %p178 = por %p176, %p177
      %p180 = scmp.ne.s32.totalorder %s163, %s179
      %p181 = scmp.eq.s32.totalorder %s35, 0
      %p182 = por %p180, %p181
      %s183 = ssub.s32 %s29, %s36
      %p184 = scmp.eq.s32.totalorder %s183, 0
      %s186 = sadd.s32 %s185, 1
      %s187 = scalar_select %p184, %s185, %s186
      %p190 = pneg %p184
      %p191 = scmp.eq.s32.totalorder %s29, 5
      %p192 = por %p190, %p191
      %p193 = scmp.ne.s32.totalorder %s185, %s188
      %p194 = scmp.eq.s32.totalorder %s29, 0
      %p195 = por %p193, %p194
      %p196 = scmp.ne.s32.totalorder %s185, %s188
      %p197 = scmp.eq.s32.totalorder %s34, 5
      %p198 = por %p196, %p197
      %p199 = scmp.ne.s32.totalorder %s188, %s189
      %p200 = scmp.eq.s32.totalorder %s34, 0
      %p201 = por %p199, %p200
      %p202 = scmp.ne.s32.totalorder %s188, %s189
      %p203 = scmp.eq.s32.totalorder %s35, 5
      %p204 = por %p202, %p203
      %p206 = scmp.ne.s32.totalorder %s189, %s205
      %p207 = scmp.eq.s32.totalorder %s35, 0
      %p208 = por %p206, %p207
      %s209 = ssub.s32 %s29, %s36
      %p210 = scmp.eq.s32.totalorder %s209, 0
      %s212 = sadd.s32 %s211, 1
      %s213 = scalar_select %p210, %s211, %s212
      %p216 = pneg %p210
      %p217 = scmp.eq.s32.totalorder %s29, 5
      %p218 = por %p216, %p217
      %p219 = scmp.ne.s32.totalorder %s211, %s214
      %p220 = scmp.eq.s32.totalorder %s29, 0
      %p221 = por %p219, %p220
      %p222 = scmp.ne.s32.totalorder %s211, %s214
      %p223 = scmp.eq.s32.totalorder %s34, 5
      %p224 = por %p222, %p223
      %p225 = scmp.ne.s32.totalorder %s214, %s215
      %p226 = scmp.eq.s32.totalorder %s34, 0
      %p227 = por %p225, %p226
      %p228 = scmp.ne.s32.totalorder %s214, %s215
      %p229 = scmp.eq.s32.totalorder %s35, 5
      %p230 = por %p228, %p229
      %p232 = scmp.ne.s32.totalorder %s215, %s231
      %p233 = scmp.eq.s32.totalorder %s35, 0
      %p234 = por %p232, %p233
      %s235 = ssub.s32 %s29, %s36
      %p236 = scmp.eq.s32.totalorder %s235, 0
      %s238 = sadd.s32 %s237, 1
      %s239 = scalar_select %p236, %s237, %s238
      %p242 = pneg %p236
      %p243 = scmp.eq.s32.totalorder %s29, 5
      %p244 = por %p242, %p243
      %p245 = scmp.ne.s32.totalorder %s237, %s240
      %p246 = scmp.eq.s32.totalorder %s29, 0
      %p247 = por %p245, %p246
      %p248 = scmp.ne.s32.totalorder %s237, %s240
      %p249 = scmp.eq.s32.totalorder %s34, 5
      %p250 = por %p248, %p249
      %p251 = scmp.ne.s32.totalorder %s240, %s241
      %p252 = scmp.eq.s32.totalorder %s34, 0
      %p253 = por %p251, %p252
      %p254 = scmp.ne.s32.totalorder %s240, %s241
      %p255 = scmp.eq.s32.totalorder %s35, 5
      %p256 = por %p254, %p255
      %p258 = scmp.ne.s32.totalorder %s241, %s257
      %p259 = scmp.eq.s32.totalorder %s35, 0
      %p260 = por %p258, %p259
      %s261 = ssub.s32 %s29, %s36
      %p262 = scmp.eq.s32.totalorder %s261, 0
      %s264 = sadd.s32 %s263, 1
      %s265 = scalar_select %p262, %s263, %s264
      %p268 = pneg %p262
      %p269 = scmp.eq.s32.totalorder %s29, 5
      %p270 = por %p268, %p269
      %p271 = scmp.ne.s32.totalorder %s263, %s266
      %p272 = scmp.eq.s32.totalorder %s29, 0
      %p273 = por %p271, %p272
      %p274 = scmp.ne.s32.totalorder %s263, %s266
      %p275 = scmp.eq.s32.totalorder %s34, 5
      %p276 = por %p274, %p275
      %p277 = scmp.ne.s32.totalorder %s266, %s267
      %p278 = scmp.eq.s32.totalorder %s34, 0
      %p279 = por %p277, %p278
      %p280 = scmp.ne.s32.totalorder %s266, %s267
      %p281 = scmp.eq.s32.totalorder %s35, 5
      %p282 = por %p280, %p281
      %p284 = scmp.ne.s32.totalorder %s267, %s283
      %p285 = scmp.eq.s32.totalorder %s35, 0
      %p286 = por %p284, %p285
      %s287 = ssub.s32 %s29, %s36
      %p288 = scmp.eq.s32.totalorder %s287, 0
      %s290 = sadd.s32 %s289, 1
      %s291 = scalar_select %p288, %s289, %s290
      %p294 = pneg %p288
      %p295 = scmp.eq.s32.totalorder %s29, 5
      %p296 = por %p294, %p295
      %p297 = scmp.ne.s32.totalorder %s289, %s292
      %p298 = scmp.eq.s32.totalorder %s29, 0
      %p299 = por %p297, %p298
      %p300 = scmp.ne.s32.totalorder %s289, %s292
      %p301 = scmp.eq.s32.totalorder %s34, 5
      %p302 = por %p300, %p301
      %p303 = scmp.ne.s32.totalorder %s292, %s293
      %p304 = scmp.eq.s32.totalorder %s34, 0
      %p305 = por %p303, %p304
      %p306 = scmp.ne.s32.totalorder %s292, %s293
      %p307 = scmp.eq.s32.totalorder %s35, 5
      %p308 = por %p306, %p307
      %p310 = scmp.ne.s32.totalorder %s293, %s309
      %p311 = scmp.eq.s32.totalorder %s35, 0
      %p312 = por %p310, %p311
      %s313 = ssub.s32 %s29, %s36
      %p314 = scmp.eq.s32.totalorder %s313, 0
      %s316 = sadd.s32 %s315, 1
      %s317 = scalar_select %p314, %s315, %s316
      %p320 = pneg %p314
      %p321 = scmp.eq.s32.totalorder %s29, 5
      %p322 = por %p320, %p321
      %p323 = scmp.ne.s32.totalorder %s315, %s318
      %p324 = scmp.eq.s32.totalorder %s29, 0
      %p325 = por %p323, %p324
      %p326 = scmp.ne.s32.totalorder %s315, %s318
      %p327 = scmp.eq.s32.totalorder %s34, 5
      %p328 = por %p326, %p327
      %p329 = scmp.ne.s32.totalorder %s318, %s319
      %p330 = scmp.eq.s32.totalorder %s34, 0
      %p331 = por %p329, %p330
      %p332 = scmp.ne.s32.totalorder %s318, %s319
      %p333 = scmp.eq.s32.totalorder %s35, 5
      %p334 = por %p332, %p333
      %p336 = scmp.ne.s32.totalorder %s319, %s335
      %p337 = scmp.eq.s32.totalorder %s35, 0
      %p338 = por %p336, %p337
      %s339 = ssub.s32 %s29, %s36
      %p340 = scmp.eq.s32.totalorder %s339, 0
      %s342 = sadd.s32 %s341, 1
      %s343 = scalar_select %p340, %s341, %s342
      %p346 = pneg %p340
      %p347 = scmp.eq.s32.totalorder %s29, 5
      %p348 = por %p346, %p347
      %p349 = scmp.ne.s32.totalorder %s341, %s344
      %p350 = scmp.eq.s32.totalorder %s29, 0
      %p351 = por %p349, %p350
      %p352 = scmp.ne.s32.totalorder %s341, %s344
      %p353 = scmp.eq.s32.totalorder %s34, 5
      %p354 = por %p352, %p353
      %p355 = scmp.ne.s32.totalorder %s344, %s345
      %p356 = scmp.eq.s32.totalorder %s34, 0
      %p357 = por %p355, %p356
      %p358 = scmp.ne.s32.totalorder %s344, %s345
      %p359 = scmp.eq.s32.totalorder %s35, 5
      %p360 = por %p358, %p359
      %p362 = scmp.ne.s32.totalorder %s345, %s361
      %p363 = scmp.eq.s32.totalorder %s35, 0
      %p364 = por %p362, %p363
      %s365 = ssub.s32 %s29, %s36
      %p366 = scmp.eq.s32.totalorder %s365, 0
      %s368 = sadd.s32 %s367, 1
      %s369 = scalar_select %p366, %s367, %s368
      %p372 = pneg %p366
      %p373 = scmp.eq.s32.totalorder %s29, 5
      %p374 = por %p372, %p373
      %p375 = scmp.ne.s32.totalorder %s367, %s370
      %p376 = scmp.eq.s32.totalorder %s29, 0
      %p377 = por %p375, %p376
      %p378 = scmp.ne.s32.totalorder %s367, %s370
      %p379 = scmp.eq.s32.totalorder %s34, 5
      %p380 = por %p378, %p379
      %p381 = scmp.ne.s32.totalorder %s370, %s371
      %p382 = scmp.eq.s32.totalorder %s34, 0
      %p383 = por %p381, %p382
      %p384 = scmp.ne.s32.totalorder %s370, %s371
      %p385 = scmp.eq.s32.totalorder %s35, 5
      %p386 = por %p384, %p385
      %p388 = scmp.ne.s32.totalorder %s371, %s387
      %p389 = scmp.eq.s32.totalorder %s35, 0
      %p390 = por %p388, %p389
      %s392 = sadd.s32 %s391, 1
      %p395 = scmp.eq.s32.totalorder %s29, 5
      %p396 = scmp.ne.s32.totalorder %s391, %s393
      %p397 = scmp.eq.s32.totalorder %s29, 0
      %p398 = por %p396, %p397
      %p399 = scmp.ne.s32.totalorder %s391, %s393
      %p400 = scmp.eq.s32.totalorder %s34, 5
      %p401 = por %p399, %p400
      %p402 = scmp.ne.s32.totalorder %s393, %s394
      %p403 = scmp.eq.s32.totalorder %s34, 0
      %p404 = por %p402, %p403
      %p405 = scmp.ne.s32.totalorder %s393, %s394
      %p406 = scmp.eq.s32.totalorder %s35, 5
      %p407 = por %p405, %p406
      %p409 = scmp.ne.s32.totalorder %s394, %s408
      %p410 = scmp.eq.s32.totalorder %s35, 0
      %p411 = por %p409, %p410
      %s413 = sadd.s32 %s412, 1
      %p416 = scmp.eq.s32.totalorder %s29, 5
      %p417 = scmp.ne.s32.totalorder %s412, %s414
      %p418 = scmp.eq.s32.totalorder %s29, 0
      %p419 = por %p417, %p418
      %p420 = scmp.ne.s32.totalorder %s412, %s414
      %p421 = scmp.eq.s32.totalorder %s34, 5
      %p422 = por %p420, %p421
      %p423 = scmp.ne.s32.totalorder %s414, %s415
      %p424 = scmp.eq.s32.totalorder %s34, 0
      %p425 = por %p423, %p424
      %p426 = scmp.ne.s32.totalorder %s414, %s415
      %p427 = scmp.eq.s32.totalorder %s35, 5
      %p428 = por %p426, %p427
      %p430 = scmp.ne.s32.totalorder %s415, %s429
      %p431 = scmp.eq.s32.totalorder %s35, 0
      %p432 = por %p430, %p431
      %s434 = sadd.s32 %s433, 1
      %p437 = scmp.eq.s32.totalorder %s29, 5
      %p438 = scmp.ne.s32.totalorder %s433, %s435
      %p439 = scmp.eq.s32.totalorder %s29, 0
      %p440 = por %p438, %p439
      %p441 = scmp.ne.s32.totalorder %s433, %s435
      %p442 = scmp.eq.s32.totalorder %s34, 5
      %p443 = por %p441, %p442
      %p444 = scmp.ne.s32.totalorder %s435, %s436
      %p445 = scmp.eq.s32.totalorder %s34, 0
      %p446 = por %p444, %p445
      %p447 = scmp.ne.s32.totalorder %s435, %s436
      %p448 = scmp.eq.s32.totalorder %s35, 5
      %p449 = por %p447, %p448
      %p451 = scmp.ne.s32.totalorder %s436, %s450
      %p452 = scmp.eq.s32.totalorder %s35, 0
      %p453 = por %p451, %p452
      %s455 = sadd.s32 %s454, 1
      %p458 = scmp.eq.s32.totalorder %s29, 5
      %p459 = scmp.ne.s32.totalorder %s454, %s456
      %p460 = scmp.eq.s32.totalorder %s29, 0
      %p461 = por %p459, %p460
      %p462 = scmp.ne.s32.totalorder %s454, %s456
      %p463 = scmp.eq.s32.totalorder %s34, 5
      %p464 = por %p462, %p463
      %p465 = scmp.ne.s32.totalorder %s456, %s457
      %p466 = scmp.eq.s32.totalorder %s34, 0
      %p467 = por %p465, %p466
      %p468 = scmp.ne.s32.totalorder %s456, %s457
      %p469 = scmp.eq.s32.totalorder %s35, 5
      %p470 = por %p468, %p469
      %p472 = scmp.ne.s32.totalorder %s457, %s471
      %p473 = scmp.eq.s32.totalorder %s35, 0
      %p474 = por %p472, %p473
      %s476 = sadd.s32 %s475, 1
      %p479 = scmp.eq.s32.totalorder %s29, 5
      %p480 = scmp.ne.s32.totalorder %s475, %s477
      %p481 = scmp.eq.s32.totalorder %s29, 0
      %p482 = por %p480, %p481
      %p483 = scmp.ne.s32.totalorder %s475, %s477
      %p484 = scmp.eq.s32.totalorder %s34, 5
      %p485 = por %p483, %p484
      %p486 = scmp.ne.s32.totalorder %s477, %s478
      %p487 = scmp.eq.s32.totalorder %s34, 0
      %p488 = por %p486, %p487
      %p489 = scmp.ne.s32.totalorder %s477, %s478
      %p490 = scmp.eq.s32.totalorder %s35, 5
      %p491 = por %p489, %p490
      %p493 = scmp.ne.s32.totalorder %s478, %s492
      %p494 = scmp.eq.s32.totalorder %s35, 0
      %p495 = por %p493, %p494
      %p496 = scmp.le.s32.totalorder 1, %s29
      %p497 = scmp.lt.s32.totalorder %s29, 7
      %p498 = pnand %p496, %p497
      %p499 = pneg %p498
      // Predicated region
      $region9: #{encoder_only_forward.1} parent=5 // pred_check
        _
      $region10: #{encoder_only_forward.1} parent=5 // pred_check_branch
        %501 = sbr.rel (%p498) target = $region12
      $region11: #{encoder_only_forward.1} parent=5 // pred_region
        %s502 = ssub.s32 %s29, 1
        // Predicated region
        $region13: #{encoder_only_forward.1} parent=11 // pred_check
          %p503 = pneg %p50
        $region14: #{encoder_only_forward.1} parent=11 // pred_check_branch
          %505 = sbr.rel (%p503) target = $region16
        $region15: #{encoder_only_forward.1} parent=11 // pred_region
          %s507 = ssub.s32 1024, 1024
          %508 = vsyncadd [#allocation4], %s507
          %s509 = sshll.u32 [#allocation3], 4
          %s510 = int_to_ptr.vmem [resolvable:$true] %s509
          %515 = dma.hbm_to_vmem [thread:$0]  %s0, 1024, %s510, [#allocation4], 256, 256, 16
        $region16: #{encoder_only_forward.1} parent=11 // pred_fallthru
          _
        // Predicated region
        $region17: #{encoder_only_forward.1} parent=11 // pred_check
          %p516 = pneg %p71
        $region18: #{encoder_only_forward.1} parent=11 // pred_check_branch
          %518 = sbr.rel (%p516) target = $region20
        $region19: #{encoder_only_forward.1} parent=11 // pred_region
          %s520 = ssub.s32 512, 512
          %521 = vsyncadd [#allocation7], %s520
          %s522 = sshll.u32 [#allocation6], 4
          %s523 = int_to_ptr.vmem [resolvable:$true] %s522
          %528 = dma.hbm_to_vmem [thread:$0]  %s1, 512, %s523, [#allocation7], 256, 256, 16
        $region20: #{encoder_only_forward.1} parent=11 // pred_fallthru
          _
        // Predicated region
        $region21: #{encoder_only_forward.1} parent=11 // pred_check
          %p529 = pneg %p404
        $region22: #{encoder_only_forward.1} parent=11 // pred_check_branch
          %531 = sbr.rel (%p529) target = $region24
        $region23: #{encoder_only_forward.1} parent=11 // pred_region
          %s533 = ssub.s32 16384, 16384
          %534 = vsyncadd [#allocation7], %s533
          %s535 = sshll.u32 [#allocation20], 4
          %s536 = int_to_ptr.vmem [resolvable:$true] %s535
          %541 = dma.hbm_to_vmem [thread:$0]  %s14, 16384, %s536, [#allocation7], 128, 128, 8
        $region24: #{encoder_only_forward.1} parent=11 // pred_fallthru
          _
        // Predicated region
        $region25: #{encoder_only_forward.1} parent=11 // pred_check
          %p542 = pneg %p425
        $region26: #{encoder_only_forward.1} parent=11 // pred_check_branch
          %544 = sbr.rel (%p542) target = $region28
        $region27: #{encoder_only_forward.1} parent=11 // pred_region
          %s546 = ssub.s32 128, 128
          %547 = vsyncadd [#allocation22], %s546
          %s549 = sshll.u32 [#allocation21], 4
          %s550 = int_to_ptr.vmem [resolvable:$true] %s549
          %552 = dma.hbm_to_vmem [thread:$0]  %s15, 128, %s550, [#allocation22]
        $region28: #{encoder_only_forward.1} parent=11 // pred_fallthru
          _
        // Predicated region
        $region29: #{encoder_only_forward.1} parent=11 // pred_check
          %p553 = pneg %p446
        $region30: #{encoder_only_forward.1} parent=11 // pred_check_branch
          %555 = sbr.rel (%p553) target = $region32
        $region31: #{encoder_only_forward.1} parent=11 // pred_region
          %s557 = ssub.s32 4096, 4096
          %558 = vsyncadd [#allocation22], %s557
          %s559 = sshll.u32 [#allocation23], 4
          %s560 = int_to_ptr.vmem [resolvable:$true] %s559
          %565 = dma.hbm_to_vmem [thread:$0]  %s16, 4096, %s560, [#allocation22], 512, 512, 32
        $region32: #{encoder_only_forward.1} parent=11 // pred_fallthru
          _
        // Predicated region
        $region33: #{encoder_only_forward.1} parent=11 // pred_check
          %p566 = pneg %p467
        $region34: #{encoder_only_forward.1} parent=11 // pred_check_branch
          %568 = sbr.rel (%p566) target = $region36
        $region35: #{encoder_only_forward.1} parent=11 // pred_region
          %s570 = ssub.s32 16, 16
          %571 = vsyncadd [#allocation25], %s570
          %s573 = sshll.u32 [#allocation24], 4
          %s574 = int_to_ptr.vmem [resolvable:$true] %s573
          %576 = dma.hbm_to_vmem [thread:$0]  %s17, 16, %s574, [#allocation25]
        $region36: #{encoder_only_forward.1} parent=11 // pred_fallthru
          _
      $region12: #{encoder_only_forward.1} parent=5 // pred_fallthru
        _
      %p577 = scmp.lt.s32.totalorder %s29, 6
      // Predicated region
      $region37: #{encoder_only_forward.1} parent=5 // pred_check
        %p578 = pneg %p577
      $region38: #{encoder_only_forward.1} parent=5 // pred_check_branch
        %580 = sbr.rel (%p578) target = $region40
      $region39: #{encoder_only_forward.1} parent=5 // pred_region
        // Predicated region
        $region41: #{encoder_only_forward.1} parent=39 // pred_check
          %p581 = pneg %p91
        $region42: #{encoder_only_forward.1} parent=39 // pred_check_branch
          %583 = sbr.rel (%p581) target = $region44
        $region43: #{encoder_only_forward.1} parent=39 // pred_region
          %s584 = sand.u32 %s29, 1
          %s585 = scalar_lea.sflag [#allocation4], %s584
          %s586 = sand.u32 %s81, 1
          %s587 = smul.addr %s586, 768
          %s588 = scalar_lea.vmem [#allocation8], %s587
          %s590 = ssub.s32 12288, 12288
          %591 = vsyncadd %s585, %s590
          %s592 = smul.addr %s29, 192
          %s593 = smul.addr %s592, 64
          %s594 = scalar_lea.hbm %s2, %s593
          %s595 = sshll.u32 %s588, 4
          %s596 = int_to_ptr.vmem [resolvable:$true] %s595
          %601 = dma.hbm_to_vmem [thread:$0]  %s594, 12288, %s596, %s585, 128, 128, 8
        $region44: #{encoder_only_forward.1} parent=39 // pred_fallthru
          _
        // Predicated region
        $region45: #{encoder_only_forward.1} parent=39 // pred_check
          %p602 = pneg %p117
        $region46: #{encoder_only_forward.1} parent=39 // pred_check_branch
          %604 = sbr.rel (%p602) target = $region48
        $region47: #{encoder_only_forward.1} parent=39 // pred_region
          %s605 = sand.u32 %s29, 1
          %s606 = scalar_lea.sflag [#allocation4], %s605
          %s607 = sand.u32 %s107, 1
          %s608 = smul.addr %s607, 6
          %s609 = scalar_lea.vmem [#allocation9], %s608
          %s611 = ssub.s32 96, 96
          %612 = vsyncadd %s606, %s611
          %s613 = smul.addr %s29, 6
          %s614 = smul.addr %s613, 16
          %s615 = scalar_lea.hbm %s3, %s614
          %s617 = sshll.u32 %s609, 4
          %s618 = int_to_ptr.vmem [resolvable:$true] %s617
          %620 = dma.hbm_to_vmem [thread:$0]  %s615, 96, %s618, %s606
        $region48: #{encoder_only_forward.1} parent=39 // pred_fallthru
          _
        // Predicated region
        $region49: #{encoder_only_forward.1} parent=39 // pred_check
          %p621 = pneg %p143
        $region50: #{encoder_only_forward.1} parent=39 // pred_check_branch
          %623 = sbr.rel (%p621) target = $region52
        $region51: #{encoder_only_forward.1} parent=39 // pred_region
          %s624 = sand.u32 %s29, 1
          %s625 = scalar_lea.sflag [#allocation4], %s624
          %s626 = sand.u32 %s133, 1
          %s627 = smul.addr %s626, 256
          %s628 = scalar_lea.vmem [#allocation10], %s627
          %s630 = ssub.s32 4096, 4096
          %631 = vsyncadd %s625, %s630
          %s632 = smul.addr %s29, 64
          %s633 = smul.addr %s632, 64
          %s634 = scalar_lea.hbm %s4, %s633
          %s635 = sshll.u32 %s628, 4
          %s636 = int_to_ptr.vmem [resolvable:$true] %s635
          %641 = dma.hbm_to_vmem [thread:$0]  %s634, 4096, %s636, %s625, 128, 128, 8
        $region52: #{encoder_only_forward.1} parent=39 // pred_fallthru
          _
        // Predicated region
        $region53: #{encoder_only_forward.1} parent=39 // pred_check
          %p642 = pneg %p169
        $region54: #{encoder_only_forward.1} parent=39 // pred_check_branch
          %644 = sbr.rel (%p642) target = $region56
        $region55: #{encoder_only_forward.1} parent=39 // pred_region
          %s645 = sand.u32 %s29, 1
          %s646 = scalar_lea.sflag [#allocation4], %s645
          %s647 = sand.u32 %s159, 1
          %s648 = smul.addr %s647, 2
          %s649 = scalar_lea.vmem [#allocation11], %s648
          %s651 = ssub.s32 32, 32
          %652 = vsyncadd %s646, %s651
          %s653 = smul.addr %s29, 2
          %s654 = smul.addr %s653, 16
          %s655 = scalar_lea.hbm %s5, %s654
          %s657 = sshll.u32 %s649, 4
          %s658 = int_to_ptr.vmem [resolvable:$true] %s657
          %660 = dma.hbm_to_vmem [thread:$0]  %s655, 32, %s658, %s646
        $region56: #{encoder_only_forward.1} parent=39 // pred_fallthru
          _
        // Predicated region
        $region57: #{encoder_only_forward.1} parent=39 // pred_check
          %p661 = pneg %p195
        $region58: #{encoder_only_forward.1} parent=39 // pred_check_branch
          %663 = sbr.rel (%p661) target = $region60
        $region59: #{encoder_only_forward.1} parent=39 // pred_region
          %s664 = sand.u32 %s29, 1
          %s665 = scalar_lea.sflag [#allocation4], %s664
          %s666 = sand.u32 %s185, 1
          %s667 = smul.addr %s666, 2
          %s668 = scalar_lea.vmem [#allocation12], %s667
          %s670 = ssub.s32 32, 32
          %671 = vsyncadd %s665, %s670
          %s672 = smul.addr %s29, 2
          %s673 = smul.addr %s672, 16
          %s674 = scalar_lea.hbm %s6, %s673
          %s676 = sshll.u32 %s668, 4
          %s677 = int_to_ptr.vmem [resolvable:$true] %s676
          %679 = dma.hbm_to_vmem [thread:$0]  %s674, 32, %s677, %s665
        $region60: #{encoder_only_forward.1} parent=39 // pred_fallthru
          _
        // Predicated region
        $region61: #{encoder_only_forward.1} parent=39 // pred_check
          %p680 = pneg %p221
        $region62: #{encoder_only_forward.1} parent=39 // pred_check_branch
          %682 = sbr.rel (%p680) target = $region64
        $region63: #{encoder_only_forward.1} parent=39 // pred_region
          %s683 = sand.u32 %s29, 1
          %s684 = scalar_lea.sflag [#allocation4], %s683
          %s685 = sand.u32 %s211, 1
          %s686 = smul.addr %s685, 2
          %s687 = scalar_lea.vmem [#allocation13], %s686
          %s689 = ssub.s32 32, 32
          %690 = vsyncadd %s684, %s689
          %s691 = smul.addr %s29, 2
          %s692 = smul.addr %s691, 16
          %s693 = scalar_lea.hbm %s7, %s692
          %s695 = sshll.u32 %s687, 4
          %s696 = int_to_ptr.vmem [resolvable:$true] %s695
          %698 = dma.hbm_to_vmem [thread:$0]  %s693, 32, %s696, %s684
        $region64: #{encoder_only_forward.1} parent=39 // pred_fallthru
          _
        // Predicated region
        $region65: #{encoder_only_forward.1} parent=39 // pred_check
          %p699 = pneg %p247
        $region66: #{encoder_only_forward.1} parent=39 // pred_check_branch
          %701 = sbr.rel (%p699) target = $region68
        $region67: #{encoder_only_forward.1} parent=39 // pred_region
          %s702 = sand.u32 %s29, 1
          %s703 = scalar_lea.sflag [#allocation4], %s702
          %s704 = sand.u32 %s237, 1
          %s705 = smul.addr %s704, 128
          %s706 = scalar_lea.vmem [#allocation14], %s705
          %s708 = ssub.s32 2048, 2048
          %709 = vsyncadd %s703, %s708
          %s710 = smul.addr %s29, 32
          %s711 = smul.addr %s710, 64
          %s712 = scalar_lea.hbm %s8, %s711
          %s713 = sshll.u32 %s706, 4
          %s714 = int_to_ptr.vmem [resolvable:$true] %s713
          %719 = dma.hbm_to_vmem [thread:$0]  %s712, 2048, %s714, %s703, 128, 128, 8
        $region68: #{encoder_only_forward.1} parent=39 // pred_fallthru
          _
        // Predicated region
        $region69: #{encoder_only_forward.1} parent=39 // pred_check
          %p720 = pneg %p273
        $region70: #{encoder_only_forward.1} parent=39 // pred_check_branch
          %722 = sbr.rel (%p720) target = $region72
        $region71: #{encoder_only_forward.1} parent=39 // pred_region
          %s723 = sand.u32 %s29, 1
          %s724 = scalar_lea.sflag [#allocation4], %s723
          %s725 = sand.u32 %s263, 1
          %s726 = scalar_lea.vmem [#allocation15], %s725
          %s728 = ssub.s32 16, 16
          %729 = vsyncadd %s724, %s728
          %s730 = smul.addr %s29, 16
          %s731 = scalar_lea.hbm %s9, %s730
          %s733 = sshll.u32 %s726, 4
          %s734 = int_to_ptr.vmem [resolvable:$true] %s733
          %736 = dma.hbm_to_vmem [thread:$0]  %s731, 16, %s734, %s724
        $region72: #{encoder_only_forward.1} parent=39 // pred_fallthru
          _
        // Predicated region
        $region73: #{encoder_only_forward.1} parent=39 // pred_check
          %p737 = pneg %p299
        $region74: #{encoder_only_forward.1} parent=39 // pred_check_branch
          %739 = sbr.rel (%p737) target = $region76
        $region75: #{encoder_only_forward.1} parent=39 // pred_region
          %s740 = sand.u32 %s29, 1
          %s741 = scalar_lea.sflag [#allocation4], %s740
          %s742 = sand.u32 %s289, 1
          %s743 = smul.addr %s742, 128
          %s744 = scalar_lea.vmem [#allocation16], %s743
          %s746 = ssub.s32 2048, 2048
          %747 = vsyncadd %s741, %s746
          %s748 = smul.addr %s29, 32
          %s749 = smul.addr %s748, 64
          %s750 = scalar_lea.hbm %s10, %s749
          %s751 = sshll.u32 %s744, 4
          %s752 = int_to_ptr.vmem [resolvable:$true] %s751
          %757 = dma.hbm_to_vmem [thread:$0]  %s750, 2048, %s752, %s741, 64, 64, 4
        $region76: #{encoder_only_forward.1} parent=39 // pred_fallthru
          _
        // Predicated region
        $region77: #{encoder_only_forward.1} parent=39 // pred_check
          %p758 = pneg %p325
        $region78: #{encoder_only_forward.1} parent=39 // pred_check_branch
          %760 = sbr.rel (%p758) target = $region80
        $region79: #{encoder_only_forward.1} parent=39 // pred_region
          %s761 = sand.u32 %s29, 1
          %s762 = scalar_lea.sflag [#allocation4], %s761
          %s763 = sand.u32 %s315, 1
          %s764 = smul.addr %s763, 2
          %s765 = scalar_lea.vmem [#allocation17], %s764
          %s767 = ssub.s32 32, 32
          %768 = vsyncadd %s762, %s767
          %s769 = smul.addr %s29, 2
          %s770 = smul.addr %s769, 16
          %s771 = scalar_lea.hbm %s11, %s770
          %s773 = sshll.u32 %s765, 4
          %s774 = int_to_ptr.vmem [resolvable:$true] %s773
          %776 = dma.hbm_to_vmem [thread:$0]  %s771, 32, %s774, %s762
        $region80: #{encoder_only_forward.1} parent=39 // pred_fallthru
          _
        // Predicated region
        $region81: #{encoder_only_forward.1} parent=39 // pred_check
          %p777 = pneg %p351
        $region82: #{encoder_only_forward.1} parent=39 // pred_check_branch
          %779 = sbr.rel (%p777) target = $region84
        $region83: #{encoder_only_forward.1} parent=39 // pred_region
          %s780 = sand.u32 %s29, 1
          %s781 = scalar_lea.sflag [#allocation4], %s780
          %s782 = sand.u32 %s341, 1
          %s783 = smul.addr %s782, 2
          %s784 = scalar_lea.vmem [#allocation18], %s783
          %s786 = ssub.s32 32, 32
          %787 = vsyncadd %s781, %s786
          %s788 = smul.addr %s29, 2
          %s789 = smul.addr %s788, 16
          %s790 = scalar_lea.hbm %s12, %s789
          %s792 = sshll.u32 %s784, 4
          %s793 = int_to_ptr.vmem [resolvable:$true] %s792
          %795 = dma.hbm_to_vmem [thread:$0]  %s790, 32, %s793, %s781
        $region84: #{encoder_only_forward.1} parent=39 // pred_fallthru
          _
        // Predicated region
        $region85: #{encoder_only_forward.1} parent=39 // pred_check
          %p796 = pneg %p377
        $region86: #{encoder_only_forward.1} parent=39 // pred_check_branch
          %798 = sbr.rel (%p796) target = $region88
        $region87: #{encoder_only_forward.1} parent=39 // pred_region
          %s799 = sand.u32 %s29, 1
          %s800 = scalar_lea.sflag [#allocation4], %s799
          %s801 = sand.u32 %s367, 1
          %s802 = smul.addr %s801, 2
          %s803 = scalar_lea.vmem [#allocation19], %s802
          %s805 = ssub.s32 32, 32
          %806 = vsyncadd %s800, %s805
          %s807 = smul.addr %s29, 2
          %s808 = smul.addr %s807, 16
          %s809 = scalar_lea.hbm %s13, %s808
          %s811 = sshll.u32 %s803, 4
          %s812 = int_to_ptr.vmem [resolvable:$true] %s811
          %814 = dma.hbm_to_vmem [thread:$0]  %s809, 32, %s812, %s800
        $region88: #{encoder_only_forward.1} parent=39 // pred_fallthru
          _
      $region40: #{encoder_only_forward.1} parent=5 // pred_fallthru
        _
      %p815 = scmp.le.s32.totalorder 1, %s29
      %p816 = scmp.lt.s32.totalorder %s29, 7
      %p817 = pnand %p815, %p816
      %p818 = pneg %p817
      // Predicated region
      $region89: #{encoder_only_forward.1} parent=5 // pred_check
        _
      $region90: #{encoder_only_forward.1} parent=5 // pred_check_branch
        %820 = sbr.rel (%p817) target = $region92
      $region91: #{encoder_only_forward.1} parent=5 // pred_region
        %s821 = ssub.s32 %s29, 1
        // Predicated region
        $region93: #{encoder_only_forward.1} parent=91 // pred_check
          %p822 = pneg %p50
        $region94: #{encoder_only_forward.1} parent=91 // pred_check_branch
          %824 = sbr.rel (%p822) target = $region96
        $region95: #{encoder_only_forward.1} parent=91 // pred_region
          %825 = dma.done [#allocation4], 1024
        $region96: #{encoder_only_forward.1} parent=91 // pred_fallthru
          _
        // Predicated region
        $region97: #{encoder_only_forward.1} parent=91 // pred_check
          %p826 = pneg %p71
        $region98: #{encoder_only_forward.1} parent=91 // pred_check_branch
          %828 = sbr.rel (%p826) target = $region100
        $region99: #{encoder_only_forward.1} parent=91 // pred_region
          %829 = dma.done [#allocation7], 512
        $region100: #{encoder_only_forward.1} parent=91 // pred_fallthru
          _
        %s830 = sand.u32 %s34, 1
        %s831 = scalar_lea.sflag [#allocation4], %s830
        %s832 = sand.u32 %s84, 1
        %s833 = smul.addr %s832, 768
        %s834 = scalar_lea.vmem [#allocation8], %s833
        // Predicated region
        $region101: #{encoder_only_forward.1} parent=91 // pred_check
          %p835 = pneg %p97
        $region102: #{encoder_only_forward.1} parent=91 // pred_check_branch
          %837 = sbr.rel (%p835) target = $region104
        $region103: #{encoder_only_forward.1} parent=91 // pred_region
          %838 = dma.done %s831, 12288
        $region104: #{encoder_only_forward.1} parent=91 // pred_fallthru
          _
        %s839 = sand.u32 %s34, 1
        %s840 = scalar_lea.sflag [#allocation4], %s839
        %s841 = sand.u32 %s110, 1
        %s842 = smul.addr %s841, 6
        %s843 = scalar_lea.vmem [#allocation9], %s842
        // Predicated region
        $region105: #{encoder_only_forward.1} parent=91 // pred_check
          %p844 = pneg %p123
        $region106: #{encoder_only_forward.1} parent=91 // pred_check_branch
          %846 = sbr.rel (%p844) target = $region108
        $region107: #{encoder_only_forward.1} parent=91 // pred_region
          %847 = dma.done %s840, 96
        $region108: #{encoder_only_forward.1} parent=91 // pred_fallthru
          _
        %s848 = sand.u32 %s34, 1
        %s849 = scalar_lea.sflag [#allocation4], %s848
        %s850 = sand.u32 %s136, 1
        %s851 = smul.addr %s850, 256
        %s852 = scalar_lea.vmem [#allocation10], %s851
        // Predicated region
        $region109: #{encoder_only_forward.1} parent=91 // pred_check
          %p853 = pneg %p149
        $region110: #{encoder_only_forward.1} parent=91 // pred_check_branch
          %855 = sbr.rel (%p853) target = $region112
        $region111: #{encoder_only_forward.1} parent=91 // pred_region
          %856 = dma.done %s849, 4096
        $region112: #{encoder_only_forward.1} parent=91 // pred_fallthru
          _
        %s857 = sand.u32 %s34, 1
        %s858 = scalar_lea.sflag [#allocation4], %s857
        %s859 = sand.u32 %s162, 1
        %s860 = smul.addr %s859, 2
        %s861 = scalar_lea.vmem [#allocation11], %s860
        // Predicated region
        $region113: #{encoder_only_forward.1} parent=91 // pred_check
          %p862 = pneg %p175
        $region114: #{encoder_only_forward.1} parent=91 // pred_check_branch
          %864 = sbr.rel (%p862) target = $region116
        $region115: #{encoder_only_forward.1} parent=91 // pred_region
          %865 = dma.done %s858, 32
        $region116: #{encoder_only_forward.1} parent=91 // pred_fallthru
          _
        %s866 = sand.u32 %s34, 1
        %s867 = scalar_lea.sflag [#allocation4], %s866
        %s868 = sand.u32 %s188, 1
        %s869 = smul.addr %s868, 2
        %s870 = scalar_lea.vmem [#allocation12], %s869
        // Predicated region
        $region117: #{encoder_only_forward.1} parent=91 // pred_check
          %p871 = pneg %p201
        $region118: #{encoder_only_forward.1} parent=91 // pred_check_branch
          %873 = sbr.rel (%p871) target = $region120
        $region119: #{encoder_only_forward.1} parent=91 // pred_region
          %874 = dma.done %s867, 32
        $region120: #{encoder_only_forward.1} parent=91 // pred_fallthru
          _
        %s875 = sand.u32 %s34, 1
        %s876 = scalar_lea.sflag [#allocation4], %s875
        %s877 = sand.u32 %s214, 1
        %s878 = smul.addr %s877, 2
        %s879 = scalar_lea.vmem [#allocation13], %s878
        // Predicated region
        $region121: #{encoder_only_forward.1} parent=91 // pred_check
          %p880 = pneg %p227
        $region122: #{encoder_only_forward.1} parent=91 // pred_check_branch
          %882 = sbr.rel (%p880) target = $region124
        $region123: #{encoder_only_forward.1} parent=91 // pred_region
          %883 = dma.done %s876, 32
        $region124: #{encoder_only_forward.1} parent=91 // pred_fallthru
          _
        %s884 = sand.u32 %s34, 1
        %s885 = scalar_lea.sflag [#allocation4], %s884
        %s886 = sand.u32 %s240, 1
        %s887 = smul.addr %s886, 128
        %s888 = scalar_lea.vmem [#allocation14], %s887
        // Predicated region
        $region125: #{encoder_only_forward.1} parent=91 // pred_check
          %p889 = pneg %p253
        $region126: #{encoder_only_forward.1} parent=91 // pred_check_branch
          %891 = sbr.rel (%p889) target = $region128
        $region127: #{encoder_only_forward.1} parent=91 // pred_region
          %892 = dma.done %s885, 2048
        $region128: #{encoder_only_forward.1} parent=91 // pred_fallthru
          _
        %s893 = sand.u32 %s34, 1
        %s894 = scalar_lea.sflag [#allocation4], %s893
        %s895 = sand.u32 %s266, 1
        %s896 = scalar_lea.vmem [#allocation15], %s895
        // Predicated region
        $region129: #{encoder_only_forward.1} parent=91 // pred_check
          %p897 = pneg %p279
        $region130: #{encoder_only_forward.1} parent=91 // pred_check_branch
          %899 = sbr.rel (%p897) target = $region132
        $region131: #{encoder_only_forward.1} parent=91 // pred_region
          %900 = dma.done %s894, 16
        $region132: #{encoder_only_forward.1} parent=91 // pred_fallthru
          _
        %s901 = sand.u32 %s34, 1
        %s902 = scalar_lea.sflag [#allocation4], %s901
        %s903 = sand.u32 %s292, 1
        %s904 = smul.addr %s903, 128
        %s905 = scalar_lea.vmem [#allocation16], %s904
        // Predicated region
        $region133: #{encoder_only_forward.1} parent=91 // pred_check
          %p906 = pneg %p305
        $region134: #{encoder_only_forward.1} parent=91 // pred_check_branch
          %908 = sbr.rel (%p906) target = $region136
        $region135: #{encoder_only_forward.1} parent=91 // pred_region
          %909 = dma.done %s902, 2048
        $region136: #{encoder_only_forward.1} parent=91 // pred_fallthru
          _
        %s910 = sand.u32 %s34, 1
        %s911 = scalar_lea.sflag [#allocation4], %s910
        %s912 = sand.u32 %s318, 1
        %s913 = smul.addr %s912, 2
        %s914 = scalar_lea.vmem [#allocation17], %s913
        // Predicated region
        $region137: #{encoder_only_forward.1} parent=91 // pred_check
          %p915 = pneg %p331
        $region138: #{encoder_only_forward.1} parent=91 // pred_check_branch
          %917 = sbr.rel (%p915) target = $region140
        $region139: #{encoder_only_forward.1} parent=91 // pred_region
          %918 = dma.done %s911, 32
        $region140: #{encoder_only_forward.1} parent=91 // pred_fallthru
          _
        %s919 = sand.u32 %s34, 1
        %s920 = scalar_lea.sflag [#allocation4], %s919
        %s921 = sand.u32 %s344, 1
        %s922 = smul.addr %s921, 2
        %s923 = scalar_lea.vmem [#allocation18], %s922
        // Predicated region
        $region141: #{encoder_only_forward.1} parent=91 // pred_check
          %p924 = pneg %p357
        $region142: #{encoder_only_forward.1} parent=91 // pred_check_branch
          %926 = sbr.rel (%p924) target = $region144
        $region143: #{encoder_only_forward.1} parent=91 // pred_region
          %927 = dma.done %s920, 32
        $region144: #{encoder_only_forward.1} parent=91 // pred_fallthru
          _
        %s928 = sand.u32 %s34, 1
        %s929 = scalar_lea.sflag [#allocation4], %s928
        %s930 = sand.u32 %s370, 1
        %s931 = smul.addr %s930, 2
        %s932 = scalar_lea.vmem [#allocation19], %s931
        // Predicated region
        $region145: #{encoder_only_forward.1} parent=91 // pred_check
          %p933 = pneg %p383
        $region146: #{encoder_only_forward.1} parent=91 // pred_check_branch
          %935 = sbr.rel (%p933) target = $region148
        $region147: #{encoder_only_forward.1} parent=91 // pred_region
          %936 = dma.done %s929, 32
        $region148: #{encoder_only_forward.1} parent=91 // pred_fallthru
          _
        // Predicated region
        $region149: #{encoder_only_forward.1} parent=91 // pred_check
          %p937 = pneg %p404
        $region150: #{encoder_only_forward.1} parent=91 // pred_check_branch
          %939 = sbr.rel (%p937) target = $region152
        $region151: #{encoder_only_forward.1} parent=91 // pred_region
          %940 = dma.done [#allocation7], 16384
        $region152: #{encoder_only_forward.1} parent=91 // pred_fallthru
          _
        // Predicated region
        $region153: #{encoder_only_forward.1} parent=91 // pred_check
          %p941 = pneg %p425
        $region154: #{encoder_only_forward.1} parent=91 // pred_check_branch
          %943 = sbr.rel (%p941) target = $region156
        $region155: #{encoder_only_forward.1} parent=91 // pred_region
          %944 = dma.done [#allocation22], 128
        $region156: #{encoder_only_forward.1} parent=91 // pred_fallthru
          _
        // Predicated region
        $region157: #{encoder_only_forward.1} parent=91 // pred_check
          %p945 = pneg %p446
        $region158: #{encoder_only_forward.1} parent=91 // pred_check_branch
          %947 = sbr.rel (%p945) target = $region160
        $region159: #{encoder_only_forward.1} parent=91 // pred_region
          %948 = dma.done [#allocation22], 4096
        $region160: #{encoder_only_forward.1} parent=91 // pred_fallthru
          _
        // Predicated region
        $region161: #{encoder_only_forward.1} parent=91 // pred_check
          %p949 = pneg %p467
        $region162: #{encoder_only_forward.1} parent=91 // pred_check_branch
          %951 = sbr.rel (%p949) target = $region164
        $region163: #{encoder_only_forward.1} parent=91 // pred_region
          %952 = dma.done [#allocation25], 16
        $region164: #{encoder_only_forward.1} parent=91 // pred_fallthru
          _
        %p953 = pneg %p50
        %p954 = pneg %p47
        %p955 = pneg %p71
        %p956 = pneg %p68
        %s957 = sand.u32 %s34, 1
        %s958 = scalar_lea.sflag [#allocation4], %s957
        %s959 = sand.u32 %s84, 1
        %s960 = smul.addr %s959, 768
        %s961 = scalar_lea.vmem [#allocation8], %s960
        %p962 = pneg %p97
        %p963 = pneg %p94
        %s964 = sand.u32 %s34, 1
        %s965 = scalar_lea.sflag [#allocation4], %s964
        %s966 = sand.u32 %s110, 1
        %s967 = smul.addr %s966, 6
        %s968 = scalar_lea.vmem [#allocation9], %s967
        %p969 = pneg %p123
        %p970 = pneg %p120
        %s971 = sand.u32 %s34, 1
        %s972 = scalar_lea.sflag [#allocation4], %s971
        %s973 = sand.u32 %s136, 1
        %s974 = smul.addr %s973, 256
        %s975 = scalar_lea.vmem [#allocation10], %s974
        %p976 = pneg %p149
        %p977 = pneg %p146
        %s978 = sand.u32 %s34, 1
        %s979 = scalar_lea.sflag [#allocation4], %s978
        %s980 = sand.u32 %s162, 1
        %s981 = smul.addr %s980, 2
        %s982 = scalar_lea.vmem [#allocation11], %s981
        %p983 = pneg %p175
        %p984 = pneg %p172
        %s985 = sand.u32 %s34, 1
        %s986 = scalar_lea.sflag [#allocation4], %s985
        %s987 = sand.u32 %s188, 1
        %s988 = smul.addr %s987, 2
        %s989 = scalar_lea.vmem [#allocation12], %s988
        %p990 = pneg %p201
        %p991 = pneg %p198
        %s992 = sand.u32 %s34, 1
        %s993 = scalar_lea.sflag [#allocation4], %s992
        %s994 = sand.u32 %s214, 1
        %s995 = smul.addr %s994, 2
        %s996 = scalar_lea.vmem [#allocation13], %s995
        %p997 = pneg %p227
        %p998 = pneg %p224
        %s999 = sand.u32 %s34, 1
        %s1000 = scalar_lea.sflag [#allocation4], %s999
        %s1001 = sand.u32 %s240, 1
        %s1002 = smul.addr %s1001, 128
        %s1003 = scalar_lea.vmem [#allocation14], %s1002
        %p1004 = pneg %p253
        %p1005 = pneg %p250
        %s1006 = sand.u32 %s34, 1
        %s1007 = scalar_lea.sflag [#allocation4], %s1006
        %s1008 = sand.u32 %s266, 1
        %s1009 = scalar_lea.vmem [#allocation15], %s1008
        %p1010 = pneg %p279
        %p1011 = pneg %p276
        %s1012 = sand.u32 %s34, 1
        %s1013 = scalar_lea.sflag [#allocation4], %s1012
        %s1014 = sand.u32 %s292, 1
        %s1015 = smul.addr %s1014, 128
        %s1016 = scalar_lea.vmem [#allocation16], %s1015
        %p1017 = pneg %p305
        %p1018 = pneg %p302
        %s1019 = sand.u32 %s34, 1
        %s1020 = scalar_lea.sflag [#allocation4], %s1019
        %s1021 = sand.u32 %s318, 1
        %s1022 = smul.addr %s1021, 2
        %s1023 = scalar_lea.vmem [#allocation17], %s1022
        %p1024 = pneg %p331
        %p1025 = pneg %p328
        %s1026 = sand.u32 %s34, 1
        %s1027 = scalar_lea.sflag [#allocation4], %s1026
        %s1028 = sand.u32 %s344, 1
        %s1029 = smul.addr %s1028, 2
        %s1030 = scalar_lea.vmem [#allocation18], %s1029
        %p1031 = pneg %p357
        %p1032 = pneg %p354
        %s1033 = sand.u32 %s34, 1
        %s1034 = scalar_lea.sflag [#allocation4], %s1033
        %s1035 = sand.u32 %s370, 1
        %s1036 = smul.addr %s1035, 2
        %s1037 = scalar_lea.vmem [#allocation19], %s1036
        %p1038 = pneg %p383
        %p1039 = pneg %p380
        %p1040 = pneg %p404
        %p1041 = pneg %p401
        %p1042 = pneg %p425
        %p1043 = pneg %p422
        %p1044 = pneg %p446
        %p1045 = pneg %p443
        %p1046 = pneg %p467
        %p1047 = pneg %p464
        %p1048 = pneg %p488
        %p1049 = pneg %p485
        %p1051 = scmp.eq.s32.totalorder %s34, 0
        // Predicated region
        $region165: #{encoder_only_forward.1} parent=91 // pred_check
          %p1052 = pneg %p1051
        $region166: #{encoder_only_forward.1} parent=91 // pred_check_branch
          %1054 = sbr.rel (%p1052) target = $region168
        $region167: #{encoder_only_forward.1} parent=91 // pred_region
          %v1055 = vld [vmem:[#allocation3] sm:$0xff]
          %v1056 = vld [vmem:[#allocation3 + $0x8] sm:$0xff]
          %v1057 = vld [vmem:[#allocation3 + $0x10] sm:$0xff]
          %v1058 = vld [vmem:[#allocation3 + $0x18] sm:$0xff]
          %v1059 = vld [vmem:[#allocation3 + $0x20] sm:$0xff]
          %v1060 = vld [vmem:[#allocation3 + $0x28] sm:$0xff]
          %v1061 = vld [vmem:[#allocation3 + $0x30] sm:$0xff]
          %v1062 = vld [vmem:[#allocation3 + $0x38] sm:$0xff]
          %v1063 = vld [vmem:[#allocation6] sm:$0xff]
          %v1064 = vld [vmem:[#allocation6 + $0x8] sm:$0xff]
          %v1065 = vld [vmem:[#allocation6 + $0x10] sm:$0xff]
          %v1066 = vld [vmem:[#allocation6 + $0x18] sm:$0xff]
          %v1067 = vadd.f32 %v1055, %v1063
          %v1068 = vadd.f32 %v1056, %v1064
          %v1069 = vadd.f32 %v1057, %v1065
          %v1070 = vadd.f32 %v1058, %v1066
          %v1071 = vadd.f32 %v1059, %v1063
          %v1072 = vadd.f32 %v1060, %v1064
          %v1073 = vadd.f32 %v1061, %v1065
          %v1074 = vadd.f32 %v1062, %v1066
          %1075 = vst [vmem:[#allocation2] sm:$0xff] %v1067
          %1076 = vst [vmem:[#allocation2 + $0x8] sm:$0xff] %v1068
          %1077 = vst [vmem:[#allocation2 + $0x10] sm:$0xff] %v1069
          %1078 = vst [vmem:[#allocation2 + $0x18] sm:$0xff] %v1070
          %1079 = vst [vmem:[#allocation2 + $0x20] sm:$0xff] %v1071
          %1080 = vst [vmem:[#allocation2 + $0x28] sm:$0xff] %v1072
          %1081 = vst [vmem:[#allocation2 + $0x30] sm:$0xff] %v1073
          %1082 = vst [vmem:[#allocation2 + $0x38] sm:$0xff] %v1074
        $region168: #{encoder_only_forward.1} parent=91 // pred_fallthru
          _
        %v1083 = vld [vmem:[#allocation2] sm:$0xff]
        %v1084 = vld [vmem:[#allocation2 + $0x8] sm:$0xff]
        %v1085 = vld [vmem:[#allocation2 + $0x10] sm:$0xff]
        %v1086 = vld [vmem:[#allocation2 + $0x18] sm:$0xff]
        %v1087 = vld [vmem:[#allocation2 + $0x20] sm:$0xff]
        %v1088 = vld [vmem:[#allocation2 + $0x28] sm:$0xff]
        %v1089 = vld [vmem:[#allocation2 + $0x30] sm:$0xff]
        %v1090 = vld [vmem:[#allocation2 + $0x38] sm:$0xff]
        %v1091 = vld [vmem:[%s834] sm:$0xff]
        %v1092 = vld [vmem:[%s834 + $0x8] sm:$0xff]
        %v1093 = vld [vmem:[%s834 + $0x10] sm:$0xff]
        %v1094 = vld [vmem:[%s834 + $0x18] sm:$0xff]
        %v1095 = vld [vmem:[%s834 + $0x20] sm:$0xff]
        %v1096 = vld [vmem:[%s834 + $0x28] sm:$0xff]
        %v1097 = vld [vmem:[%s834 + $0x30] sm:$0xff]
        %v1098 = vld [vmem:[%s834 + $0x38] sm:$0xff]
        %v1099 = vld [vmem:[%s834 + $0x40] sm:$0xff]
        %v1100 = vld [vmem:[%s834 + $0x48] sm:$0xff]
        %v1101 = vld [vmem:[%s834 + $0x50] sm:$0xff]
        %v1102 = vld [vmem:[%s834 + $0x58] sm:$0xff]
        %v1103 = vld [vmem:[%s834 + $0x60] sm:$0xff]
        %v1104 = vld [vmem:[%s834 + $0x68] sm:$0xff]
        %v1105 = vld [vmem:[%s834 + $0x70] sm:$0xff]
        %v1106 = vld [vmem:[%s834 + $0x78] sm:$0xff]
        %v1107 = vld [vmem:[%s834 + $0x80] sm:$0xff]
        %v1108 = vld [vmem:[%s834 + $0x88] sm:$0xff]
        %v1109 = vld [vmem:[%s834 + $0x90] sm:$0xff]
        %v1110 = vld [vmem:[%s834 + $0x98] sm:$0xff]
        %v1111 = vld [vmem:[%s834 + $0xa0] sm:$0xff]
        %v1112 = vld [vmem:[%s834 + $0xa8] sm:$0xff]
        %v1113 = vld [vmem:[%s834 + $0xb0] sm:$0xff]
        %v1114 = vld [vmem:[%s834 + $0xb8] sm:$0xff]
        %v1115 = vld [vmem:[%s834 + $0xc0] sm:$0xff]
        %v1116 = vld [vmem:[%s834 + $0xc8] sm:$0xff]
        %v1117 = vld [vmem:[%s834 + $0xd0] sm:$0xff]
        %v1118 = vld [vmem:[%s834 + $0xd8] sm:$0xff]
        %v1119 = vld [vmem:[%s834 + $0xe0] sm:$0xff]
        %v1120 = vld [vmem:[%s834 + $0xe8] sm:$0xff]
        %v1121 = vld [vmem:[%s834 + $0xf0] sm:$0xff]
        %v1122 = vld [vmem:[%s834 + $0xf8] sm:$0xff]
        %v1123 = vld [vmem:[%s834 + $0x100] sm:$0xff]
        %v1124 = vld [vmem:[%s834 + $0x108] sm:$0xff]
        %v1125 = vld [vmem:[%s834 + $0x110] sm:$0xff]
        %v1126 = vld [vmem:[%s834 + $0x118] sm:$0xff]
        %v1127 = vld [vmem:[%s834 + $0x120] sm:$0xff]
        %v1128 = vld [vmem:[%s834 + $0x128] sm:$0xff]
        %v1129 = vld [vmem:[%s834 + $0x130] sm:$0xff]
        %v1130 = vld [vmem:[%s834 + $0x138] sm:$0xff]
        %v1131 = vld [vmem:[%s834 + $0x140] sm:$0xff]
        %v1132 = vld [vmem:[%s834 + $0x148] sm:$0xff]
        %v1133 = vld [vmem:[%s834 + $0x150] sm:$0xff]
        %v1134 = vld [vmem:[%s834 + $0x158] sm:$0xff]
        %v1135 = vld [vmem:[%s834 + $0x160] sm:$0xff]
        %v1136 = vld [vmem:[%s834 + $0x168] sm:$0xff]
        %v1137 = vld [vmem:[%s834 + $0x170] sm:$0xff]
        %v1138 = vld [vmem:[%s834 + $0x178] sm:$0xff]
        %v1139 = vld [vmem:[%s834 + $0x180] sm:$0xff]
        %v1140 = vld [vmem:[%s834 + $0x188] sm:$0xff]
        %v1141 = vld [vmem:[%s834 + $0x190] sm:$0xff]
        %v1142 = vld [vmem:[%s834 + $0x198] sm:$0xff]
        %v1143 = vld [vmem:[%s834 + $0x1a0] sm:$0xff]
        %v1144 = vld [vmem:[%s834 + $0x1a8] sm:$0xff]
        %v1145 = vld [vmem:[%s834 + $0x1b0] sm:$0xff]
        %v1146 = vld [vmem:[%s834 + $0x1b8] sm:$0xff]
        %v1147 = vld [vmem:[%s834 + $0x1c0] sm:$0xff]
        %v1148 = vld [vmem:[%s834 + $0x1c8] sm:$0xff]
        %v1149 = vld [vmem:[%s834 + $0x1d0] sm:$0xff]
        %v1150 = vld [vmem:[%s834 + $0x1d8] sm:$0xff]
        %v1151 = vld [vmem:[%s834 + $0x1e0] sm:$0xff]
        %v1152 = vld [vmem:[%s834 + $0x1e8] sm:$0xff]
        %v1153 = vld [vmem:[%s834 + $0x1f0] sm:$0xff]
        %v1154 = vld [vmem:[%s834 + $0x1f8] sm:$0xff]
        %v1155 = vld [vmem:[%s834 + $0x200] sm:$0xff]
        %v1156 = vld [vmem:[%s834 + $0x208] sm:$0xff]
        %v1157 = vld [vmem:[%s834 + $0x210] sm:$0xff]
        %v1158 = vld [vmem:[%s834 + $0x218] sm:$0xff]
        %v1159 = vld [vmem:[%s834 + $0x220] sm:$0xff]
        %v1160 = vld [vmem:[%s834 + $0x228] sm:$0xff]
        %v1161 = vld [vmem:[%s834 + $0x230] sm:$0xff]
        %v1162 = vld [vmem:[%s834 + $0x238] sm:$0xff]
        %v1163 = vld [vmem:[%s834 + $0x240] sm:$0xff]
        %v1164 = vld [vmem:[%s834 + $0x248] sm:$0xff]
        %v1165 = vld [vmem:[%s834 + $0x250] sm:$0xff]
        %v1166 = vld [vmem:[%s834 + $0x258] sm:$0xff]
        %v1167 = vld [vmem:[%s834 + $0x260] sm:$0xff]
        %v1168 = vld [vmem:[%s834 + $0x268] sm:$0xff]
        %v1169 = vld [vmem:[%s834 + $0x270] sm:$0xff]
        %v1170 = vld [vmem:[%s834 + $0x278] sm:$0xff]
        %v1171 = vld [vmem:[%s834 + $0x280] sm:$0xff]
        %v1172 = vld [vmem:[%s834 + $0x288] sm:$0xff]
        %v1173 = vld [vmem:[%s834 + $0x290] sm:$0xff]
        %v1174 = vld [vmem:[%s834 + $0x298] sm:$0xff]
        %v1175 = vld [vmem:[%s834 + $0x2a0] sm:$0xff]
        %v1176 = vld [vmem:[%s834 + $0x2a8] sm:$0xff]
        %v1177 = vld [vmem:[%s834 + $0x2b0] sm:$0xff]
        %v1178 = vld [vmem:[%s834 + $0x2b8] sm:$0xff]
        %v1179 = vld [vmem:[%s834 + $0x2c0] sm:$0xff]
        %v1180 = vld [vmem:[%s834 + $0x2c8] sm:$0xff]
        %v1181 = vld [vmem:[%s834 + $0x2d0] sm:$0xff]
        %v1182 = vld [vmem:[%s834 + $0x2d8] sm:$0xff]
        %v1183 = vld [vmem:[%s834 + $0x2e0] sm:$0xff]
        %v1184 = vld [vmem:[%s834 + $0x2e8] sm:$0xff]
        %v1185 = vld [vmem:[%s834 + $0x2f0] sm:$0xff]
        %v1186 = vld [vmem:[%s834 + $0x2f8] sm:$0xff]
        %v1187 = vld [vmem:[%s843] sm:$0x3f]
        %v1188 = vpack.c.bf16 %v1085, %v1083
        %v1189 = vpack.c.bf16 %v1086, %v1084
        %v1190 = vpack.c.bf16 %v1089, %v1087
        %v1191 = vpack.c.bf16 %v1090, %v1088
        %v1193 = vlaneseq
        %v1194 = vshrl.u32 %v1193, 7
        %v1195 = vsub.s32 0, %v1194
        %v1196 = vrot.slane %v1187, %v1195
        %v1197 = vlaneseq
        %v1198 = vshrl.u32 %v1197, 7
        %v1199 = vsub.s32 1, %v1198
        %v1200 = vrot.slane %v1187, %v1199
        %v1201 = vlaneseq
        %v1202 = vshrl.u32 %v1201, 7
        %v1203 = vsub.s32 2, %v1202
        %v1204 = vrot.slane %v1187, %v1203
        %v1205 = vlaneseq
        %v1206 = vshrl.u32 %v1205, 7
        %v1207 = vsub.s32 3, %v1206
        %v1208 = vrot.slane %v1187, %v1207
        %v1209 = vlaneseq
        %v1210 = vshrl.u32 %v1209, 7
        %v1211 = vsub.s32 4, %v1210
        %v1212 = vrot.slane %v1187, %v1211
        %v1213 = vlaneseq
        %v1214 = vshrl.u32 %v1213, 7
        %v1215 = vsub.s32 5, %v1214
        %v1216 = vrot.slane %v1187, %v1215
        %v1319 = vunpack.c.l.b16 %v1091
        %v1320 = vunpack.c.h.b16 %v1091
        %v1321 = vunpack.c.l.b16 %v1092
        %v1322 = vunpack.c.h.b16 %v1092
        %v1323 = vunpack.c.l.b16 %v1093
        %v1324 = vunpack.c.h.b16 %v1093
        %v1325 = vunpack.c.l.b16 %v1094
        %v1326 = vunpack.c.h.b16 %v1094
        %v1327 = vunpack.c.l.b16 %v1095
        %v1328 = vunpack.c.h.b16 %v1095
        %v1329 = vunpack.c.l.b16 %v1096
        %v1330 = vunpack.c.h.b16 %v1096
        %v1331 = vunpack.c.l.b16 %v1097
        %v1332 = vunpack.c.h.b16 %v1097
        %v1333 = vunpack.c.l.b16 %v1098
        %v1334 = vunpack.c.h.b16 %v1098
        %v1335 = vunpack.c.l.b16 %v1099
        %v1336 = vunpack.c.h.b16 %v1099
        %v1337 = vunpack.c.l.b16 %v1100
        %v1338 = vunpack.c.h.b16 %v1100
        %v1339 = vunpack.c.l.b16 %v1101
        %v1340 = vunpack.c.h.b16 %v1101
        %v1341 = vunpack.c.l.b16 %v1102
        %v1342 = vunpack.c.h.b16 %v1102
        %v1343 = vunpack.c.l.b16 %v1103
        %v1344 = vunpack.c.h.b16 %v1103
        %v1345 = vunpack.c.l.b16 %v1104
        %v1346 = vunpack.c.h.b16 %v1104
        %v1347 = vunpack.c.l.b16 %v1105
        %v1348 = vunpack.c.h.b16 %v1105
        %v1349 = vunpack.c.l.b16 %v1106
        %v1350 = vunpack.c.h.b16 %v1106
        %v1351 = vunpack.c.l.b16 %v1107
        %v1352 = vunpack.c.h.b16 %v1107
        %v1353 = vunpack.c.l.b16 %v1108
        %v1354 = vunpack.c.h.b16 %v1108
        %v1355 = vunpack.c.l.b16 %v1109
        %v1356 = vunpack.c.h.b16 %v1109
        %v1357 = vunpack.c.l.b16 %v1110
        %v1358 = vunpack.c.h.b16 %v1110
        %v1359 = vunpack.c.l.b16 %v1111
        %v1360 = vunpack.c.h.b16 %v1111
        %v1361 = vunpack.c.l.b16 %v1112
        %v1362 = vunpack.c.h.b16 %v1112
        %v1363 = vunpack.c.l.b16 %v1113
        %v1364 = vunpack.c.h.b16 %v1113
        %v1365 = vunpack.c.l.b16 %v1114
        %v1366 = vunpack.c.h.b16 %v1114
        %v1367 = vunpack.c.l.b16 %v1115
        %v1368 = vunpack.c.h.b16 %v1115
        %v1369 = vunpack.c.l.b16 %v1116
        %v1370 = vunpack.c.h.b16 %v1116
        %v1371 = vunpack.c.l.b16 %v1117
        %v1372 = vunpack.c.h.b16 %v1117
        %v1373 = vunpack.c.l.b16 %v1118
        %v1374 = vunpack.c.h.b16 %v1118
        %v1375 = vunpack.c.l.b16 %v1119
        %v1376 = vunpack.c.h.b16 %v1119
        %v1377 = vunpack.c.l.b16 %v1120
        %v1378 = vunpack.c.h.b16 %v1120
        %v1379 = vunpack.c.l.b16 %v1121
        %v1380 = vunpack.c.h.b16 %v1121
        %v1381 = vunpack.c.l.b16 %v1122
        %v1382 = vunpack.c.h.b16 %v1122
        %v1383 = vunpack.c.l.b16 %v1123
        %v1384 = vunpack.c.h.b16 %v1123
        %v1385 = vunpack.c.l.b16 %v1124
        %v1386 = vunpack.c.h.b16 %v1124
        %v1387 = vunpack.c.l.b16 %v1125
        %v1388 = vunpack.c.h.b16 %v1125
        %v1389 = vunpack.c.l.b16 %v1126
        %v1390 = vunpack.c.h.b16 %v1126
        %v1391 = vunpack.c.l.b16 %v1127
        %v1392 = vunpack.c.h.b16 %v1127
        %v1393 = vunpack.c.l.b16 %v1128
        %v1394 = vunpack.c.h.b16 %v1128
        %v1395 = vunpack.c.l.b16 %v1129
        %v1396 = vunpack.c.h.b16 %v1129
        %v1397 = vunpack.c.l.b16 %v1130
        %v1398 = vunpack.c.h.b16 %v1130
        %v1399 = vunpack.c.l.b16 %v1131
        %v1400 = vunpack.c.h.b16 %v1131
        %v1401 = vunpack.c.l.b16 %v1132
        %v1402 = vunpack.c.h.b16 %v1132
        %v1403 = vunpack.c.l.b16 %v1133
        %v1404 = vunpack.c.h.b16 %v1133
        %v1405 = vunpack.c.l.b16 %v1134
        %v1406 = vunpack.c.h.b16 %v1134
        %v1407 = vunpack.c.l.b16 %v1135
        %v1408 = vunpack.c.h.b16 %v1135
        %v1409 = vunpack.c.l.b16 %v1136
        %v1410 = vunpack.c.h.b16 %v1136
        %v1411 = vunpack.c.l.b16 %v1137
        %v1412 = vunpack.c.h.b16 %v1137
        %v1413 = vunpack.c.l.b16 %v1138
        %v1414 = vunpack.c.h.b16 %v1138
        %v1415 = vunpack.c.l.b16 %v1139
        %v1416 = vunpack.c.h.b16 %v1139
        %v1417 = vunpack.c.l.b16 %v1140
        %v1418 = vunpack.c.h.b16 %v1140
        %v1419 = vunpack.c.l.b16 %v1141
        %v1420 = vunpack.c.h.b16 %v1141
        %v1421 = vunpack.c.l.b16 %v1142
        %v1422 = vunpack.c.h.b16 %v1142
        %v1423 = vunpack.c.l.b16 %v1143
        %v1424 = vunpack.c.h.b16 %v1143
        %v1425 = vunpack.c.l.b16 %v1144
        %v1426 = vunpack.c.h.b16 %v1144
        %v1427 = vunpack.c.l.b16 %v1145
        %v1428 = vunpack.c.h.b16 %v1145
        %v1429 = vunpack.c.l.b16 %v1146
        %v1430 = vunpack.c.h.b16 %v1146
        %v1431 = vunpack.c.l.b16 %v1147
        %v1432 = vunpack.c.h.b16 %v1147
        %v1433 = vunpack.c.l.b16 %v1148
        %v1434 = vunpack.c.h.b16 %v1148
        %v1435 = vunpack.c.l.b16 %v1149
        %v1436 = vunpack.c.h.b16 %v1149
        %v1437 = vunpack.c.l.b16 %v1150
        %v1438 = vunpack.c.h.b16 %v1150
        %v1439 = vunpack.c.l.b16 %v1151
        %v1440 = vunpack.c.h.b16 %v1151
        %v1441 = vunpack.c.l.b16 %v1152
        %v1442 = vunpack.c.h.b16 %v1152
        %v1443 = vunpack.c.l.b16 %v1153
        %v1444 = vunpack.c.h.b16 %v1153
        %v1445 = vunpack.c.l.b16 %v1154
        %v1446 = vunpack.c.h.b16 %v1154
        %v1447 = vunpack.c.l.b16 %v1155
        %v1448 = vunpack.c.h.b16 %v1155
        %v1449 = vunpack.c.l.b16 %v1156
        %v1450 = vunpack.c.h.b16 %v1156
        %v1451 = vunpack.c.l.b16 %v1157
        %v1452 = vunpack.c.h.b16 %v1157
        %v1453 = vunpack.c.l.b16 %v1158
        %v1454 = vunpack.c.h.b16 %v1158
        %v1455 = vunpack.c.l.b16 %v1159
        %v1456 = vunpack.c.h.b16 %v1159
        %v1457 = vunpack.c.l.b16 %v1160
        %v1458 = vunpack.c.h.b16 %v1160
        %v1459 = vunpack.c.l.b16 %v1161
        %v1460 = vunpack.c.h.b16 %v1161
        %v1461 = vunpack.c.l.b16 %v1162
        %v1462 = vunpack.c.h.b16 %v1162
        %v1463 = vunpack.c.l.b16 %v1163
        %v1464 = vunpack.c.h.b16 %v1163
        %v1465 = vunpack.c.l.b16 %v1164
        %v1466 = vunpack.c.h.b16 %v1164
        %v1467 = vunpack.c.l.b16 %v1165
        %v1468 = vunpack.c.h.b16 %v1165
        %v1469 = vunpack.c.l.b16 %v1166
        %v1470 = vunpack.c.h.b16 %v1166
        %v1471 = vunpack.c.l.b16 %v1167
        %v1472 = vunpack.c.h.b16 %v1167
        %v1473 = vunpack.c.l.b16 %v1168
        %v1474 = vunpack.c.h.b16 %v1168
        %v1475 = vunpack.c.l.b16 %v1169
        %v1476 = vunpack.c.h.b16 %v1169
        %v1477 = vunpack.c.l.b16 %v1170
        %v1478 = vunpack.c.h.b16 %v1170
        %v1479 = vunpack.c.l.b16 %v1171
        %v1480 = vunpack.c.h.b16 %v1171
        %v1481 = vunpack.c.l.b16 %v1172
        %v1482 = vunpack.c.h.b16 %v1172
        %v1483 = vunpack.c.l.b16 %v1173
        %v1484 = vunpack.c.h.b16 %v1173
        %v1485 = vunpack.c.l.b16 %v1174
        %v1486 = vunpack.c.h.b16 %v1174
        %v1487 = vunpack.c.l.b16 %v1175
        %v1488 = vunpack.c.h.b16 %v1175
        %v1489 = vunpack.c.l.b16 %v1176
        %v1490 = vunpack.c.h.b16 %v1176
        %v1491 = vunpack.c.l.b16 %v1177
        %v1492 = vunpack.c.h.b16 %v1177
        %v1493 = vunpack.c.l.b16 %v1178
        %v1494 = vunpack.c.h.b16 %v1178
        %v1495 = vunpack.c.l.b16 %v1179
        %v1496 = vunpack.c.h.b16 %v1179
        %v1497 = vunpack.c.l.b16 %v1180
        %v1498 = vunpack.c.h.b16 %v1180
        %v1499 = vunpack.c.l.b16 %v1181
        %v1500 = vunpack.c.h.b16 %v1181
        %v1501 = vunpack.c.l.b16 %v1182
        %v1502 = vunpack.c.h.b16 %v1182
        %v1503 = vunpack.c.l.b16 %v1183
        %v1504 = vunpack.c.h.b16 %v1183
        %v1505 = vunpack.c.l.b16 %v1184
        %v1506 = vunpack.c.h.b16 %v1184
        %v1507 = vunpack.c.l.b16 %v1185
        %v1508 = vunpack.c.h.b16 %v1185
        %v1509 = vunpack.c.l.b16 %v1186
        %v1510 = vunpack.c.h.b16 %v1186
        %v1511 = vpack.c.b16 %v1321, %v1319
        %v1512 = vpack.c.b16 %v1322, %v1320
        %v1513 = vpack.c.b16 %v1325, %v1323
        %v1514 = vpack.c.b16 %v1326, %v1324
        %v1515 = vpack.c.b16 %v1329, %v1327
        %v1516 = vpack.c.b16 %v1330, %v1328
        %v1517 = vpack.c.b16 %v1333, %v1331
        %v1518 = vpack.c.b16 %v1334, %v1332
        %v1519 = vpack.c.b16 %v1337, %v1335
        %v1520 = vpack.c.b16 %v1338, %v1336
        %v1521 = vpack.c.b16 %v1341, %v1339
        %v1522 = vpack.c.b16 %v1342, %v1340
        %v1523 = vpack.c.b16 %v1345, %v1343
        %v1524 = vpack.c.b16 %v1346, %v1344
        %v1525 = vpack.c.b16 %v1349, %v1347
        %v1526 = vpack.c.b16 %v1350, %v1348
        %v1527 = vpack.c.b16 %v1353, %v1351
        %v1528 = vpack.c.b16 %v1354, %v1352
        %v1529 = vpack.c.b16 %v1357, %v1355
        %v1530 = vpack.c.b16 %v1358, %v1356
        %v1531 = vpack.c.b16 %v1361, %v1359
        %v1532 = vpack.c.b16 %v1362, %v1360
        %v1533 = vpack.c.b16 %v1365, %v1363
        %v1534 = vpack.c.b16 %v1366, %v1364
        %v1535 = vpack.c.b16 %v1369, %v1367
        %v1536 = vpack.c.b16 %v1370, %v1368
        %v1537 = vpack.c.b16 %v1373, %v1371
        %v1538 = vpack.c.b16 %v1374, %v1372
        %v1539 = vpack.c.b16 %v1377, %v1375
        %v1540 = vpack.c.b16 %v1378, %v1376
        %v1541 = vpack.c.b16 %v1381, %v1379
        %v1542 = vpack.c.b16 %v1382, %v1380
        %v1543 = vpack.c.b16 %v1385, %v1383
        %v1544 = vpack.c.b16 %v1386, %v1384
        %v1545 = vpack.c.b16 %v1389, %v1387
        %v1546 = vpack.c.b16 %v1390, %v1388
        %v1547 = vpack.c.b16 %v1393, %v1391
        %v1548 = vpack.c.b16 %v1394, %v1392
        %v1549 = vpack.c.b16 %v1397, %v1395
        %v1550 = vpack.c.b16 %v1398, %v1396
        %v1551 = vpack.c.b16 %v1401, %v1399
        %v1552 = vpack.c.b16 %v1402, %v1400
        %v1553 = vpack.c.b16 %v1405, %v1403
        %v1554 = vpack.c.b16 %v1406, %v1404
        %v1555 = vpack.c.b16 %v1409, %v1407
        %v1556 = vpack.c.b16 %v1410, %v1408
        %v1557 = vpack.c.b16 %v1413, %v1411
        %v1558 = vpack.c.b16 %v1414, %v1412
        %v1559 = vpack.c.b16 %v1417, %v1415
        %v1560 = vpack.c.b16 %v1418, %v1416
        %v1561 = vpack.c.b16 %v1421, %v1419
        %v1562 = vpack.c.b16 %v1422, %v1420
        %v1563 = vpack.c.b16 %v1425, %v1423
        %v1564 = vpack.c.b16 %v1426, %v1424
        %v1565 = vpack.c.b16 %v1429, %v1427
        %v1566 = vpack.c.b16 %v1430, %v1428
        %v1567 = vpack.c.b16 %v1433, %v1431
        %v1568 = vpack.c.b16 %v1434, %v1432
        %v1569 = vpack.c.b16 %v1437, %v1435
        %v1570 = vpack.c.b16 %v1438, %v1436
        %v1571 = vpack.c.b16 %v1441, %v1439
        %v1572 = vpack.c.b16 %v1442, %v1440
        %v1573 = vpack.c.b16 %v1445, %v1443
        %v1574 = vpack.c.b16 %v1446, %v1444
        %v1575 = vpack.c.b16 %v1449, %v1447
        %v1576 = vpack.c.b16 %v1450, %v1448
        %v1577 = vpack.c.b16 %v1453, %v1451
        %v1578 = vpack.c.b16 %v1454, %v1452
        %v1579 = vpack.c.b16 %v1457, %v1455
        %v1580 = vpack.c.b16 %v1458, %v1456
        %v1581 = vpack.c.b16 %v1461, %v1459
        %v1582 = vpack.c.b16 %v1462, %v1460
        %v1583 = vpack.c.b16 %v1465, %v1463
        %v1584 = vpack.c.b16 %v1466, %v1464
        %v1585 = vpack.c.b16 %v1469, %v1467
        %v1586 = vpack.c.b16 %v1470, %v1468
        %v1587 = vpack.c.b16 %v1473, %v1471
        %v1588 = vpack.c.b16 %v1474, %v1472
        %v1589 = vpack.c.b16 %v1477, %v1475
        %v1590 = vpack.c.b16 %v1478, %v1476
        %v1591 = vpack.c.b16 %v1481, %v1479
        %v1592 = vpack.c.b16 %v1482, %v1480
        %v1593 = vpack.c.b16 %v1485, %v1483
        %v1594 = vpack.c.b16 %v1486, %v1484
        %v1595 = vpack.c.b16 %v1489, %v1487
        %v1596 = vpack.c.b16 %v1490, %v1488
        %v1597 = vpack.c.b16 %v1493, %v1491
        %v1598 = vpack.c.b16 %v1494, %v1492
        %v1599 = vpack.c.b16 %v1497, %v1495
        %v1600 = vpack.c.b16 %v1498, %v1496
        %v1601 = vpack.c.b16 %v1501, %v1499
        %v1602 = vpack.c.b16 %v1502, %v1500
        %v1603 = vpack.c.b16 %v1505, %v1503
        %v1604 = vpack.c.b16 %v1506, %v1504
        %v1605 = vpack.c.b16 %v1509, %v1507
        %v1606 = vpack.c.b16 %v1510, %v1508
        %1703 = vmatprep.subr.bf16.mxu0 %v1512
        %1704 = vmatpush1.bf16.xpose.msra.mxu0 %v1511
        %1705 = vmatprep.subr.bf16.mxu0 %v1514
        %1706 = vmatpush1.bf16.xpose.msra.mxu0 %v1513
        %1707 = vmatprep.subr.bf16.mxu0 %v1516
        %1708 = vmatpush1.bf16.xpose.msra.mxu0 %v1515
        %1709 = vmatprep.subr.bf16.mxu0 %v1518
        %1710 = vmatpush1.bf16.xpose.msra.mxu0 %v1517
        %1711 = vmatprep.subr.bf16.mxu0 %v1520
        %1712 = vmatpush1.bf16.xpose.msra.mxu0 %v1519
        %1713 = vmatprep.subr.bf16.mxu0 %v1522
        %1714 = vmatpush1.bf16.xpose.msra.mxu0 %v1521
        %1715 = vmatprep.subr.bf16.mxu0 %v1524
        %1716 = vmatpush1.bf16.xpose.msra.mxu0 %v1523
        %1717 = vmatprep.subr.bf16.mxu0 %v1526
        %1718 = vmatpush1.bf16.xpose.msra.mxu0 %v1525
        %1719 = vmatprep.subr.bf16.mxu0 %v1528
        %1720 = vmatpush1.bf16.xpose.msra.mxu0 %v1527
        %1721 = vmatprep.subr.bf16.mxu0 %v1530
        %1722 = vmatpush1.bf16.xpose.msra.mxu0 %v1529
        %1723 = vmatprep.subr.bf16.mxu0 %v1532
        %1724 = vmatpush1.bf16.xpose.msra.mxu0 %v1531
        %1725 = vmatprep.subr.bf16.mxu0 %v1534
        %1726 = vmatpush1.bf16.xpose.msra.mxu0 %v1533
        %1727 = vmatprep.subr.bf16.mxu0 %v1536
        %1728 = vmatpush1.bf16.xpose.msra.mxu0 %v1535
        %1729 = vmatprep.subr.bf16.mxu0 %v1538
        %1730 = vmatpush1.bf16.xpose.msra.mxu0 %v1537
        %1731 = vmatprep.subr.bf16.mxu0 %v1540
        %1732 = vmatpush1.bf16.xpose.msra.mxu0 %v1539
        %1733 = vmatprep.subr.bf16.mxu0 %v1542
        %1734 = vmatpush1.bf16.xpose.msra.mxu0 %v1541
        %1735 = vmatprep.mubr.bf16.mxu0 %v1189
        %1736 = vmatmul.mubr.bf16.gmra.mrb[0].mxu0 %v1188
        %v1737 = vpop.f32.mrb[0].mxu0
        %v1738 = vadd.f32 %v1196, %v1737
        %v1739 = vpop.f32.mrb[0].mxu0
        %v1740 = vadd.f32 %v1200, %v1739
        %v1741 = vpop.f32.mrb[0].mxu0
        %v1742 = vadd.f32 %v1196, %v1741
        %v1743 = vpop.f32.mrb[0].mxu0
        %v1744 = vadd.f32 %v1200, %v1743
        %1745 = vmatprep.mubr.bf16.mxu0 %v1191
        %1746 = vmatmul.mubr.bf16.gmra.mrb[0].mxu0 %v1190
        %v1747 = vpop.f32.mrb[0].mxu0
        %v1748 = vadd.f32 %v1196, %v1747
        %v1749 = vpop.f32.mrb[0].mxu0
        %v1750 = vadd.f32 %v1200, %v1749
        %v1751 = vpop.f32.mrb[0].mxu0
        %v1752 = vadd.f32 %v1196, %v1751
        %v1753 = vpop.f32.mrb[0].mxu0
        %v1754 = vadd.f32 %v1200, %v1753
        %1755 = vdwg.mxu0
        %1756 = vmatprep.subr.bf16.mxu0 %v1544
        %1757 = vmatpush1.bf16.xpose.msra.mxu0 %v1543
        %1758 = vmatprep.subr.bf16.mxu0 %v1546
        %1759 = vmatpush1.bf16.xpose.msra.mxu0 %v1545
        %1760 = vmatprep.subr.bf16.mxu0 %v1548
        %1761 = vmatpush1.bf16.xpose.msra.mxu0 %v1547
        %1762 = vmatprep.subr.bf16.mxu0 %v1550
        %1763 = vmatpush1.bf16.xpose.msra.mxu0 %v1549
        %1764 = vmatprep.subr.bf16.mxu0 %v1552
        %1765 = vmatpush1.bf16.xpose.msra.mxu0 %v1551
        %1766 = vmatprep.subr.bf16.mxu0 %v1554
        %1767 = vmatpush1.bf16.xpose.msra.mxu0 %v1553
        %1768 = vmatprep.subr.bf16.mxu0 %v1556
        %1769 = vmatpush1.bf16.xpose.msra.mxu0 %v1555
        %1770 = vmatprep.subr.bf16.mxu0 %v1558
        %1771 = vmatpush1.bf16.xpose.msra.mxu0 %v1557
        %1772 = vmatprep.subr.bf16.mxu0 %v1560
        %1773 = vmatpush1.bf16.xpose.msra.mxu0 %v1559
        %1774 = vmatprep.subr.bf16.mxu0 %v1562
        %1775 = vmatpush1.bf16.xpose.msra.mxu0 %v1561
        %1776 = vmatprep.subr.bf16.mxu0 %v1564
        %1777 = vmatpush1.bf16.xpose.msra.mxu0 %v1563
        %1778 = vmatprep.subr.bf16.mxu0 %v1566
        %1779 = vmatpush1.bf16.xpose.msra.mxu0 %v1565
        %1780 = vmatprep.subr.bf16.mxu0 %v1568
        %1781 = vmatpush1.bf16.xpose.msra.mxu0 %v1567
        %1782 = vmatprep.subr.bf16.mxu0 %v1570
        %1783 = vmatpush1.bf16.xpose.msra.mxu0 %v1569
        %1784 = vmatprep.subr.bf16.mxu0 %v1572
        %1785 = vmatpush1.bf16.xpose.msra.mxu0 %v1571
        %1786 = vmatprep.subr.bf16.mxu0 %v1574
        %1787 = vmatpush1.bf16.xpose.msra.mxu0 %v1573
        %1788 = vmatprep.mubr.bf16.mxu0 %v1189
        %1789 = vmatmul.mubr.bf16.gmra.mrb[0].mxu0 %v1188
        %v1790 = vpop.f32.mrb[0].mxu0
        %v1791 = vadd.f32 %v1204, %v1790
        %v1792 = vpop.f32.mrb[0].mxu0
        %v1793 = vadd.f32 %v1208, %v1792
        %v1794 = vpop.f32.mrb[0].mxu0
        %v1795 = vadd.f32 %v1204, %v1794
        %v1796 = vpop.f32.mrb[0].mxu0
        %v1797 = vadd.f32 %v1208, %v1796
        %1798 = vmatprep.mubr.bf16.mxu0 %v1191
        %1799 = vmatmul.mubr.bf16.gmra.mrb[0].mxu0 %v1190
        %v1800 = vpop.f32.mrb[0].mxu0
        %v1801 = vadd.f32 %v1204, %v1800
        %v1802 = vpop.f32.mrb[0].mxu0
        %v1803 = vadd.f32 %v1208, %v1802
        %v1804 = vpop.f32.mrb[0].mxu0
        %v1805 = vadd.f32 %v1204, %v1804
        %v1806 = vpop.f32.mrb[0].mxu0
        %v1807 = vadd.f32 %v1208, %v1806
        %1808 = vdwg.mxu0
        %1809 = vmatprep.subr.bf16.mxu0 %v1576
        %1810 = vmatpush1.bf16.xpose.msra.mxu0 %v1575
        %1811 = vmatprep.subr.bf16.mxu0 %v1578
        %1812 = vmatpush1.bf16.xpose.msra.mxu0 %v1577
        %1813 = vmatprep.subr.bf16.mxu0 %v1580
        %1814 = vmatpush1.bf16.xpose.msra.mxu0 %v1579
        %1815 = vmatprep.subr.bf16.mxu0 %v1582
        %1816 = vmatpush1.bf16.xpose.msra.mxu0 %v1581
        %1817 = vmatprep.subr.bf16.mxu0 %v1584
        %1818 = vmatpush1.bf16.xpose.msra.mxu0 %v1583
        %1819 = vmatprep.subr.bf16.mxu0 %v1586
        %1820 = vmatpush1.bf16.xpose.msra.mxu0 %v1585
        %1821 = vmatprep.subr.bf16.mxu0 %v1588
        %1822 = vmatpush1.bf16.xpose.msra.mxu0 %v1587
        %1823 = vmatprep.subr.bf16.mxu0 %v1590
        %1824 = vmatpush1.bf16.xpose.msra.mxu0 %v1589
        %1825 = vmatprep.subr.bf16.mxu0 %v1592
        %1826 = vmatpush1.bf16.xpose.msra.mxu0 %v1591
        %1827 = vmatprep.subr.bf16.mxu0 %v1594
        %1828 = vmatpush1.bf16.xpose.msra.mxu0 %v1593
        %1829 = vmatprep.subr.bf16.mxu0 %v1596
        %1830 = vmatpush1.bf16.xpose.msra.mxu0 %v1595
        %1831 = vmatprep.subr.bf16.mxu0 %v1598
        %1832 = vmatpush1.bf16.xpose.msra.mxu0 %v1597
        %1833 = vmatprep.subr.bf16.mxu0 %v1600
        %1834 = vmatpush1.bf16.xpose.msra.mxu0 %v1599
        %1835 = vmatprep.subr.bf16.mxu0 %v1602
        %1836 = vmatpush1.bf16.xpose.msra.mxu0 %v1601
        %1837 = vmatprep.subr.bf16.mxu0 %v1604
        %1838 = vmatpush1.bf16.xpose.msra.mxu0 %v1603
        %1839 = vmatprep.subr.bf16.mxu0 %v1606
        %1840 = vmatpush1.bf16.xpose.msra.mxu0 %v1605
        %1841 = vmatprep.mubr.bf16.mxu0 %v1189
        %1842 = vmatmul.mubr.bf16.gmra.mrb[0].mxu0 %v1188
        %v1843 = vpop.f32.mrb[0].mxu0
        %v1844 = vadd.f32 %v1212, %v1843
        %v1845 = vpop.f32.mrb[0].mxu0
        %v1846 = vadd.f32 %v1216, %v1845
        %v1847 = vpop.f32.mrb[0].mxu0
        %v1848 = vadd.f32 %v1212, %v1847
        %v1849 = vpop.f32.mrb[0].mxu0
        %v1850 = vadd.f32 %v1216, %v1849
        %1851 = vmatprep.mubr.bf16.mxu0 %v1191
        %1852 = vmatmul.mubr.bf16.gmra.mrb[0].mxu0 %v1190
        %v1853 = vpop.f32.mrb[0].mxu0
        %v1854 = vadd.f32 %v1212, %v1853
        %v1855 = vpop.f32.mrb[0].mxu0
        %v1856 = vadd.f32 %v1216, %v1855
        %v1857 = vpop.f32.mrb[0].mxu0
        %v1858 = vadd.f32 %v1212, %v1857
        %v1859 = vpop.f32.mrb[0].mxu0
        %v1860 = vadd.f32 %v1216, %v1859
        %1861 = vdwg.mxu0
        %v1862 = vmul.f32 %v1738, 0.125
        %v1863 = vmul.f32 %v1740, 0.125
        %v1864 = vmul.f32 %v1742, 0.125
        %v1865 = vmul.f32 %v1744, 0.125
        %v1866 = vmul.f32 %v1748, 0.125
        %v1867 = vmul.f32 %v1750, 0.125
        %v1868 = vmul.f32 %v1752, 0.125
        %v1869 = vmul.f32 %v1754, 0.125
        %v1870 = vld [vmem:[%s852] sm:$0xff]
        %v1871 = vld [vmem:[%s852 + $0x8] sm:$0xff]
        %v1872 = vld [vmem:[%s852 + $0x10] sm:$0xff]
        %v1873 = vld [vmem:[%s852 + $0x18] sm:$0xff]
        %v1874 = vld [vmem:[%s852 + $0x20] sm:$0xff]
        %v1875 = vld [vmem:[%s852 + $0x28] sm:$0xff]
        %v1876 = vld [vmem:[%s852 + $0x30] sm:$0xff]
        %v1877 = vld [vmem:[%s852 + $0x38] sm:$0xff]
        %v1878 = vld [vmem:[%s852 + $0x40] sm:$0xff]
        %v1879 = vld [vmem:[%s852 + $0x48] sm:$0xff]
        %v1880 = vld [vmem:[%s852 + $0x50] sm:$0xff]
        %v1881 = vld [vmem:[%s852 + $0x58] sm:$0xff]
        %v1882 = vld [vmem:[%s852 + $0x60] sm:$0xff]
        %v1883 = vld [vmem:[%s852 + $0x68] sm:$0xff]
        %v1884 = vld [vmem:[%s852 + $0x70] sm:$0xff]
        %v1885 = vld [vmem:[%s852 + $0x78] sm:$0xff]
        %v1886 = vld [vmem:[%s852 + $0x80] sm:$0xff]
        %v1887 = vld [vmem:[%s852 + $0x88] sm:$0xff]
        %v1888 = vld [vmem:[%s852 + $0x90] sm:$0xff]
        %v1889 = vld [vmem:[%s852 + $0x98] sm:$0xff]
        %v1890 = vld [vmem:[%s852 + $0xa0] sm:$0xff]
        %v1891 = vld [vmem:[%s852 + $0xa8] sm:$0xff]
        %v1892 = vld [vmem:[%s852 + $0xb0] sm:$0xff]
        %v1893 = vld [vmem:[%s852 + $0xb8] sm:$0xff]
        %v1894 = vld [vmem:[%s852 + $0xc0] sm:$0xff]
        %v1895 = vld [vmem:[%s852 + $0xc8] sm:$0xff]
        %v1896 = vld [vmem:[%s852 + $0xd0] sm:$0xff]
        %v1897 = vld [vmem:[%s852 + $0xd8] sm:$0xff]
        %v1898 = vld [vmem:[%s852 + $0xe0] sm:$0xff]
        %v1899 = vld [vmem:[%s852 + $0xe8] sm:$0xff]
        %v1900 = vld [vmem:[%s852 + $0xf0] sm:$0xff]
        %v1901 = vld [vmem:[%s852 + $0xf8] sm:$0xff]
        %v1902 = vpack.c.bf16 %v1864, %v1862
        %v1903 = vpack.c.bf16 %v1868, %v1866
        %v1904 = vpack.c.bf16 %v1795, %v1791
        %v1905 = vpack.c.bf16 %v1805, %v1801
        %v1906 = vpack.c.bf16 %v1848, %v1844
        %v1907 = vpack.c.bf16 %v1858, %v1854
        %vm1908 = vcmask 523264
        %v1910 = vsel %vm1908, %v1902, 0
        %v1913 = vsel %vm1908, %v1904, 0
        %1915 = vmatprep.subr.bf16.mxu0 0
        %1916 = vmatpush1.bf16.xpose.msra.mxu0 %v1913
        %1917 = vmatprep.subr.bf16.mxu0 0
        %1918 = vmatpush1.bf16.xpose.msra.mxu0 0
        %1919 = vmatprep.subr.bf16.mxu0 0
        %1920 = vmatpush1.bf16.xpose.msra.mxu0 0
        %1921 = vmatprep.subr.bf16.mxu0 0
        %1922 = vmatpush1.bf16.xpose.msra.mxu0 0
        %1923 = vmatprep.subr.bf16.mxu0 0
        %1924 = vmatpush1.bf16.xpose.msra.mxu0 0
        %1925 = vmatprep.subr.bf16.mxu0 0
        %1926 = vmatpush1.bf16.xpose.msra.mxu0 0
        %1927 = vmatprep.subr.bf16.mxu0 0
        %1928 = vmatpush1.bf16.xpose.msra.mxu0 0
        %1929 = vmatprep.subr.bf16.mxu0 0
        %1930 = vmatpush1.bf16.xpose.msra.mxu0 0
        %1931 = vmatprep.subr.bf16.mxu0 0
        %1932 = vmatpush1.bf16.xpose.msra.mxu0 0
        %1933 = vmatprep.subr.bf16.mxu0 0
        %1934 = vmatpush1.bf16.xpose.msra.mxu0 0
        %1935 = vmatprep.subr.bf16.mxu0 0
        %1936 = vmatpush1.bf16.xpose.msra.mxu0 0
        %1937 = vmatprep.subr.bf16.mxu0 0
        %1938 = vmatpush1.bf16.xpose.msra.mxu0 0
        %1939 = vmatprep.subr.bf16.mxu0 0
        %1940 = vmatpush1.bf16.xpose.msra.mxu0 0
        %1941 = vmatprep.subr.bf16.mxu0 0
        %1942 = vmatpush1.bf16.xpose.msra.mxu0 0
        %1943 = vmatprep.subr.bf16.mxu0 0
        %1944 = vmatpush1.bf16.xpose.msra.mxu0 0
        %1945 = vmatprep.subr.bf16.mxu0 0
        %1946 = vmatpush1.bf16.xpose.msra.mxu0 0
        %1947 = vmatprep.mubr.bf16.mxu0 0
        %1948 = vmatmul.mubr.bf16.gmra.mrb[0].mxu0 %v1910
        %v1949 = vpop.f32.mrb[0].mxu0
        %v1950 = vadd.f32 0.0, %v1949
        %v1951 = vpop.f32.mrb[0].mxu0
        %v1952 = vpop.f32.mrb[0].mxu0
        %v1953 = vadd.f32 0.0, %v1952
        %v1954 = vpop.f32.mrb[0].mxu0
        %1955 = vdwg.mxu0
        %v1957 = vsel %vm1908, %v1903, 0
        %v1960 = vsel %vm1908, %v1905, 0
        %1962 = vmatprep.subr.bf16.mxu0 0
        %1963 = vmatpush1.bf16.xpose.msra.mxu0 %v1960
        %1964 = vmatprep.subr.bf16.mxu0 0
        %1965 = vmatpush1.bf16.xpose.msra.mxu0 0
        %1966 = vmatprep.subr.bf16.mxu0 0
        %1967 = vmatpush1.bf16.xpose.msra.mxu0 0
        %1968 = vmatprep.subr.bf16.mxu0 0
        %1969 = vmatpush1.bf16.xpose.msra.mxu0 0
        %1970 = vmatprep.subr.bf16.mxu0 0
        %1971 = vmatpush1.bf16.xpose.msra.mxu0 0
        %1972 = vmatprep.subr.bf16.mxu0 0
        %1973 = vmatpush1.bf16.xpose.msra.mxu0 0
        %1974 = vmatprep.subr.bf16.mxu0 0
        %1975 = vmatpush1.bf16.xpose.msra.mxu0 0
        %1976 = vmatprep.subr.bf16.mxu0 0
        %1977 = vmatpush1.bf16.xpose.msra.mxu0 0
        %1978 = vmatprep.subr.bf16.mxu0 0
        %1979 = vmatpush1.bf16.xpose.msra.mxu0 0
        %1980 = vmatprep.subr.bf16.mxu0 0
        %1981 = vmatpush1.bf16.xpose.msra.mxu0 0
        %1982 = vmatprep.subr.bf16.mxu0 0
        %1983 = vmatpush1.bf16.xpose.msra.mxu0 0
        %1984 = vmatprep.subr.bf16.mxu0 0
        %1985 = vmatpush1.bf16.xpose.msra.mxu0 0
        %1986 = vmatprep.subr.bf16.mxu0 0
        %1987 = vmatpush1.bf16.xpose.msra.mxu0 0
        %1988 = vmatprep.subr.bf16.mxu0 0
        %1989 = vmatpush1.bf16.xpose.msra.mxu0 0
        %1990 = vmatprep.subr.bf16.mxu0 0
        %1991 = vmatpush1.bf16.xpose.msra.mxu0 0
        %1992 = vmatprep.subr.bf16.mxu0 0
        %1993 = vmatpush1.bf16.xpose.msra.mxu0 0
        %1994 = vmatprep.mubr.bf16.mxu0 0
        %1995 = vmatmul.mubr.bf16.gmra.mrb[0].mxu0 %v1957
        %v1996 = vpop.f32.mrb[0].mxu0
        %v1997 = vadd.f32 0.0, %v1996
        %v1998 = vpop.f32.mrb[0].mxu0
        %v1999 = vpop.f32.mrb[0].mxu0
        %v2000 = vadd.f32 0.0, %v1999
        %v2001 = vpop.f32.mrb[0].mxu0
        %2002 = vdwg.mxu0
        %vm2003 = vcmask 130048
        %v2004 = vsel %vm2003, %v1950, -inf
        %2005 = vmax.xlane.f32.xlu0 %v2004
        %v2006 = vpop.xlane.xlu0 %2005
        %v2007 = vsel %vm2003, %v1953, -inf
        %2008 = vmax.xlane.f32.xlu0 %v2007
        %v2009 = vpop.xlane.xlu0 %2008
        %v2010 = vsel %vm2003, %v1997, -inf
        %2011 = vmax.xlane.f32.xlu0 %v2010
        %v2012 = vpop.xlane.xlu0 %2011
        %v2013 = vsel %vm2003, %v2000, -inf
        %2014 = vmax.xlane.f32.xlu0 %v2013
        %v2015 = vpop.xlane.xlu0 %2014
        %v2016 = vsub.f32 %v1950, %v2006
        %v2017 = vsub.f32 %v1953, %v2009
        %v2018 = vsub.f32 %v1997, %v2012
        %v2019 = vsub.f32 %v2000, %v2015
        %v2020 = vmul.f32 %v2016, 1.442695
        %v2021 = vpow.pop %v2020
        %v2022 = vmul.f32 %v2017, 1.442695
        %v2023 = vpow.pop %v2022
        %v2024 = vmul.f32 %v2018, 1.442695
        %v2025 = vpow.pop %v2024
        %v2026 = vmul.f32 %v2019, 1.442695
        %v2027 = vpow.pop %v2026
        %v2028 = vsel %vm2003, %v2021, 0.0
        %2029 = vadd.xlane.f32.xlu0 %v2028
        %v2030 = vpop.xlane.xlu0 %2029
        %v2031 = vsel %vm2003, %v2023, 0.0
        %2032 = vadd.xlane.f32.xlu0 %v2031
        %v2033 = vpop.xlane.xlu0 %2032
        %v2034 = vsel %vm2003, %v2025, 0.0
        %2035 = vadd.xlane.f32.xlu0 %v2034
        %v2036 = vpop.xlane.xlu0 %2035
        %v2037 = vsel %vm2003, %v2027, 0.0
        %2038 = vadd.xlane.f32.xlu0 %v2037
        %v2039 = vpop.xlane.xlu0 %2038
        %v2040 = vrcp.pop %v2030
        %v2041 = vrcp.pop %v2033
        %v2042 = vrcp.pop %v2036
        %v2043 = vrcp.pop %v2039
        %v2044 = vmul.f32 %v2021, %v2040
        %v2045 = vmul.f32 %v2023, %v2041
        %v2046 = vmul.f32 %v2025, %v2042
        %v2047 = vmul.f32 %v2027, %v2043
        %v2048 = vpack.c.bf16 %v2045, %v2044
        %v2049 = vpack.c.bf16 %v2047, %v2046
        %v2051 = vsel %vm2003, %v2048, 0
        %2053 = vmatprep.subr.bf16.mxu0 0
        %2054 = vmatpush1.bf16.msra.mxu0 %v1906
        %2055 = vmatprep.subr.bf16.mxu0 0
        %2056 = vmatpush1.bf16.msra.mxu0 0
        %2057 = vmatprep.subr.bf16.mxu0 0
        %2058 = vmatpush1.bf16.msra.mxu0 0
        %2059 = vmatprep.subr.bf16.mxu0 0
        %2060 = vmatpush1.bf16.msra.mxu0 0
        %2061 = vmatprep.subr.bf16.mxu0 0
        %2062 = vmatpush1.bf16.msra.mxu0 0
        %2063 = vmatprep.subr.bf16.mxu0 0
        %2064 = vmatpush1.bf16.msra.mxu0 0
        %2065 = vmatprep.subr.bf16.mxu0 0
        %2066 = vmatpush1.bf16.msra.mxu0 0
        %2067 = vmatprep.subr.bf16.mxu0 0
        %2068 = vmatpush1.bf16.msra.mxu0 0
        %2069 = vmatprep.subr.bf16.mxu0 0
        %2070 = vmatpush1.bf16.msra.mxu0 0
        %2071 = vmatprep.subr.bf16.mxu0 0
        %2072 = vmatpush1.bf16.msra.mxu0 0
        %2073 = vmatprep.subr.bf16.mxu0 0
        %2074 = vmatpush1.bf16.msra.mxu0 0
        %2075 = vmatprep.subr.bf16.mxu0 0
        %2076 = vmatpush1.bf16.msra.mxu0 0
        %2077 = vmatprep.subr.bf16.mxu0 0
        %2078 = vmatpush1.bf16.msra.mxu0 0
        %2079 = vmatprep.subr.bf16.mxu0 0
        %2080 = vmatpush1.bf16.msra.mxu0 0
        %2081 = vmatprep.subr.bf16.mxu0 0
        %2082 = vmatpush1.bf16.msra.mxu0 0
        %2083 = vmatprep.subr.bf16.mxu0 0
        %2084 = vmatpush1.bf16.msra.mxu0 0
        %2085 = vmatprep.mubr.bf16.mxu0 0
        %2086 = vmatmul.mubr.bf16.gmra.mrb[0].mxu0 %v2051
        %v2087 = vpop.f32.mrb[0].mxu0
        %v2088 = vadd.f32 0.0, %v2087
        %v2089 = vpop.f32.mrb[0].mxu0
        %v2090 = vpop.f32.mrb[0].mxu0
        %v2091 = vadd.f32 0.0, %v2090
        %v2092 = vpop.f32.mrb[0].mxu0
        %2093 = vdwg.mxu0
        %v2095 = vsel %vm2003, %v2049, 0
        %2097 = vmatprep.subr.bf16.mxu0 0
        %2098 = vmatpush1.bf16.msra.mxu0 %v1907
        %2099 = vmatprep.subr.bf16.mxu0 0
        %2100 = vmatpush1.bf16.msra.mxu0 0
        %2101 = vmatprep.subr.bf16.mxu0 0
        %2102 = vmatpush1.bf16.msra.mxu0 0
        %2103 = vmatprep.subr.bf16.mxu0 0
        %2104 = vmatpush1.bf16.msra.mxu0 0
        %2105 = vmatprep.subr.bf16.mxu0 0
        %2106 = vmatpush1.bf16.msra.mxu0 0
        %2107 = vmatprep.subr.bf16.mxu0 0
        %2108 = vmatpush1.bf16.msra.mxu0 0
        %2109 = vmatprep.subr.bf16.mxu0 0
        %2110 = vmatpush1.bf16.msra.mxu0 0
        %2111 = vmatprep.subr.bf16.mxu0 0
        %2112 = vmatpush1.bf16.msra.mxu0 0
        %2113 = vmatprep.subr.bf16.mxu0 0
        %2114 = vmatpush1.bf16.msra.mxu0 0
        %2115 = vmatprep.subr.bf16.mxu0 0
        %2116 = vmatpush1.bf16.msra.mxu0 0
        %2117 = vmatprep.subr.bf16.mxu0 0
        %2118 = vmatpush1.bf16.msra.mxu0 0
        %2119 = vmatprep.subr.bf16.mxu0 0
        %2120 = vmatpush1.bf16.msra.mxu0 0
        %2121 = vmatprep.subr.bf16.mxu0 0
        %2122 = vmatpush1.bf16.msra.mxu0 0
        %2123 = vmatprep.subr.bf16.mxu0 0
        %2124 = vmatpush1.bf16.msra.mxu0 0
        %2125 = vmatprep.subr.bf16.mxu0 0
        %2126 = vmatpush1.bf16.msra.mxu0 0
        %2127 = vmatprep.subr.bf16.mxu0 0
        %2128 = vmatpush1.bf16.msra.mxu0 0
        %2129 = vmatprep.mubr.bf16.mxu0 0
        %2130 = vmatmul.mubr.bf16.gmra.mrb[0].mxu0 %v2095
        %v2131 = vpop.f32.mrb[0].mxu0
        %v2132 = vadd.f32 0.0, %v2131
        %v2133 = vpop.f32.mrb[0].mxu0
        %v2134 = vpop.f32.mrb[0].mxu0
        %v2135 = vadd.f32 0.0, %v2134
        %v2136 = vpop.f32.mrb[0].mxu0
        %2137 = vdwg.mxu0
        %v2138 = vpack.c.bf16 %v2091, %v2088
        %v2139 = vpack.c.bf16 %v2135, %v2132
        %2141 = vrot.lane.b32.xlu0 %v1902, 64
        %v2142 = vpop.permute.xlu0 %2141
        %2144 = vrot.lane.b32.xlu0 %v1904, 64
        %v2145 = vpop.permute.xlu0 %2144
        %v2147 = vsel %vm1908, %v2142, 0
        %v2150 = vsel %vm1908, %v2145, 0
        %2152 = vmatprep.subr.bf16.mxu0 0
        %2153 = vmatpush1.bf16.xpose.msra.mxu0 %v2150
        %2154 = vmatprep.subr.bf16.mxu0 0
        %2155 = vmatpush1.bf16.xpose.msra.mxu0 0
        %2156 = vmatprep.subr.bf16.mxu0 0
        %2157 = vmatpush1.bf16.xpose.msra.mxu0 0
        %2158 = vmatprep.subr.bf16.mxu0 0
        %2159 = vmatpush1.bf16.xpose.msra.mxu0 0
        %2160 = vmatprep.subr.bf16.mxu0 0
        %2161 = vmatpush1.bf16.xpose.msra.mxu0 0
        %2162 = vmatprep.subr.bf16.mxu0 0
        %2163 = vmatpush1.bf16.xpose.msra.mxu0 0
        %2164 = vmatprep.subr.bf16.mxu0 0
        %2165 = vmatpush1.bf16.xpose.msra.mxu0 0
        %2166 = vmatprep.subr.bf16.mxu0 0
        %2167 = vmatpush1.bf16.xpose.msra.mxu0 0
        %2168 = vmatprep.subr.bf16.mxu0 0
        %2169 = vmatpush1.bf16.xpose.msra.mxu0 0
        %2170 = vmatprep.subr.bf16.mxu0 0
        %2171 = vmatpush1.bf16.xpose.msra.mxu0 0
        %2172 = vmatprep.subr.bf16.mxu0 0
        %2173 = vmatpush1.bf16.xpose.msra.mxu0 0
        %2174 = vmatprep.subr.bf16.mxu0 0
        %2175 = vmatpush1.bf16.xpose.msra.mxu0 0
        %2176 = vmatprep.subr.bf16.mxu0 0
        %2177 = vmatpush1.bf16.xpose.msra.mxu0 0
        %2178 = vmatprep.subr.bf16.mxu0 0
        %2179 = vmatpush1.bf16.xpose.msra.mxu0 0
        %2180 = vmatprep.subr.bf16.mxu0 0
        %2181 = vmatpush1.bf16.xpose.msra.mxu0 0
        %2182 = vmatprep.subr.bf16.mxu0 0
        %2183 = vmatpush1.bf16.xpose.msra.mxu0 0
        %2184 = vmatprep.mubr.bf16.mxu0 0
        %2185 = vmatmul.mubr.bf16.gmra.mrb[0].mxu0 %v2147
        %v2186 = vpop.f32.mrb[0].mxu0
        %v2187 = vadd.f32 0.0, %v2186
        %v2188 = vpop.f32.mrb[0].mxu0
        %v2189 = vpop.f32.mrb[0].mxu0
        %v2190 = vadd.f32 0.0, %v2189
        %v2191 = vpop.f32.mrb[0].mxu0
        %2192 = vdwg.mxu0
        %2194 = vrot.lane.b32.xlu0 %v1903, 64
        %v2195 = vpop.permute.xlu0 %2194
        %2197 = vrot.lane.b32.xlu0 %v1905, 64
        %v2198 = vpop.permute.xlu0 %2197
        %v2200 = vsel %vm1908, %v2195, 0
        %v2203 = vsel %vm1908, %v2198, 0
        %2205 = vmatprep.subr.bf16.mxu0 0
        %2206 = vmatpush1.bf16.xpose.msra.mxu0 %v2203
        %2207 = vmatprep.subr.bf16.mxu0 0
        %2208 = vmatpush1.bf16.xpose.msra.mxu0 0
        %2209 = vmatprep.subr.bf16.mxu0 0
        %2210 = vmatpush1.bf16.xpose.msra.mxu0 0
        %2211 = vmatprep.subr.bf16.mxu0 0
        %2212 = vmatpush1.bf16.xpose.msra.mxu0 0
        %2213 = vmatprep.subr.bf16.mxu0 0
        %2214 = vmatpush1.bf16.xpose.msra.mxu0 0
        %2215 = vmatprep.subr.bf16.mxu0 0
        %2216 = vmatpush1.bf16.xpose.msra.mxu0 0
        %2217 = vmatprep.subr.bf16.mxu0 0
        %2218 = vmatpush1.bf16.xpose.msra.mxu0 0
        %2219 = vmatprep.subr.bf16.mxu0 0
        %2220 = vmatpush1.bf16.xpose.msra.mxu0 0
        %2221 = vmatprep.subr.bf16.mxu0 0
        %2222 = vmatpush1.bf16.xpose.msra.mxu0 0
        %2223 = vmatprep.subr.bf16.mxu0 0
        %2224 = vmatpush1.bf16.xpose.msra.mxu0 0
        %2225 = vmatprep.subr.bf16.mxu0 0
        %2226 = vmatpush1.bf16.xpose.msra.mxu0 0
        %2227 = vmatprep.subr.bf16.mxu0 0
        %2228 = vmatpush1.bf16.xpose.msra.mxu0 0
        %2229 = vmatprep.subr.bf16.mxu0 0
        %2230 = vmatpush1.bf16.xpose.msra.mxu0 0
        %2231 = vmatprep.subr.bf16.mxu0 0
        %2232 = vmatpush1.bf16.xpose.msra.mxu0 0
        %2233 = vmatprep.subr.bf16.mxu0 0
        %2234 = vmatpush1.bf16.xpose.msra.mxu0 0
        %2235 = vmatprep.subr.bf16.mxu0 0
        %2236 = vmatpush1.bf16.xpose.msra.mxu0 0
        %2237 = vmatprep.mubr.bf16.mxu0 0
        %2238 = vmatmul.mubr.bf16.gmra.mrb[0].mxu0 %v2200
        %v2239 = vpop.f32.mrb[0].mxu0
        %v2240 = vadd.f32 0.0, %v2239
        %v2241 = vpop.f32.mrb[0].mxu0
        %v2242 = vpop.f32.mrb[0].mxu0
        %v2243 = vadd.f32 0.0, %v2242
        %v2244 = vpop.f32.mrb[0].mxu0
        %2245 = vdwg.mxu0
        %v2246 = vsel %vm2003, %v2187, -inf
        %2247 = vmax.xlane.f32.xlu0 %v2246
        %v2248 = vpop.xlane.xlu0 %2247
        %v2249 = vsel %vm2003, %v2190, -inf
        %2250 = vmax.xlane.f32.xlu0 %v2249
        %v2251 = vpop.xlane.xlu0 %2250
        %v2252 = vsel %vm2003, %v2240, -inf
        %2253 = vmax.xlane.f32.xlu0 %v2252
        %v2254 = vpop.xlane.xlu0 %2253
        %v2255 = vsel %vm2003, %v2243, -inf
        %2256 = vmax.xlane.f32.xlu0 %v2255
        %v2257 = vpop.xlane.xlu0 %2256
        %v2258 = vsub.f32 %v2187, %v2248
        %v2259 = vsub.f32 %v2190, %v2251
        %v2260 = vsub.f32 %v2240, %v2254
        %v2261 = vsub.f32 %v2243, %v2257
        %v2262 = vmul.f32 %v2258, 1.442695
        %v2263 = vpow.pop %v2262
        %v2264 = vmul.f32 %v2259, 1.442695
        %v2265 = vpow.pop %v2264
        %v2266 = vmul.f32 %v2260, 1.442695
        %v2267 = vpow.pop %v2266
        %v2268 = vmul.f32 %v2261, 1.442695
        %v2269 = vpow.pop %v2268
        %v2270 = vsel %vm2003, %v2263, 0.0
        %2271 = vadd.xlane.f32.xlu0 %v2270
        %v2272 = vpop.xlane.xlu0 %2271
        %v2273 = vsel %vm2003, %v2265, 0.0
        %2274 = vadd.xlane.f32.xlu0 %v2273
        %v2275 = vpop.xlane.xlu0 %2274
        %v2276 = vsel %vm2003, %v2267, 0.0
        %2277 = vadd.xlane.f32.xlu0 %v2276
        %v2278 = vpop.xlane.xlu0 %2277
        %v2279 = vsel %vm2003, %v2269, 0.0
        %2280 = vadd.xlane.f32.xlu0 %v2279
        %v2281 = vpop.xlane.xlu0 %2280
        %v2282 = vrcp.pop %v2272
        %v2283 = vrcp.pop %v2275
        %v2284 = vrcp.pop %v2278
        %v2285 = vrcp.pop %v2281
        %v2286 = vmul.f32 %v2263, %v2282
        %v2287 = vmul.f32 %v2265, %v2283
        %v2288 = vmul.f32 %v2267, %v2284
        %v2289 = vmul.f32 %v2269, %v2285
        %v2290 = vpack.c.bf16 %v2287, %v2286
        %v2291 = vpack.c.bf16 %v2289, %v2288
        %2293 = vrot.lane.b32.xlu0 %v1906, 64
        %v2294 = vpop.permute.xlu0 %2293
        %v2297 = vsel %vm2003, %v2290, 0
        %2299 = vmatprep.subr.bf16.mxu0 0
        %2300 = vmatpush1.bf16.msra.mxu0 %v2294
        %2301 = vmatprep.subr.bf16.mxu0 0
        %2302 = vmatpush1.bf16.msra.mxu0 0
        %2303 = vmatprep.subr.bf16.mxu0 0
        %2304 = vmatpush1.bf16.msra.mxu0 0
        %2305 = vmatprep.subr.bf16.mxu0 0
        %2306 = vmatpush1.bf16.msra.mxu0 0
        %2307 = vmatprep.subr.bf16.mxu0 0
        %2308 = vmatpush1.bf16.msra.mxu0 0
        %2309 = vmatprep.subr.bf16.mxu0 0
        %2310 = vmatpush1.bf16.msra.mxu0 0
        %2311 = vmatprep.subr.bf16.mxu0 0
        %2312 = vmatpush1.bf16.msra.mxu0 0
        %2313 = vmatprep.subr.bf16.mxu0 0
        %2314 = vmatpush1.bf16.msra.mxu0 0
        %2315 = vmatprep.subr.bf16.mxu0 0
        %2316 = vmatpush1.bf16.msra.mxu0 0
        %2317 = vmatprep.subr.bf16.mxu0 0
        %2318 = vmatpush1.bf16.msra.mxu0 0
        %2319 = vmatprep.subr.bf16.mxu0 0
        %2320 = vmatpush1.bf16.msra.mxu0 0
        %2321 = vmatprep.subr.bf16.mxu0 0
        %2322 = vmatpush1.bf16.msra.mxu0 0
        %2323 = vmatprep.subr.bf16.mxu0 0
        %2324 = vmatpush1.bf16.msra.mxu0 0
        %2325 = vmatprep.subr.bf16.mxu0 0
        %2326 = vmatpush1.bf16.msra.mxu0 0
        %2327 = vmatprep.subr.bf16.mxu0 0
        %2328 = vmatpush1.bf16.msra.mxu0 0
        %2329 = vmatprep.subr.bf16.mxu0 0
        %2330 = vmatpush1.bf16.msra.mxu0 0
        %2331 = vmatprep.mubr.bf16.mxu0 0
        %2332 = vmatmul.mubr.bf16.gmra.mrb[0].mxu0 %v2297
        %v2333 = vpop.f32.mrb[0].mxu0
        %v2334 = vadd.f32 0.0, %v2333
        %v2335 = vpop.f32.mrb[0].mxu0
        %v2336 = vpop.f32.mrb[0].mxu0
        %v2337 = vadd.f32 0.0, %v2336
        %v2338 = vpop.f32.mrb[0].mxu0
        %2339 = vdwg.mxu0
        %2341 = vrot.lane.b32.xlu0 %v1907, 64
        %v2342 = vpop.permute.xlu0 %2341
        %v2345 = vsel %vm2003, %v2291, 0
        %2347 = vmatprep.subr.bf16.mxu0 0
        %2348 = vmatpush1.bf16.msra.mxu0 %v2342
        %2349 = vmatprep.subr.bf16.mxu0 0
        %2350 = vmatpush1.bf16.msra.mxu0 0
        %2351 = vmatprep.subr.bf16.mxu0 0
        %2352 = vmatpush1.bf16.msra.mxu0 0
        %2353 = vmatprep.subr.bf16.mxu0 0
        %2354 = vmatpush1.bf16.msra.mxu0 0
        %2355 = vmatprep.subr.bf16.mxu0 0
        %2356 = vmatpush1.bf16.msra.mxu0 0
        %2357 = vmatprep.subr.bf16.mxu0 0
        %2358 = vmatpush1.bf16.msra.mxu0 0
        %2359 = vmatprep.subr.bf16.mxu0 0
        %2360 = vmatpush1.bf16.msra.mxu0 0
        %2361 = vmatprep.subr.bf16.mxu0 0
        %2362 = vmatpush1.bf16.msra.mxu0 0
        %2363 = vmatprep.subr.bf16.mxu0 0
        %2364 = vmatpush1.bf16.msra.mxu0 0
        %2365 = vmatprep.subr.bf16.mxu0 0
        %2366 = vmatpush1.bf16.msra.mxu0 0
        %2367 = vmatprep.subr.bf16.mxu0 0
        %2368 = vmatpush1.bf16.msra.mxu0 0
        %2369 = vmatprep.subr.bf16.mxu0 0
        %2370 = vmatpush1.bf16.msra.mxu0 0
        %2371 = vmatprep.subr.bf16.mxu0 0
        %2372 = vmatpush1.bf16.msra.mxu0 0
        %2373 = vmatprep.subr.bf16.mxu0 0
        %2374 = vmatpush1.bf16.msra.mxu0 0
        %2375 = vmatprep.subr.bf16.mxu0 0
        %2376 = vmatpush1.bf16.msra.mxu0 0
        %2377 = vmatprep.subr.bf16.mxu0 0
        %2378 = vmatpush1.bf16.msra.mxu0 0
        %2379 = vmatprep.mubr.bf16.mxu0 0
        %2380 = vmatmul.mubr.bf16.gmra.mrb[0].mxu0 %v2345
        %v2381 = vpop.f32.mrb[0].mxu0
        %v2382 = vadd.f32 0.0, %v2381
        %v2383 = vpop.f32.mrb[0].mxu0
        %v2384 = vpop.f32.mrb[0].mxu0
        %v2385 = vadd.f32 0.0, %v2384
        %v2386 = vpop.f32.mrb[0].mxu0
        %2387 = vdwg.mxu0
        %v2388 = vpack.c.bf16 %v2337, %v2334
        %v2389 = vpack.c.bf16 %v2385, %v2382
        %v2422 = vunpack.c.l.b16 %v1870
        %v2423 = vunpack.c.l.b16 %v1871
        %v2424 = vunpack.c.l.b16 %v1872
        %v2425 = vunpack.c.l.b16 %v1873
        %v2426 = vunpack.c.l.b16 %v1874
        %v2427 = vunpack.c.l.b16 %v1875
        %v2428 = vunpack.c.l.b16 %v1876
        %v2429 = vunpack.c.l.b16 %v1877
        %v2430 = vunpack.c.l.b16 %v1878
        %v2431 = vunpack.c.l.b16 %v1879
        %v2432 = vunpack.c.l.b16 %v1880
        %v2433 = vunpack.c.l.b16 %v1881
        %v2434 = vunpack.c.l.b16 %v1882
        %v2435 = vunpack.c.l.b16 %v1883
        %v2436 = vunpack.c.l.b16 %v1884
        %v2437 = vunpack.c.l.b16 %v1885
        %v2438 = vunpack.c.l.b16 %v1886
        %v2439 = vunpack.c.l.b16 %v1887
        %v2440 = vunpack.c.l.b16 %v1888
        %v2441 = vunpack.c.l.b16 %v1889
        %v2442 = vunpack.c.l.b16 %v1890
        %v2443 = vunpack.c.l.b16 %v1891
        %v2444 = vunpack.c.l.b16 %v1892
        %v2445 = vunpack.c.l.b16 %v1893
        %v2446 = vunpack.c.l.b16 %v1894
        %v2447 = vunpack.c.l.b16 %v1895
        %v2448 = vunpack.c.l.b16 %v1896
        %v2449 = vunpack.c.l.b16 %v1897
        %v2450 = vunpack.c.l.b16 %v1898
        %v2451 = vunpack.c.l.b16 %v1899
        %v2452 = vunpack.c.l.b16 %v1900
        %v2453 = vunpack.c.l.b16 %v1901
        %v2454 = vpack.c.b16 %v2423, %v2422
        %v2455 = vpack.c.b16 %v2425, %v2424
        %v2456 = vpack.c.b16 %v2427, %v2426
        %v2457 = vpack.c.b16 %v2429, %v2428
        %v2458 = vpack.c.b16 %v2431, %v2430
        %v2459 = vpack.c.b16 %v2433, %v2432
        %v2460 = vpack.c.b16 %v2435, %v2434
        %v2461 = vpack.c.b16 %v2437, %v2436
        %v2462 = vpack.c.b16 %v2439, %v2438
        %v2463 = vpack.c.b16 %v2441, %v2440
        %v2464 = vpack.c.b16 %v2443, %v2442
        %v2465 = vpack.c.b16 %v2445, %v2444
        %v2466 = vpack.c.b16 %v2447, %v2446
        %v2467 = vpack.c.b16 %v2449, %v2448
        %v2468 = vpack.c.b16 %v2451, %v2450
        %v2469 = vpack.c.b16 %v2453, %v2452
        %2470 = vrot.lane.b32.xlu0 %v2454, 64
        %v2471 = vpop.permute.xlu0 %2470
        %2472 = vrot.lane.b32.xlu0 %v2455, 64
        %v2473 = vpop.permute.xlu0 %2472
        %2474 = vrot.lane.b32.xlu0 %v2456, 64
        %v2475 = vpop.permute.xlu0 %2474
        %2476 = vrot.lane.b32.xlu0 %v2457, 64
        %v2477 = vpop.permute.xlu0 %2476
        %2478 = vrot.lane.b32.xlu0 %v2458, 64
        %v2479 = vpop.permute.xlu0 %2478
        %2480 = vrot.lane.b32.xlu0 %v2459, 64
        %v2481 = vpop.permute.xlu0 %2480
        %2482 = vrot.lane.b32.xlu0 %v2460, 64
        %v2483 = vpop.permute.xlu0 %2482
        %2484 = vrot.lane.b32.xlu0 %v2461, 64
        %v2485 = vpop.permute.xlu0 %2484
        %2486 = vrot.lane.b32.xlu0 %v2462, 64
        %v2487 = vpop.permute.xlu0 %2486
        %2488 = vrot.lane.b32.xlu0 %v2463, 64
        %v2489 = vpop.permute.xlu0 %2488
        %2490 = vrot.lane.b32.xlu0 %v2464, 64
        %v2491 = vpop.permute.xlu0 %2490
        %2492 = vrot.lane.b32.xlu0 %v2465, 64
        %v2493 = vpop.permute.xlu0 %2492
        %2494 = vrot.lane.b32.xlu0 %v2466, 64
        %v2495 = vpop.permute.xlu0 %2494
        %2496 = vrot.lane.b32.xlu0 %v2467, 64
        %v2497 = vpop.permute.xlu0 %2496
        %2498 = vrot.lane.b32.xlu0 %v2468, 64
        %v2499 = vpop.permute.xlu0 %2498
        %2500 = vrot.lane.b32.xlu0 %v2469, 64
        %v2501 = vpop.permute.xlu0 %2500
        %v2503 = vsel %vm1908, %v2388, 0
        %v2506 = vsel %vm1908, %v2389, 0
        %v2509 = vsel %vm1908, %v2471, 0
        %v2512 = vsel %vm1908, %v2473, 0
        %v2515 = vsel %vm1908, %v2475, 0
        %v2518 = vsel %vm1908, %v2477, 0
        %v2521 = vsel %vm1908, %v2479, 0
        %v2524 = vsel %vm1908, %v2481, 0
        %v2527 = vsel %vm1908, %v2483, 0
        %v2530 = vsel %vm1908, %v2485, 0
        %v2533 = vsel %vm1908, %v2487, 0
        %v2536 = vsel %vm1908, %v2489, 0
        %v2539 = vsel %vm1908, %v2491, 0
        %v2542 = vsel %vm1908, %v2493, 0
        %v2545 = vsel %vm1908, %v2495, 0
        %v2548 = vsel %vm1908, %v2497, 0
        %v2551 = vsel %vm1908, %v2499, 0
        %v2554 = vsel %vm1908, %v2501, 0
        %2556 = vmatprep.subr.bf16.mxu0 0
        %2557 = vmatpush1.bf16.xpose.msra.mxu0 %v2509
        %2558 = vmatprep.subr.bf16.mxu0 0
        %2559 = vmatpush1.bf16.xpose.msra.mxu0 %v2512
        %2560 = vmatprep.subr.bf16.mxu0 0
        %2561 = vmatpush1.bf16.xpose.msra.mxu0 %v2515
        %2562 = vmatprep.subr.bf16.mxu0 0
        %2563 = vmatpush1.bf16.xpose.msra.mxu0 %v2518
        %2564 = vmatprep.subr.bf16.mxu0 0
        %2565 = vmatpush1.bf16.xpose.msra.mxu0 %v2521
        %2566 = vmatprep.subr.bf16.mxu0 0
        %2567 = vmatpush1.bf16.xpose.msra.mxu0 %v2524
        %2568 = vmatprep.subr.bf16.mxu0 0
        %2569 = vmatpush1.bf16.xpose.msra.mxu0 %v2527
        %2570 = vmatprep.subr.bf16.mxu0 0
        %2571 = vmatpush1.bf16.xpose.msra.mxu0 %v2530
        %2572 = vmatprep.subr.bf16.mxu0 0
        %2573 = vmatpush1.bf16.xpose.msra.mxu0 %v2533
        %2574 = vmatprep.subr.bf16.mxu0 0
        %2575 = vmatpush1.bf16.xpose.msra.mxu0 %v2536
        %2576 = vmatprep.subr.bf16.mxu0 0
        %2577 = vmatpush1.bf16.xpose.msra.mxu0 %v2539
        %2578 = vmatprep.subr.bf16.mxu0 0
        %2579 = vmatpush1.bf16.xpose.msra.mxu0 %v2542
        %2580 = vmatprep.subr.bf16.mxu0 0
        %2581 = vmatpush1.bf16.xpose.msra.mxu0 %v2545
        %2582 = vmatprep.subr.bf16.mxu0 0
        %2583 = vmatpush1.bf16.xpose.msra.mxu0 %v2548
        %2584 = vmatprep.subr.bf16.mxu0 0
        %2585 = vmatpush1.bf16.xpose.msra.mxu0 %v2551
        %2586 = vmatprep.subr.bf16.mxu0 0
        %2587 = vmatpush1.bf16.xpose.msra.mxu0 %v2554
        %2588 = vmatprep.mubr.bf16.mxu0 0
        %2589 = vmatmul.mubr.bf16.gmra.mrb[0].mxu0 %v2503
        %v2590 = vpop.f32.mrb[0].mxu0
        %v2591 = vadd.f32 0.0, %v2590
        %v2592 = vpop.f32.mrb[0].mxu0
        %v2593 = vadd.f32 0.0, %v2592
        %v2594 = vpop.f32.mrb[0].mxu0
        %v2595 = vadd.f32 0.0, %v2594
        %v2596 = vpop.f32.mrb[0].mxu0
        %v2597 = vadd.f32 0.0, %v2596
        %2598 = vmatprep.mubr.bf16.mxu0 0
        %2599 = vmatmul.mubr.bf16.gmra.mrb[0].mxu0 %v2506
        %v2600 = vpop.f32.mrb[0].mxu0
        %v2601 = vadd.f32 0.0, %v2600
        %v2602 = vpop.f32.mrb[0].mxu0
        %v2603 = vadd.f32 0.0, %v2602
        %v2604 = vpop.f32.mrb[0].mxu0
        %v2605 = vadd.f32 0.0, %v2604
        %v2606 = vpop.f32.mrb[0].mxu0
        %v2607 = vadd.f32 0.0, %v2606
        %2608 = vdwg.mxu0
        %v2610 = vsel %vm1908, %v2138, 0
        %v2613 = vsel %vm1908, %v2139, 0
        %v2616 = vsel %vm1908, %v2454, 0
        %v2619 = vsel %vm1908, %v2455, 0
        %v2622 = vsel %vm1908, %v2456, 0
        %v2625 = vsel %vm1908, %v2457, 0
        %v2628 = vsel %vm1908, %v2458, 0
        %v2631 = vsel %vm1908, %v2459, 0
        %v2634 = vsel %vm1908, %v2460, 0
        %v2637 = vsel %vm1908, %v2461, 0
        %v2640 = vsel %vm1908, %v2462, 0
        %v2643 = vsel %vm1908, %v2463, 0
        %v2646 = vsel %vm1908, %v2464, 0
        %v2649 = vsel %vm1908, %v2465, 0
        %v2652 = vsel %vm1908, %v2466, 0
        %v2655 = vsel %vm1908, %v2467, 0
        %v2658 = vsel %vm1908, %v2468, 0
        %v2661 = vsel %vm1908, %v2469, 0
        %2663 = vmatprep.subr.bf16.mxu0 0
        %2664 = vmatpush1.bf16.xpose.msra.mxu0 %v2616
        %2665 = vmatprep.subr.bf16.mxu0 0
        %2666 = vmatpush1.bf16.xpose.msra.mxu0 %v2619
        %2667 = vmatprep.subr.bf16.mxu0 0
        %2668 = vmatpush1.bf16.xpose.msra.mxu0 %v2622
        %2669 = vmatprep.subr.bf16.mxu0 0
        %2670 = vmatpush1.bf16.xpose.msra.mxu0 %v2625
        %2671 = vmatprep.subr.bf16.mxu0 0
        %2672 = vmatpush1.bf16.xpose.msra.mxu0 %v2628
        %2673 = vmatprep.subr.bf16.mxu0 0
        %2674 = vmatpush1.bf16.xpose.msra.mxu0 %v2631
        %2675 = vmatprep.subr.bf16.mxu0 0
        %2676 = vmatpush1.bf16.xpose.msra.mxu0 %v2634
        %2677 = vmatprep.subr.bf16.mxu0 0
        %2678 = vmatpush1.bf16.xpose.msra.mxu0 %v2637
        %2679 = vmatprep.subr.bf16.mxu0 0
        %2680 = vmatpush1.bf16.xpose.msra.mxu0 %v2640
        %2681 = vmatprep.subr.bf16.mxu0 0
        %2682 = vmatpush1.bf16.xpose.msra.mxu0 %v2643
        %2683 = vmatprep.subr.bf16.mxu0 0
        %2684 = vmatpush1.bf16.xpose.msra.mxu0 %v2646
        %2685 = vmatprep.subr.bf16.mxu0 0
        %2686 = vmatpush1.bf16.xpose.msra.mxu0 %v2649
        %2687 = vmatprep.subr.bf16.mxu0 0
        %2688 = vmatpush1.bf16.xpose.msra.mxu0 %v2652
        %2689 = vmatprep.subr.bf16.mxu0 0
        %2690 = vmatpush1.bf16.xpose.msra.mxu0 %v2655
        %2691 = vmatprep.subr.bf16.mxu0 0
        %2692 = vmatpush1.bf16.xpose.msra.mxu0 %v2658
        %2693 = vmatprep.subr.bf16.mxu0 0
        %2694 = vmatpush1.bf16.xpose.msra.mxu0 %v2661
        %2695 = vmatprep.mubr.bf16.mxu0 0
        %2696 = vmatmul.mubr.bf16.gmra.mrb[0].mxu0 %v2610
        %v2697 = vpop.f32.mrb[0].mxu0
        %v2698 = vadd.f32 %v2591, %v2697
        %v2699 = vpop.f32.mrb[0].mxu0
        %v2700 = vadd.f32 %v2593, %v2699
        %v2701 = vpop.f32.mrb[0].mxu0
        %v2702 = vadd.f32 %v2595, %v2701
        %v2703 = vpop.f32.mrb[0].mxu0
        %v2704 = vadd.f32 %v2597, %v2703
        %2705 = vmatprep.mubr.bf16.mxu0 0
        %2706 = vmatmul.mubr.bf16.gmra.mrb[0].mxu0 %v2613
        %v2707 = vpop.f32.mrb[0].mxu0
        %v2708 = vadd.f32 %v2601, %v2707
        %v2709 = vpop.f32.mrb[0].mxu0
        %v2710 = vadd.f32 %v2603, %v2709
        %v2711 = vpop.f32.mrb[0].mxu0
        %v2712 = vadd.f32 %v2605, %v2711
        %v2713 = vpop.f32.mrb[0].mxu0
        %v2714 = vadd.f32 %v2607, %v2713
        %2715 = vdwg.mxu0
        %v2716 = vpack.c.bf16 %v1865, %v1863
        %v2717 = vpack.c.bf16 %v1869, %v1867
        %v2718 = vpack.c.bf16 %v1797, %v1793
        %v2719 = vpack.c.bf16 %v1807, %v1803
        %v2720 = vpack.c.bf16 %v1850, %v1846
        %v2721 = vpack.c.bf16 %v1860, %v1856
        %v2723 = vsel %vm1908, %v2716, 0
        %v2726 = vsel %vm1908, %v2718, 0
        %2728 = vmatprep.subr.bf16.mxu0 0
        %2729 = vmatpush1.bf16.xpose.msra.mxu0 %v2726
        %2730 = vmatprep.subr.bf16.mxu0 0
        %2731 = vmatpush1.bf16.xpose.msra.mxu0 0
        %2732 = vmatprep.subr.bf16.mxu0 0
        %2733 = vmatpush1.bf16.xpose.msra.mxu0 0
        %2734 = vmatprep.subr.bf16.mxu0 0
        %2735 = vmatpush1.bf16.xpose.msra.mxu0 0
        %2736 = vmatprep.subr.bf16.mxu0 0
        %2737 = vmatpush1.bf16.xpose.msra.mxu0 0
        %2738 = vmatprep.subr.bf16.mxu0 0
        %2739 = vmatpush1.bf16.xpose.msra.mxu0 0
        %2740 = vmatprep.subr.bf16.mxu0 0
        %2741 = vmatpush1.bf16.xpose.msra.mxu0 0
        %2742 = vmatprep.subr.bf16.mxu0 0
        %2743 = vmatpush1.bf16.xpose.msra.mxu0 0
        %2744 = vmatprep.subr.bf16.mxu0 0
        %2745 = vmatpush1.bf16.xpose.msra.mxu0 0
        %2746 = vmatprep.subr.bf16.mxu0 0
        %2747 = vmatpush1.bf16.xpose.msra.mxu0 0
        %2748 = vmatprep.subr.bf16.mxu0 0
        %2749 = vmatpush1.bf16.xpose.msra.mxu0 0
        %2750 = vmatprep.subr.bf16.mxu0 0
        %2751 = vmatpush1.bf16.xpose.msra.mxu0 0
        %2752 = vmatprep.subr.bf16.mxu0 0
        %2753 = vmatpush1.bf16.xpose.msra.mxu0 0
        %2754 = vmatprep.subr.bf16.mxu0 0
        %2755 = vmatpush1.bf16.xpose.msra.mxu0 0
        %2756 = vmatprep.subr.bf16.mxu0 0
        %2757 = vmatpush1.bf16.xpose.msra.mxu0 0
        %2758 = vmatprep.subr.bf16.mxu0 0
        %2759 = vmatpush1.bf16.xpose.msra.mxu0 0
        %2760 = vmatprep.mubr.bf16.mxu0 0
        %2761 = vmatmul.mubr.bf16.gmra.mrb[0].mxu0 %v2723
        %v2762 = vpop.f32.mrb[0].mxu0
        %v2763 = vadd.f32 0.0, %v2762
        %v2764 = vpop.f32.mrb[0].mxu0
        %v2765 = vpop.f32.mrb[0].mxu0
        %v2766 = vadd.f32 0.0, %v2765
        %v2767 = vpop.f32.mrb[0].mxu0
        %2768 = vdwg.mxu0
        %v2770 = vsel %vm1908, %v2717, 0
        %v2773 = vsel %vm1908, %v2719, 0
        %2775 = vmatprep.subr.bf16.mxu0 0
        %2776 = vmatpush1.bf16.xpose.msra.mxu0 %v2773
        %2777 = vmatprep.subr.bf16.mxu0 0
        %2778 = vmatpush1.bf16.xpose.msra.mxu0 0
        %2779 = vmatprep.subr.bf16.mxu0 0
        %2780 = vmatpush1.bf16.xpose.msra.mxu0 0
        %2781 = vmatprep.subr.bf16.mxu0 0
        %2782 = vmatpush1.bf16.xpose.msra.mxu0 0
        %2783 = vmatprep.subr.bf16.mxu0 0
        %2784 = vmatpush1.bf16.xpose.msra.mxu0 0
        %2785 = vmatprep.subr.bf16.mxu0 0
        %2786 = vmatpush1.bf16.xpose.msra.mxu0 0
        %2787 = vmatprep.subr.bf16.mxu0 0
        %2788 = vmatpush1.bf16.xpose.msra.mxu0 0
        %2789 = vmatprep.subr.bf16.mxu0 0
        %2790 = vmatpush1.bf16.xpose.msra.mxu0 0
        %2791 = vmatprep.subr.bf16.mxu0 0
        %2792 = vmatpush1.bf16.xpose.msra.mxu0 0
        %2793 = vmatprep.subr.bf16.mxu0 0
        %2794 = vmatpush1.bf16.xpose.msra.mxu0 0
        %2795 = vmatprep.subr.bf16.mxu0 0
        %2796 = vmatpush1.bf16.xpose.msra.mxu0 0
        %2797 = vmatprep.subr.bf16.mxu0 0
        %2798 = vmatpush1.bf16.xpose.msra.mxu0 0
        %2799 = vmatprep.subr.bf16.mxu0 0
        %2800 = vmatpush1.bf16.xpose.msra.mxu0 0
        %2801 = vmatprep.subr.bf16.mxu0 0
        %2802 = vmatpush1.bf16.xpose.msra.mxu0 0
        %2803 = vmatprep.subr.bf16.mxu0 0
        %2804 = vmatpush1.bf16.xpose.msra.mxu0 0
        %2805 = vmatprep.subr.bf16.mxu0 0
        %2806 = vmatpush1.bf16.xpose.msra.mxu0 0
        %2807 = vmatprep.mubr.bf16.mxu0 0
        %2808 = vmatmul.mubr.bf16.gmra.mrb[0].mxu0 %v2770
        %v2809 = vpop.f32.mrb[0].mxu0
        %v2810 = vadd.f32 0.0, %v2809
        %v2811 = vpop.f32.mrb[0].mxu0
        %v2812 = vpop.f32.mrb[0].mxu0
        %v2813 = vadd.f32 0.0, %v2812
        %v2814 = vpop.f32.mrb[0].mxu0
        %2815 = vdwg.mxu0
        %v2816 = vsel %vm2003, %v2763, -inf
        %2817 = vmax.xlane.f32.xlu0 %v2816
        %v2818 = vpop.xlane.xlu0 %2817
        %v2819 = vsel %vm2003, %v2766, -inf
        %2820 = vmax.xlane.f32.xlu0 %v2819
        %v2821 = vpop.xlane.xlu0 %2820
        %v2822 = vsel %vm2003, %v2810, -inf
        %2823 = vmax.xlane.f32.xlu0 %v2822
        %v2824 = vpop.xlane.xlu0 %2823
        %v2825 = vsel %vm2003, %v2813, -inf
        %2826 = vmax.xlane.f32.xlu0 %v2825
        %v2827 = vpop.xlane.xlu0 %2826
        %v2828 = vsub.f32 %v2763, %v2818
        %v2829 = vsub.f32 %v2766, %v2821
        %v2830 = vsub.f32 %v2810, %v2824
        %v2831 = vsub.f32 %v2813, %v2827
        %v2832 = vmul.f32 %v2828, 1.442695
        %v2833 = vpow.pop %v2832
        %v2834 = vmul.f32 %v2829, 1.442695
        %v2835 = vpow.pop %v2834
        %v2836 = vmul.f32 %v2830, 1.442695
        %v2837 = vpow.pop %v2836
        %v2838 = vmul.f32 %v2831, 1.442695
        %v2839 = vpow.pop %v2838
        %v2840 = vsel %vm2003, %v2833, 0.0
        %2841 = vadd.xlane.f32.xlu0 %v2840
        %v2842 = vpop.xlane.xlu0 %2841
        %v2843 = vsel %vm2003, %v2835, 0.0
        %2844 = vadd.xlane.f32.xlu0 %v2843
        %v2845 = vpop.xlane.xlu0 %2844
        %v2846 = vsel %vm2003, %v2837, 0.0
        %2847 = vadd.xlane.f32.xlu0 %v2846
        %v2848 = vpop.xlane.xlu0 %2847
        %v2849 = vsel %vm2003, %v2839, 0.0
        %2850 = vadd.xlane.f32.xlu0 %v2849
        %v2851 = vpop.xlane.xlu0 %2850
        %v2852 = vrcp.pop %v2842
        %v2853 = vrcp.pop %v2845
        %v2854 = vrcp.pop %v2848
        %v2855 = vrcp.pop %v2851
        %v2856 = vmul.f32 %v2833, %v2852
        %v2857 = vmul.f32 %v2835, %v2853
        %v2858 = vmul.f32 %v2837, %v2854
        %v2859 = vmul.f32 %v2839, %v2855
        %v2860 = vpack.c.bf16 %v2857, %v2856
        %v2861 = vpack.c.bf16 %v2859, %v2858
        %v2863 = vsel %vm2003, %v2860, 0
        %2865 = vmatprep.subr.bf16.mxu0 0
        %2866 = vmatpush1.bf16.msra.mxu0 %v2720
        %2867 = vmatprep.subr.bf16.mxu0 0
        %2868 = vmatpush1.bf16.msra.mxu0 0
        %2869 = vmatprep.subr.bf16.mxu0 0
        %2870 = vmatpush1.bf16.msra.mxu0 0
        %2871 = vmatprep.subr.bf16.mxu0 0
        %2872 = vmatpush1.bf16.msra.mxu0 0
        %2873 = vmatprep.subr.bf16.mxu0 0
        %2874 = vmatpush1.bf16.msra.mxu0 0
        %2875 = vmatprep.subr.bf16.mxu0 0
        %2876 = vmatpush1.bf16.msra.mxu0 0
        %2877 = vmatprep.subr.bf16.mxu0 0
        %2878 = vmatpush1.bf16.msra.mxu0 0
        %2879 = vmatprep.subr.bf16.mxu0 0
        %2880 = vmatpush1.bf16.msra.mxu0 0
        %2881 = vmatprep.subr.bf16.mxu0 0
        %2882 = vmatpush1.bf16.msra.mxu0 0
        %2883 = vmatprep.subr.bf16.mxu0 0
        %2884 = vmatpush1.bf16.msra.mxu0 0
        %2885 = vmatprep.subr.bf16.mxu0 0
        %2886 = vmatpush1.bf16.msra.mxu0 0
        %2887 = vmatprep.subr.bf16.mxu0 0
        %2888 = vmatpush1.bf16.msra.mxu0 0
        %2889 = vmatprep.subr.bf16.mxu0 0
        %2890 = vmatpush1.bf16.msra.mxu0 0
        %2891 = vmatprep.subr.bf16.mxu0 0
        %2892 = vmatpush1.bf16.msra.mxu0 0
        %2893 = vmatprep.subr.bf16.mxu0 0
        %2894 = vmatpush1.bf16.msra.mxu0 0
        %2895 = vmatprep.subr.bf16.mxu0 0
        %2896 = vmatpush1.bf16.msra.mxu0 0
        %2897 = vmatprep.mubr.bf16.mxu0 0
        %2898 = vmatmul.mubr.bf16.gmra.mrb[0].mxu0 %v2863
        %v2899 = vpop.f32.mrb[0].mxu0
        %v2900 = vadd.f32 0.0, %v2899
        %v2901 = vpop.f32.mrb[0].mxu0
        %v2902 = vpop.f32.mrb[0].mxu0
        %v2903 = vadd.f32 0.0, %v2902
        %v2904 = vpop.f32.mrb[0].mxu0
        %2905 = vdwg.mxu0
        %v2907 = vsel %vm2003, %v2861, 0
        %2909 = vmatprep.subr.bf16.mxu0 0
        %2910 = vmatpush1.bf16.msra.mxu0 %v2721
        %2911 = vmatprep.subr.bf16.mxu0 0
        %2912 = vmatpush1.bf16.msra.mxu0 0
        %2913 = vmatprep.subr.bf16.mxu0 0
        %2914 = vmatpush1.bf16.msra.mxu0 0
        %2915 = vmatprep.subr.bf16.mxu0 0
        %2916 = vmatpush1.bf16.msra.mxu0 0
        %2917 = vmatprep.subr.bf16.mxu0 0
        %2918 = vmatpush1.bf16.msra.mxu0 0
        %2919 = vmatprep.subr.bf16.mxu0 0
        %2920 = vmatpush1.bf16.msra.mxu0 0
        %2921 = vmatprep.subr.bf16.mxu0 0
        %2922 = vmatpush1.bf16.msra.mxu0 0
        %2923 = vmatprep.subr.bf16.mxu0 0
        %2924 = vmatpush1.bf16.msra.mxu0 0
        %2925 = vmatprep.subr.bf16.mxu0 0
        %2926 = vmatpush1.bf16.msra.mxu0 0
        %2927 = vmatprep.subr.bf16.mxu0 0
        %2928 = vmatpush1.bf16.msra.mxu0 0
        %2929 = vmatprep.subr.bf16.mxu0 0
        %2930 = vmatpush1.bf16.msra.mxu0 0
        %2931 = vmatprep.subr.bf16.mxu0 0
        %2932 = vmatpush1.bf16.msra.mxu0 0
        %2933 = vmatprep.subr.bf16.mxu0 0
        %2934 = vmatpush1.bf16.msra.mxu0 0
        %2935 = vmatprep.subr.bf16.mxu0 0
        %2936 = vmatpush1.bf16.msra.mxu0 0
        %2937 = vmatprep.subr.bf16.mxu0 0
        %2938 = vmatpush1.bf16.msra.mxu0 0
        %2939 = vmatprep.subr.bf16.mxu0 0
        %2940 = vmatpush1.bf16.msra.mxu0 0
        %2941 = vmatprep.mubr.bf16.mxu0 0
        %2942 = vmatmul.mubr.bf16.gmra.mrb[0].mxu0 %v2907
        %v2943 = vpop.f32.mrb[0].mxu0
        %v2944 = vadd.f32 0.0, %v2943
        %v2945 = vpop.f32.mrb[0].mxu0
        %v2946 = vpop.f32.mrb[0].mxu0
        %v2947 = vadd.f32 0.0, %v2946
        %v2948 = vpop.f32.mrb[0].mxu0
        %2949 = vdwg.mxu0
        %v2950 = vpack.c.bf16 %v2903, %v2900
        %v2951 = vpack.c.bf16 %v2947, %v2944
        %v2952 = vunpack.c.h.b16 %v1870
        %v2953 = vunpack.c.h.b16 %v1871
        %v2954 = vunpack.c.h.b16 %v1872
        %v2955 = vunpack.c.h.b16 %v1873
        %v2956 = vunpack.c.h.b16 %v1874
        %v2957 = vunpack.c.h.b16 %v1875
        %v2958 = vunpack.c.h.b16 %v1876
        %v2959 = vunpack.c.h.b16 %v1877
        %v2960 = vunpack.c.h.b16 %v1878
        %v2961 = vunpack.c.h.b16 %v1879
        %v2962 = vunpack.c.h.b16 %v1880
        %v2963 = vunpack.c.h.b16 %v1881
        %v2964 = vunpack.c.h.b16 %v1882
        %v2965 = vunpack.c.h.b16 %v1883
        %v2966 = vunpack.c.h.b16 %v1884
        %v2967 = vunpack.c.h.b16 %v1885
        %v2968 = vunpack.c.h.b16 %v1886
        %v2969 = vunpack.c.h.b16 %v1887
        %v2970 = vunpack.c.h.b16 %v1888
        %v2971 = vunpack.c.h.b16 %v1889
        %v2972 = vunpack.c.h.b16 %v1890
        %v2973 = vunpack.c.h.b16 %v1891
        %v2974 = vunpack.c.h.b16 %v1892
        %v2975 = vunpack.c.h.b16 %v1893
        %v2976 = vunpack.c.h.b16 %v1894
        %v2977 = vunpack.c.h.b16 %v1895
        %v2978 = vunpack.c.h.b16 %v1896
        %v2979 = vunpack.c.h.b16 %v1897
        %v2980 = vunpack.c.h.b16 %v1898
        %v2981 = vunpack.c.h.b16 %v1899
        %v2982 = vunpack.c.h.b16 %v1900
        %v2983 = vunpack.c.h.b16 %v1901
        %v2984 = vpack.c.b16 %v2953, %v2952
        %v2985 = vpack.c.b16 %v2955, %v2954
        %v2986 = vpack.c.b16 %v2957, %v2956
        %v2987 = vpack.c.b16 %v2959, %v2958
        %v2988 = vpack.c.b16 %v2961, %v2960
        %v2989 = vpack.c.b16 %v2963, %v2962
        %v2990 = vpack.c.b16 %v2965, %v2964
        %v2991 = vpack.c.b16 %v2967, %v2966
        %v2992 = vpack.c.b16 %v2969, %v2968
        %v2993 = vpack.c.b16 %v2971, %v2970
        %v2994 = vpack.c.b16 %v2973, %v2972
        %v2995 = vpack.c.b16 %v2975, %v2974
        %v2996 = vpack.c.b16 %v2977, %v2976
        %v2997 = vpack.c.b16 %v2979, %v2978
        %v2998 = vpack.c.b16 %v2981, %v2980
        %v2999 = vpack.c.b16 %v2983, %v2982
        %v3001 = vsel %vm1908, %v2950, 0
        %v3004 = vsel %vm1908, %v2951, 0
        %v3007 = vsel %vm1908, %v2984, 0
        %v3010 = vsel %vm1908, %v2985, 0
        %v3013 = vsel %vm1908, %v2986, 0
        %v3016 = vsel %vm1908, %v2987, 0
        %v3019 = vsel %vm1908, %v2988, 0
        %v3022 = vsel %vm1908, %v2989, 0
        %v3025 = vsel %vm1908, %v2990, 0
        %v3028 = vsel %vm1908, %v2991, 0
        %v3031 = vsel %vm1908, %v2992, 0
        %v3034 = vsel %vm1908, %v2993, 0
        %v3037 = vsel %vm1908, %v2994, 0
        %v3040 = vsel %vm1908, %v2995, 0
        %v3043 = vsel %vm1908, %v2996, 0
        %v3046 = vsel %vm1908, %v2997, 0
        %v3049 = vsel %vm1908, %v2998, 0
        %v3052 = vsel %vm1908, %v2999, 0
        %3054 = vmatprep.subr.bf16.mxu0 0
        %3055 = vmatpush1.bf16.xpose.msra.mxu0 %v3007
        %3056 = vmatprep.subr.bf16.mxu0 0
        %3057 = vmatpush1.bf16.xpose.msra.mxu0 %v3010
        %3058 = vmatprep.subr.bf16.mxu0 0
        %3059 = vmatpush1.bf16.xpose.msra.mxu0 %v3013
        %3060 = vmatprep.subr.bf16.mxu0 0
        %3061 = vmatpush1.bf16.xpose.msra.mxu0 %v3016
        %3062 = vmatprep.subr.bf16.mxu0 0
        %3063 = vmatpush1.bf16.xpose.msra.mxu0 %v3019
        %3064 = vmatprep.subr.bf16.mxu0 0
        %3065 = vmatpush1.bf16.xpose.msra.mxu0 %v3022
        %3066 = vmatprep.subr.bf16.mxu0 0
        %3067 = vmatpush1.bf16.xpose.msra.mxu0 %v3025
        %3068 = vmatprep.subr.bf16.mxu0 0
        %3069 = vmatpush1.bf16.xpose.msra.mxu0 %v3028
        %3070 = vmatprep.subr.bf16.mxu0 0
        %3071 = vmatpush1.bf16.xpose.msra.mxu0 %v3031
        %3072 = vmatprep.subr.bf16.mxu0 0
        %3073 = vmatpush1.bf16.xpose.msra.mxu0 %v3034
        %3074 = vmatprep.subr.bf16.mxu0 0
        %3075 = vmatpush1.bf16.xpose.msra.mxu0 %v3037
        %3076 = vmatprep.subr.bf16.mxu0 0
        %3077 = vmatpush1.bf16.xpose.msra.mxu0 %v3040
        %3078 = vmatprep.subr.bf16.mxu0 0
        %3079 = vmatpush1.bf16.xpose.msra.mxu0 %v3043
        %3080 = vmatprep.subr.bf16.mxu0 0
        %3081 = vmatpush1.bf16.xpose.msra.mxu0 %v3046
        %3082 = vmatprep.subr.bf16.mxu0 0
        %3083 = vmatpush1.bf16.xpose.msra.mxu0 %v3049
        %3084 = vmatprep.subr.bf16.mxu0 0
        %3085 = vmatpush1.bf16.xpose.msra.mxu0 %v3052
        %3086 = vmatprep.mubr.bf16.mxu0 0
        %3087 = vmatmul.mubr.bf16.gmra.mrb[0].mxu0 %v3001
        %v3088 = vpop.f32.mrb[0].mxu0
        %v3089 = vadd.f32 0.0, %v3088
        %v3090 = vpop.f32.mrb[0].mxu0
        %v3091 = vadd.f32 0.0, %v3090
        %v3092 = vpop.f32.mrb[0].mxu0
        %v3093 = vadd.f32 0.0, %v3092
        %v3094 = vpop.f32.mrb[0].mxu0
        %v3095 = vadd.f32 0.0, %v3094
        %3096 = vmatprep.mubr.bf16.mxu0 0
        %3097 = vmatmul.mubr.bf16.gmra.mrb[0].mxu0 %v3004
        %v3098 = vpop.f32.mrb[0].mxu0
        %v3099 = vadd.f32 0.0, %v3098
        %v3100 = vpop.f32.mrb[0].mxu0
        %v3101 = vadd.f32 0.0, %v3100
        %v3102 = vpop.f32.mrb[0].mxu0
        %v3103 = vadd.f32 0.0, %v3102
        %v3104 = vpop.f32.mrb[0].mxu0
        %v3105 = vadd.f32 0.0, %v3104
        %3106 = vdwg.mxu0
        %v3107 = vadd.f32 %v2698, %v3089
        %v3108 = vadd.f32 %v2700, %v3091
        %v3109 = vadd.f32 %v2702, %v3093
        %v3110 = vadd.f32 %v2704, %v3095
        %v3111 = vadd.f32 %v2708, %v3099
        %v3112 = vadd.f32 %v2710, %v3101
        %v3113 = vadd.f32 %v2712, %v3103
        %v3114 = vadd.f32 %v2714, %v3105
        %3116 = vrot.lane.b32.xlu0 %v2716, 64
        %v3117 = vpop.permute.xlu0 %3116
        %3119 = vrot.lane.b32.xlu0 %v2718, 64
        %v3120 = vpop.permute.xlu0 %3119
        %v3122 = vsel %vm1908, %v3117, 0
        %v3125 = vsel %vm1908, %v3120, 0
        %3127 = vmatprep.subr.bf16.mxu0 0
        %3128 = vmatpush1.bf16.xpose.msra.mxu0 %v3125
        %3129 = vmatprep.subr.bf16.mxu0 0
        %3130 = vmatpush1.bf16.xpose.msra.mxu0 0
        %3131 = vmatprep.subr.bf16.mxu0 0
        %3132 = vmatpush1.bf16.xpose.msra.mxu0 0
        %3133 = vmatprep.subr.bf16.mxu0 0
        %3134 = vmatpush1.bf16.xpose.msra.mxu0 0
        %3135 = vmatprep.subr.bf16.mxu0 0
        %3136 = vmatpush1.bf16.xpose.msra.mxu0 0
        %3137 = vmatprep.subr.bf16.mxu0 0
        %3138 = vmatpush1.bf16.xpose.msra.mxu0 0
        %3139 = vmatprep.subr.bf16.mxu0 0
        %3140 = vmatpush1.bf16.xpose.msra.mxu0 0
        %3141 = vmatprep.subr.bf16.mxu0 0
        %3142 = vmatpush1.bf16.xpose.msra.mxu0 0
        %3143 = vmatprep.subr.bf16.mxu0 0
        %3144 = vmatpush1.bf16.xpose.msra.mxu0 0
        %3145 = vmatprep.subr.bf16.mxu0 0
        %3146 = vmatpush1.bf16.xpose.msra.mxu0 0
        %3147 = vmatprep.subr.bf16.mxu0 0
        %3148 = vmatpush1.bf16.xpose.msra.mxu0 0
        %3149 = vmatprep.subr.bf16.mxu0 0
        %3150 = vmatpush1.bf16.xpose.msra.mxu0 0
        %3151 = vmatprep.subr.bf16.mxu0 0
        %3152 = vmatpush1.bf16.xpose.msra.mxu0 0
        %3153 = vmatprep.subr.bf16.mxu0 0
        %3154 = vmatpush1.bf16.xpose.msra.mxu0 0
        %3155 = vmatprep.subr.bf16.mxu0 0
        %3156 = vmatpush1.bf16.xpose.msra.mxu0 0
        %3157 = vmatprep.subr.bf16.mxu0 0
        %3158 = vmatpush1.bf16.xpose.msra.mxu0 0
        %3159 = vmatprep.mubr.bf16.mxu0 0
        %3160 = vmatmul.mubr.bf16.gmra.mrb[0].mxu0 %v3122
        %v3161 = vpop.f32.mrb[0].mxu0
        %v3162 = vadd.f32 0.0, %v3161
        %v3163 = vpop.f32.mrb[0].mxu0
        %v3164 = vpop.f32.mrb[0].mxu0
        %v3165 = vadd.f32 0.0, %v3164
        %v3166 = vpop.f32.mrb[0].mxu0
        %3167 = vdwg.mxu0
        %3169 = vrot.lane.b32.xlu0 %v2717, 64
        %v3170 = vpop.permute.xlu0 %3169
        %3172 = vrot.lane.b32.xlu0 %v2719, 64
        %v3173 = vpop.permute.xlu0 %3172
        %v3175 = vsel %vm1908, %v3170, 0
        %v3178 = vsel %vm1908, %v3173, 0
        %3180 = vmatprep.subr.bf16.mxu0 0
        %3181 = vmatpush1.bf16.xpose.msra.mxu0 %v3178
        %3182 = vmatprep.subr.bf16.mxu0 0
        %3183 = vmatpush1.bf16.xpose.msra.mxu0 0
        %3184 = vmatprep.subr.bf16.mxu0 0
        %3185 = vmatpush1.bf16.xpose.msra.mxu0 0
        %3186 = vmatprep.subr.bf16.mxu0 0
        %3187 = vmatpush1.bf16.xpose.msra.mxu0 0
        %3188 = vmatprep.subr.bf16.mxu0 0
        %3189 = vmatpush1.bf16.xpose.msra.mxu0 0
        %3190 = vmatprep.subr.bf16.mxu0 0
        %3191 = vmatpush1.bf16.xpose.msra.mxu0 0
        %3192 = vmatprep.subr.bf16.mxu0 0
        %3193 = vmatpush1.bf16.xpose.msra.mxu0 0
        %3194 = vmatprep.subr.bf16.mxu0 0
        %3195 = vmatpush1.bf16.xpose.msra.mxu0 0
        %3196 = vmatprep.subr.bf16.mxu0 0
        %3197 = vmatpush1.bf16.xpose.msra.mxu0 0
        %3198 = vmatprep.subr.bf16.mxu0 0
        %3199 = vmatpush1.bf16.xpose.msra.mxu0 0
        %3200 = vmatprep.subr.bf16.mxu0 0
        %3201 = vmatpush1.bf16.xpose.msra.mxu0 0
        %3202 = vmatprep.subr.bf16.mxu0 0
        %3203 = vmatpush1.bf16.xpose.msra.mxu0 0
        %3204 = vmatprep.subr.bf16.mxu0 0
        %3205 = vmatpush1.bf16.xpose.msra.mxu0 0
        %3206 = vmatprep.subr.bf16.mxu0 0
        %3207 = vmatpush1.bf16.xpose.msra.mxu0 0
        %3208 = vmatprep.subr.bf16.mxu0 0
        %3209 = vmatpush1.bf16.xpose.msra.mxu0 0
        %3210 = vmatprep.subr.bf16.mxu0 0
        %3211 = vmatpush1.bf16.xpose.msra.mxu0 0
        %3212 = vmatprep.mubr.bf16.mxu0 0
        %3213 = vmatmul.mubr.bf16.gmra.mrb[0].mxu0 %v3175
        %v3214 = vpop.f32.mrb[0].mxu0
        %v3215 = vadd.f32 0.0, %v3214
        %v3216 = vpop.f32.mrb[0].mxu0
        %v3217 = vpop.f32.mrb[0].mxu0
        %v3218 = vadd.f32 0.0, %v3217
        %v3219 = vpop.f32.mrb[0].mxu0
        %3220 = vdwg.mxu0
        %v3221 = vsel %vm2003, %v3162, -inf
        %3222 = vmax.xlane.f32.xlu0 %v3221
        %v3223 = vpop.xlane.xlu0 %3222
        %v3224 = vsel %vm2003, %v3165, -inf
        %3225 = vmax.xlane.f32.xlu0 %v3224
        %v3226 = vpop.xlane.xlu0 %3225
        %v3227 = vsel %vm2003, %v3215, -inf
        %3228 = vmax.xlane.f32.xlu0 %v3227
        %v3229 = vpop.xlane.xlu0 %3228
        %v3230 = vsel %vm2003, %v3218, -inf
        %3231 = vmax.xlane.f32.xlu0 %v3230
        %v3232 = vpop.xlane.xlu0 %3231
        %v3233 = vsub.f32 %v3162, %v3223
        %v3234 = vsub.f32 %v3165, %v3226
        %v3235 = vsub.f32 %v3215, %v3229
        %v3236 = vsub.f32 %v3218, %v3232
        %v3237 = vmul.f32 %v3233, 1.442695
        %v3238 = vpow.pop %v3237
        %v3239 = vmul.f32 %v3234, 1.442695
        %v3240 = vpow.pop %v3239
        %v3241 = vmul.f32 %v3235, 1.442695
        %v3242 = vpow.pop %v3241
        %v3243 = vmul.f32 %v3236, 1.442695
        %v3244 = vpow.pop %v3243
        %v3245 = vsel %vm2003, %v3238, 0.0
        %3246 = vadd.xlane.f32.xlu0 %v3245
        %v3247 = vpop.xlane.xlu0 %3246
        %v3248 = vsel %vm2003, %v3240, 0.0
        %3249 = vadd.xlane.f32.xlu0 %v3248
        %v3250 = vpop.xlane.xlu0 %3249
        %v3251 = vsel %vm2003, %v3242, 0.0
        %3252 = vadd.xlane.f32.xlu0 %v3251
        %v3253 = vpop.xlane.xlu0 %3252
        %v3254 = vsel %vm2003, %v3244, 0.0
        %3255 = vadd.xlane.f32.xlu0 %v3254
        %v3256 = vpop.xlane.xlu0 %3255
        %v3257 = vrcp.pop %v3247
        %v3258 = vrcp.pop %v3250
        %v3259 = vrcp.pop %v3253
        %v3260 = vrcp.pop %v3256
        %v3261 = vmul.f32 %v3238, %v3257
        %v3262 = vmul.f32 %v3240, %v3258
        %v3263 = vmul.f32 %v3242, %v3259
        %v3264 = vmul.f32 %v3244, %v3260
        %v3265 = vpack.c.bf16 %v3262, %v3261
        %v3266 = vpack.c.bf16 %v3264, %v3263
        %3268 = vrot.lane.b32.xlu0 %v2720, 64
        %v3269 = vpop.permute.xlu0 %3268
        %v3272 = vsel %vm2003, %v3265, 0
        %3274 = vmatprep.subr.bf16.mxu0 0
        %3275 = vmatpush1.bf16.msra.mxu0 %v3269
        %3276 = vmatprep.subr.bf16.mxu0 0
        %3277 = vmatpush1.bf16.msra.mxu0 0
        %3278 = vmatprep.subr.bf16.mxu0 0
        %3279 = vmatpush1.bf16.msra.mxu0 0
        %3280 = vmatprep.subr.bf16.mxu0 0
        %3281 = vmatpush1.bf16.msra.mxu0 0
        %3282 = vmatprep.subr.bf16.mxu0 0
        %3283 = vmatpush1.bf16.msra.mxu0 0
        %3284 = vmatprep.subr.bf16.mxu0 0
        %3285 = vmatpush1.bf16.msra.mxu0 0
        %3286 = vmatprep.subr.bf16.mxu0 0
        %3287 = vmatpush1.bf16.msra.mxu0 0
        %3288 = vmatprep.subr.bf16.mxu0 0
        %3289 = vmatpush1.bf16.msra.mxu0 0
        %3290 = vmatprep.subr.bf16.mxu0 0
        %3291 = vmatpush1.bf16.msra.mxu0 0
        %3292 = vmatprep.subr.bf16.mxu0 0
        %3293 = vmatpush1.bf16.msra.mxu0 0
        %3294 = vmatprep.subr.bf16.mxu0 0
        %3295 = vmatpush1.bf16.msra.mxu0 0
        %3296 = vmatprep.subr.bf16.mxu0 0
        %3297 = vmatpush1.bf16.msra.mxu0 0
        %3298 = vmatprep.subr.bf16.mxu0 0
        %3299 = vmatpush1.bf16.msra.mxu0 0
        %3300 = vmatprep.subr.bf16.mxu0 0
        %3301 = vmatpush1.bf16.msra.mxu0 0
        %3302 = vmatprep.subr.bf16.mxu0 0
        %3303 = vmatpush1.bf16.msra.mxu0 0
        %3304 = vmatprep.subr.bf16.mxu0 0
        %3305 = vmatpush1.bf16.msra.mxu0 0
        %3306 = vmatprep.mubr.bf16.mxu0 0
        %3307 = vmatmul.mubr.bf16.gmra.mrb[0].mxu0 %v3272
        %v3308 = vpop.f32.mrb[0].mxu0
        %v3309 = vadd.f32 0.0, %v3308
        %v3310 = vpop.f32.mrb[0].mxu0
        %v3311 = vpop.f32.mrb[0].mxu0
        %v3312 = vadd.f32 0.0, %v3311
        %v3313 = vpop.f32.mrb[0].mxu0
        %3314 = vdwg.mxu0
        %3316 = vrot.lane.b32.xlu0 %v2721, 64
        %v3317 = vpop.permute.xlu0 %3316
        %v3320 = vsel %vm2003, %v3266, 0
        %3322 = vmatprep.subr.bf16.mxu0 0
        %3323 = vmatpush1.bf16.msra.mxu0 %v3317
        %3324 = vmatprep.subr.bf16.mxu0 0
        %3325 = vmatpush1.bf16.msra.mxu0 0
        %3326 = vmatprep.subr.bf16.mxu0 0
        %3327 = vmatpush1.bf16.msra.mxu0 0
        %3328 = vmatprep.subr.bf16.mxu0 0
        %3329 = vmatpush1.bf16.msra.mxu0 0
        %3330 = vmatprep.subr.bf16.mxu0 0
        %3331 = vmatpush1.bf16.msra.mxu0 0
        %3332 = vmatprep.subr.bf16.mxu0 0
        %3333 = vmatpush1.bf16.msra.mxu0 0
        %3334 = vmatprep.subr.bf16.mxu0 0
        %3335 = vmatpush1.bf16.msra.mxu0 0
        %3336 = vmatprep.subr.bf16.mxu0 0
        %3337 = vmatpush1.bf16.msra.mxu0 0
        %3338 = vmatprep.subr.bf16.mxu0 0
        %3339 = vmatpush1.bf16.msra.mxu0 0
        %3340 = vmatprep.subr.bf16.mxu0 0
        %3341 = vmatpush1.bf16.msra.mxu0 0
        %3342 = vmatprep.subr.bf16.mxu0 0
        %3343 = vmatpush1.bf16.msra.mxu0 0
        %3344 = vmatprep.subr.bf16.mxu0 0
        %3345 = vmatpush1.bf16.msra.mxu0 0
        %3346 = vmatprep.subr.bf16.mxu0 0
        %3347 = vmatpush1.bf16.msra.mxu0 0
        %3348 = vmatprep.subr.bf16.mxu0 0
        %3349 = vmatpush1.bf16.msra.mxu0 0
        %3350 = vmatprep.subr.bf16.mxu0 0
        %3351 = vmatpush1.bf16.msra.mxu0 0
        %3352 = vmatprep.subr.bf16.mxu0 0
        %3353 = vmatpush1.bf16.msra.mxu0 0
        %3354 = vmatprep.mubr.bf16.mxu0 0
        %3355 = vmatmul.mubr.bf16.gmra.mrb[0].mxu0 %v3320
        %v3356 = vpop.f32.mrb[0].mxu0
        %v3357 = vadd.f32 0.0, %v3356
        %v3358 = vpop.f32.mrb[0].mxu0
        %v3359 = vpop.f32.mrb[0].mxu0
        %v3360 = vadd.f32 0.0, %v3359
        %v3361 = vpop.f32.mrb[0].mxu0
        %3362 = vdwg.mxu0
        %v3363 = vpack.c.bf16 %v3312, %v3309
        %v3364 = vpack.c.bf16 %v3360, %v3357
        %3365 = vrot.lane.b32.xlu0 %v2984, 64
        %v3366 = vpop.permute.xlu0 %3365
        %3367 = vrot.lane.b32.xlu0 %v2985, 64
        %v3368 = vpop.permute.xlu0 %3367
        %3369 = vrot.lane.b32.xlu0 %v2986, 64
        %v3370 = vpop.permute.xlu0 %3369
        %3371 = vrot.lane.b32.xlu0 %v2987, 64
        %v3372 = vpop.permute.xlu0 %3371
        %3373 = vrot.lane.b32.xlu0 %v2988, 64
        %v3374 = vpop.permute.xlu0 %3373
        %3375 = vrot.lane.b32.xlu0 %v2989, 64
        %v3376 = vpop.permute.xlu0 %3375
        %3377 = vrot.lane.b32.xlu0 %v2990, 64
        %v3378 = vpop.permute.xlu0 %3377
        %3379 = vrot.lane.b32.xlu0 %v2991, 64
        %v3380 = vpop.permute.xlu0 %3379
        %3381 = vrot.lane.b32.xlu0 %v2992, 64
        %v3382 = vpop.permute.xlu0 %3381
        %3383 = vrot.lane.b32.xlu0 %v2993, 64
        %v3384 = vpop.permute.xlu0 %3383
        %3385 = vrot.lane.b32.xlu0 %v2994, 64
        %v3386 = vpop.permute.xlu0 %3385
        %3387 = vrot.lane.b32.xlu0 %v2995, 64
        %v3388 = vpop.permute.xlu0 %3387
        %3389 = vrot.lane.b32.xlu0 %v2996, 64
        %v3390 = vpop.permute.xlu0 %3389
        %3391 = vrot.lane.b32.xlu0 %v2997, 64
        %v3392 = vpop.permute.xlu0 %3391
        %3393 = vrot.lane.b32.xlu0 %v2998, 64
        %v3394 = vpop.permute.xlu0 %3393
        %3395 = vrot.lane.b32.xlu0 %v2999, 64
        %v3396 = vpop.permute.xlu0 %3395
        %v3398 = vsel %vm1908, %v3363, 0
        %v3401 = vsel %vm1908, %v3364, 0
        %v3404 = vsel %vm1908, %v3366, 0
        %v3407 = vsel %vm1908, %v3368, 0
        %v3410 = vsel %vm1908, %v3370, 0
        %v3413 = vsel %vm1908, %v3372, 0
        %v3416 = vsel %vm1908, %v3374, 0
        %v3419 = vsel %vm1908, %v3376, 0
        %v3422 = vsel %vm1908, %v3378, 0
        %v3425 = vsel %vm1908, %v3380, 0
        %v3428 = vsel %vm1908, %v3382, 0
        %v3431 = vsel %vm1908, %v3384, 0
        %v3434 = vsel %vm1908, %v3386, 0
        %v3437 = vsel %vm1908, %v3388, 0
        %v3440 = vsel %vm1908, %v3390, 0
        %v3443 = vsel %vm1908, %v3392, 0
        %v3446 = vsel %vm1908, %v3394, 0
        %v3449 = vsel %vm1908, %v3396, 0
        %3451 = vmatprep.subr.bf16.mxu0 0
        %3452 = vmatpush1.bf16.xpose.msra.mxu0 %v3404
        %3453 = vmatprep.subr.bf16.mxu0 0
        %3454 = vmatpush1.bf16.xpose.msra.mxu0 %v3407
        %3455 = vmatprep.subr.bf16.mxu0 0
        %3456 = vmatpush1.bf16.xpose.msra.mxu0 %v3410
        %3457 = vmatprep.subr.bf16.mxu0 0
        %3458 = vmatpush1.bf16.xpose.msra.mxu0 %v3413
        %3459 = vmatprep.subr.bf16.mxu0 0
        %3460 = vmatpush1.bf16.xpose.msra.mxu0 %v3416
        %3461 = vmatprep.subr.bf16.mxu0 0
        %3462 = vmatpush1.bf16.xpose.msra.mxu0 %v3419
        %3463 = vmatprep.subr.bf16.mxu0 0
        %3464 = vmatpush1.bf16.xpose.msra.mxu0 %v3422
        %3465 = vmatprep.subr.bf16.mxu0 0
        %3466 = vmatpush1.bf16.xpose.msra.mxu0 %v3425
        %3467 = vmatprep.subr.bf16.mxu0 0
        %3468 = vmatpush1.bf16.xpose.msra.mxu0 %v3428
        %3469 = vmatprep.subr.bf16.mxu0 0
        %3470 = vmatpush1.bf16.xpose.msra.mxu0 %v3431
        %3471 = vmatprep.subr.bf16.mxu0 0
        %3472 = vmatpush1.bf16.xpose.msra.mxu0 %v3434
        %3473 = vmatprep.subr.bf16.mxu0 0
        %3474 = vmatpush1.bf16.xpose.msra.mxu0 %v3437
        %3475 = vmatprep.subr.bf16.mxu0 0
        %3476 = vmatpush1.bf16.xpose.msra.mxu0 %v3440
        %3477 = vmatprep.subr.bf16.mxu0 0
        %3478 = vmatpush1.bf16.xpose.msra.mxu0 %v3443
        %3479 = vmatprep.subr.bf16.mxu0 0
        %3480 = vmatpush1.bf16.xpose.msra.mxu0 %v3446
        %3481 = vmatprep.subr.bf16.mxu0 0
        %3482 = vmatpush1.bf16.xpose.msra.mxu0 %v3449
        %3483 = vmatprep.mubr.bf16.mxu0 0
        %3484 = vmatmul.mubr.bf16.gmra.mrb[0].mxu0 %v3398
        %v3485 = vpop.f32.mrb[0].mxu0
        %v3486 = vadd.f32 0.0, %v3485
        %v3487 = vpop.f32.mrb[0].mxu0
        %v3488 = vadd.f32 0.0, %v3487
        %v3489 = vpop.f32.mrb[0].mxu0
        %v3490 = vadd.f32 0.0, %v3489
        %v3491 = vpop.f32.mrb[0].mxu0
        %v3492 = vadd.f32 0.0, %v3491
        %3493 = vmatprep.mubr.bf16.mxu0 0
        %3494 = vmatmul.mubr.bf16.gmra.mrb[0].mxu0 %v3401
        %v3495 = vpop.f32.mrb[0].mxu0
        %v3496 = vadd.f32 0.0, %v3495
        %v3497 = vpop.f32.mrb[0].mxu0
        %v3498 = vadd.f32 0.0, %v3497
        %v3499 = vpop.f32.mrb[0].mxu0
        %v3500 = vadd.f32 0.0, %v3499
        %v3501 = vpop.f32.mrb[0].mxu0
        %v3502 = vadd.f32 0.0, %v3501
        %3503 = vdwg.mxu0
        %v3504 = vadd.f32 %v3107, %v3486
        %v3505 = vadd.f32 %v3108, %v3488
        %v3506 = vadd.f32 %v3109, %v3490
        %v3507 = vadd.f32 %v3110, %v3492
        %v3508 = vadd.f32 %v3111, %v3496
        %v3509 = vadd.f32 %v3112, %v3498
        %v3510 = vadd.f32 %v3113, %v3500
        %v3511 = vadd.f32 %v3114, %v3502
        %v3512 = vld [vmem:[%s861] sm:$0x3]
        %v3514 = vlaneseq
        %v3515 = vshrl.u32 %v3514, 7
        %v3516 = vsub.s32 0, %v3515
        %v3517 = vrot.slane %v3512, %v3516
        %v3518 = vlaneseq
        %v3519 = vshrl.u32 %v3518, 7
        %v3520 = vsub.s32 1, %v3519
        %v3521 = vrot.slane %v3512, %v3520
        %v3524 = vadd.f32 %v3504, %v3517
        %v3525 = vadd.f32 %v3505, %v3521
        %v3526 = vadd.f32 %v3506, %v3517
        %v3527 = vadd.f32 %v3507, %v3521
        %v3528 = vadd.f32 %v3508, %v3517
        %v3529 = vadd.f32 %v3509, %v3521
        %v3530 = vadd.f32 %v3510, %v3517
        %v3531 = vadd.f32 %v3511, %v3521
        %v3532 = vadd.f32 %v1083, %v3524
        %v3533 = vadd.f32 %v1084, %v3525
        %v3534 = vadd.f32 %v1085, %v3526
        %v3535 = vadd.f32 %v1086, %v3527
        %v3536 = vadd.f32 %v1087, %v3528
        %v3537 = vadd.f32 %v1088, %v3529
        %v3538 = vadd.f32 %v1089, %v3530
        %v3539 = vadd.f32 %v1090, %v3531
        %v3540 = vld [vmem:[%s870] sm:$0x3]
        %v3541 = vld [vmem:[%s879] sm:$0x3]
        %v3542 = vadd.f32 %v3532, %v3533
        %3543 = vadd.xlane.f32.xlu0 %v3542
        %v3544 = vpop.xlane.xlu0 %3543
        %v3545 = vadd.f32 %v3534, %v3535
        %3546 = vadd.xlane.f32.xlu0 %v3545
        %v3547 = vpop.xlane.xlu0 %3546
        %v3548 = vadd.f32 %v3536, %v3537
        %3549 = vadd.xlane.f32.xlu0 %v3548
        %v3550 = vpop.xlane.xlu0 %3549
        %v3551 = vadd.f32 %v3538, %v3539
        %3552 = vadd.xlane.f32.xlu0 %v3551
        %v3553 = vpop.xlane.xlu0 %3552
        %v3554 = vrcp.pop 256.0
        %v3555 = vmul.f32 %v3544, %v3554
        %v3556 = vmul.f32 %v3547, %v3554
        %v3557 = vmul.f32 %v3550, %v3554
        %v3558 = vmul.f32 %v3553, %v3554
        %v3559 = vsub.f32 %v3532, %v3555
        %v3560 = vsub.f32 %v3533, %v3555
        %v3561 = vsub.f32 %v3534, %v3556
        %v3562 = vsub.f32 %v3535, %v3556
        %v3563 = vsub.f32 %v3536, %v3557
        %v3564 = vsub.f32 %v3537, %v3557
        %v3565 = vsub.f32 %v3538, %v3558
        %v3566 = vsub.f32 %v3539, %v3558
        %v3567 = vmul.f32 %v3559, %v3559
        %v3568 = vmul.f32 %v3560, %v3560
        %v3569 = vmul.f32 %v3561, %v3561
        %v3570 = vmul.f32 %v3562, %v3562
        %v3571 = vmul.f32 %v3563, %v3563
        %v3572 = vmul.f32 %v3564, %v3564
        %v3573 = vmul.f32 %v3565, %v3565
        %v3574 = vmul.f32 %v3566, %v3566
        %v3575 = vadd.f32 %v3567, %v3568
        %3576 = vadd.xlane.f32.xlu0 %v3575
        %v3577 = vpop.xlane.xlu0 %3576
        %v3578 = vadd.f32 %v3569, %v3570
        %3579 = vadd.xlane.f32.xlu0 %v3578
        %v3580 = vpop.xlane.xlu0 %3579
        %v3581 = vadd.f32 %v3571, %v3572
        %3582 = vadd.xlane.f32.xlu0 %v3581
        %v3583 = vpop.xlane.xlu0 %3582
        %v3584 = vadd.f32 %v3573, %v3574
        %3585 = vadd.xlane.f32.xlu0 %v3584
        %v3586 = vpop.xlane.xlu0 %3585
        %v3587 = vmul.f32 %v3577, %v3554
        %v3588 = vmul.f32 %v3580, %v3554
        %v3589 = vmul.f32 %v3583, %v3554
        %v3590 = vmul.f32 %v3586, %v3554
        %v3591 = vadd.f32 %v3587, 1e-05
        %v3592 = vadd.f32 %v3588, 1e-05
        %v3593 = vadd.f32 %v3589, 1e-05
        %v3594 = vadd.f32 %v3590, 1e-05
        %v3595 = vrsqrt.pop %v3591
        %v3596 = vrsqrt.pop %v3592
        %v3597 = vrsqrt.pop %v3593
        %v3598 = vrsqrt.pop %v3594
        %v3599 = vmul.f32 %v3559, %v3595
        %v3600 = vmul.f32 %v3560, %v3595
        %v3601 = vmul.f32 %v3561, %v3596
        %v3602 = vmul.f32 %v3562, %v3596
        %v3603 = vmul.f32 %v3563, %v3597
        %v3604 = vmul.f32 %v3564, %v3597
        %v3605 = vmul.f32 %v3565, %v3598
        %v3606 = vmul.f32 %v3566, %v3598
        %v3608 = vlaneseq
        %v3609 = vshrl.u32 %v3608, 7
        %v3610 = vsub.s32 0, %v3609
        %v3611 = vrot.slane %v3540, %v3610
        %v3612 = vlaneseq
        %v3613 = vshrl.u32 %v3612, 7
        %v3614 = vsub.s32 1, %v3613
        %v3615 = vrot.slane %v3540, %v3614
        %v3618 = vmul.f32 %v3599, %v3611
        %v3619 = vmul.f32 %v3600, %v3615
        %v3620 = vmul.f32 %v3601, %v3611
        %v3621 = vmul.f32 %v3602, %v3615
        %v3622 = vmul.f32 %v3603, %v3611
        %v3623 = vmul.f32 %v3604, %v3615
        %v3624 = vmul.f32 %v3605, %v3611
        %v3625 = vmul.f32 %v3606, %v3615
        %v3627 = vlaneseq
        %v3628 = vshrl.u32 %v3627, 7
        %v3629 = vsub.s32 0, %v3628
        %v3630 = vrot.slane %v3541, %v3629
        %v3631 = vlaneseq
        %v3632 = vshrl.u32 %v3631, 7
        %v3633 = vsub.s32 1, %v3632
        %v3634 = vrot.slane %v3541, %v3633
        %v3637 = vadd.f32 %v3618, %v3630
        %v3638 = vadd.f32 %v3619, %v3634
        %v3639 = vadd.f32 %v3620, %v3630
        %v3640 = vadd.f32 %v3621, %v3634
        %v3641 = vadd.f32 %v3622, %v3630
        %v3642 = vadd.f32 %v3623, %v3634
        %v3643 = vadd.f32 %v3624, %v3630
        %v3644 = vadd.f32 %v3625, %v3634
        %v3645 = vld [vmem:[%s888] sm:$0xff]
        %v3646 = vld [vmem:[%s888 + $0x8] sm:$0xff]
        %v3647 = vld [vmem:[%s888 + $0x10] sm:$0xff]
        %v3648 = vld [vmem:[%s888 + $0x18] sm:$0xff]
        %v3649 = vld [vmem:[%s888 + $0x20] sm:$0xff]
        %v3650 = vld [vmem:[%s888 + $0x28] sm:$0xff]
        %v3651 = vld [vmem:[%s888 + $0x30] sm:$0xff]
        %v3652 = vld [vmem:[%s888 + $0x38] sm:$0xff]
        %v3653 = vld [vmem:[%s888 + $0x40] sm:$0xff]
        %v3654 = vld [vmem:[%s888 + $0x48] sm:$0xff]
        %v3655 = vld [vmem:[%s888 + $0x50] sm:$0xff]
        %v3656 = vld [vmem:[%s888 + $0x58] sm:$0xff]
        %v3657 = vld [vmem:[%s888 + $0x60] sm:$0xff]
        %v3658 = vld [vmem:[%s888 + $0x68] sm:$0xff]
        %v3659 = vld [vmem:[%s888 + $0x70] sm:$0xff]
        %v3660 = vld [vmem:[%s888 + $0x78] sm:$0xff]
        %v3661 = vld [vmem:[%s896] sm:$0x1]
        %v3662 = vpack.c.bf16 %v3639, %v3637
        %v3663 = vpack.c.bf16 %v3640, %v3638
        %v3664 = vpack.c.bf16 %v3643, %v3641
        %v3665 = vpack.c.bf16 %v3644, %v3642
        %v3667 = vlaneseq
        %v3668 = vshrl.u32 %v3667, 7
        %v3669 = vsub.s32 0, %v3668
        %v3670 = vrot.slane %v3661, %v3669
        %v3688 = vunpack.c.l.b16 %v3645
        %v3689 = vunpack.c.h.b16 %v3645
        %v3690 = vunpack.c.l.b16 %v3646
        %v3691 = vunpack.c.h.b16 %v3646
        %v3692 = vunpack.c.l.b16 %v3647
        %v3693 = vunpack.c.h.b16 %v3647
        %v3694 = vunpack.c.l.b16 %v3648
        %v3695 = vunpack.c.h.b16 %v3648
        %v3696 = vunpack.c.l.b16 %v3649
        %v3697 = vunpack.c.h.b16 %v3649
        %v3698 = vunpack.c.l.b16 %v3650
        %v3699 = vunpack.c.h.b16 %v3650
        %v3700 = vunpack.c.l.b16 %v3651
        %v3701 = vunpack.c.h.b16 %v3651
        %v3702 = vunpack.c.l.b16 %v3652
        %v3703 = vunpack.c.h.b16 %v3652
        %v3704 = vunpack.c.l.b16 %v3653
        %v3705 = vunpack.c.h.b16 %v3653
        %v3706 = vunpack.c.l.b16 %v3654
        %v3707 = vunpack.c.h.b16 %v3654
        %v3708 = vunpack.c.l.b16 %v3655
        %v3709 = vunpack.c.h.b16 %v3655
        %v3710 = vunpack.c.l.b16 %v3656
        %v3711 = vunpack.c.h.b16 %v3656
        %v3712 = vunpack.c.l.b16 %v3657
        %v3713 = vunpack.c.h.b16 %v3657
        %v3714 = vunpack.c.l.b16 %v3658
        %v3715 = vunpack.c.h.b16 %v3658
        %v3716 = vunpack.c.l.b16 %v3659
        %v3717 = vunpack.c.h.b16 %v3659
        %v3718 = vunpack.c.l.b16 %v3660
        %v3719 = vunpack.c.h.b16 %v3660
        %v3720 = vpack.c.b16 %v3690, %v3688
        %v3721 = vpack.c.b16 %v3691, %v3689
        %v3722 = vpack.c.b16 %v3694, %v3692
        %v3723 = vpack.c.b16 %v3695, %v3693
        %v3724 = vpack.c.b16 %v3698, %v3696
        %v3725 = vpack.c.b16 %v3699, %v3697
        %v3726 = vpack.c.b16 %v3702, %v3700
        %v3727 = vpack.c.b16 %v3703, %v3701
        %v3728 = vpack.c.b16 %v3706, %v3704
        %v3729 = vpack.c.b16 %v3707, %v3705
        %v3730 = vpack.c.b16 %v3710, %v3708
        %v3731 = vpack.c.b16 %v3711, %v3709
        %v3732 = vpack.c.b16 %v3714, %v3712
        %v3733 = vpack.c.b16 %v3715, %v3713
        %v3734 = vpack.c.b16 %v3718, %v3716
        %v3735 = vpack.c.b16 %v3719, %v3717
        %3752 = vmatprep.subr.bf16.mxu0 %v3721
        %3753 = vmatpush1.bf16.xpose.msra.mxu0 %v3720
        %3754 = vmatprep.subr.bf16.mxu0 %v3723
        %3755 = vmatpush1.bf16.xpose.msra.mxu0 %v3722
        %3756 = vmatprep.subr.bf16.mxu0 %v3725
        %3757 = vmatpush1.bf16.xpose.msra.mxu0 %v3724
        %3758 = vmatprep.subr.bf16.mxu0 %v3727
        %3759 = vmatpush1.bf16.xpose.msra.mxu0 %v3726
        %3760 = vmatprep.subr.bf16.mxu0 %v3729
        %3761 = vmatpush1.bf16.xpose.msra.mxu0 %v3728
        %3762 = vmatprep.subr.bf16.mxu0 %v3731
        %3763 = vmatpush1.bf16.xpose.msra.mxu0 %v3730
        %3764 = vmatprep.subr.bf16.mxu0 %v3733
        %3765 = vmatpush1.bf16.xpose.msra.mxu0 %v3732
        %3766 = vmatprep.subr.bf16.mxu0 %v3735
        %3767 = vmatpush1.bf16.xpose.msra.mxu0 %v3734
        %3768 = vmatprep.subr.bf16.mxu0 0
        %3769 = vmatpush1.bf16.xpose.msra.mxu0 0
        %3770 = vmatprep.subr.bf16.mxu0 0
        %3771 = vmatpush1.bf16.xpose.msra.mxu0 0
        %3772 = vmatprep.subr.bf16.mxu0 0
        %3773 = vmatpush1.bf16.xpose.msra.mxu0 0
        %3774 = vmatprep.subr.bf16.mxu0 0
        %3775 = vmatpush1.bf16.xpose.msra.mxu0 0
        %3776 = vmatprep.subr.bf16.mxu0 0
        %3777 = vmatpush1.bf16.xpose.msra.mxu0 0
        %3778 = vmatprep.subr.bf16.mxu0 0
        %3779 = vmatpush1.bf16.xpose.msra.mxu0 0
        %3780 = vmatprep.subr.bf16.mxu0 0
        %3781 = vmatpush1.bf16.xpose.msra.mxu0 0
        %3782 = vmatprep.subr.bf16.mxu0 0
        %3783 = vmatpush1.bf16.xpose.msra.mxu0 0
        %3784 = vmatprep.mubr.bf16.mxu0 %v3663
        %3785 = vmatmul.mubr.bf16.gmra.mrb[0].mxu0 %v3662
        %v3786 = vpop.f32.mrb[0].mxu0
        %v3787 = vadd.f32 %v3670, %v3786
        %v3788 = vpop.f32.mrb[0].mxu0
        %v3789 = vpop.f32.mrb[0].mxu0
        %v3790 = vadd.f32 %v3670, %v3789
        %v3791 = vpop.f32.mrb[0].mxu0
        %3792 = vmatprep.mubr.bf16.mxu0 %v3665
        %3793 = vmatmul.mubr.bf16.gmra.mrb[0].mxu0 %v3664
        %v3794 = vpop.f32.mrb[0].mxu0
        %v3795 = vadd.f32 %v3670, %v3794
        %v3796 = vpop.f32.mrb[0].mxu0
        %v3797 = vpop.f32.mrb[0].mxu0
        %v3798 = vadd.f32 %v3670, %v3797
        %v3799 = vpop.f32.mrb[0].mxu0
        %3800 = vdwg.mxu0
        %v3801 = vmax.f32 %v3787, 0.0
        %v3802 = vmax.f32 %v3790, 0.0
        %v3803 = vmax.f32 %v3795, 0.0
        %v3804 = vmax.f32 %v3798, 0.0
        %v3805 = vld [vmem:[%s905] sm:$0xf]
        %v3806 = vld [vmem:[%s905 + $0x4] sm:$0xf]
        %v3807 = vld [vmem:[%s905 + $0x8] sm:$0xf]
        %v3808 = vld [vmem:[%s905 + $0xc] sm:$0xf]
        %v3809 = vld [vmem:[%s905 + $0x10] sm:$0xf]
        %v3810 = vld [vmem:[%s905 + $0x14] sm:$0xf]
        %v3811 = vld [vmem:[%s905 + $0x18] sm:$0xf]
        %v3812 = vld [vmem:[%s905 + $0x1c] sm:$0xf]
        %v3813 = vld [vmem:[%s905 + $0x20] sm:$0xf]
        %v3814 = vld [vmem:[%s905 + $0x24] sm:$0xf]
        %v3815 = vld [vmem:[%s905 + $0x28] sm:$0xf]
        %v3816 = vld [vmem:[%s905 + $0x2c] sm:$0xf]
        %v3817 = vld [vmem:[%s905 + $0x30] sm:$0xf]
        %v3818 = vld [vmem:[%s905 + $0x34] sm:$0xf]
        %v3819 = vld [vmem:[%s905 + $0x38] sm:$0xf]
        %v3820 = vld [vmem:[%s905 + $0x3c] sm:$0xf]
        %v3821 = vld [vmem:[%s905 + $0x40] sm:$0xf]
        %v3822 = vld [vmem:[%s905 + $0x44] sm:$0xf]
        %v3823 = vld [vmem:[%s905 + $0x48] sm:$0xf]
        %v3824 = vld [vmem:[%s905 + $0x4c] sm:$0xf]
        %v3825 = vld [vmem:[%s905 + $0x50] sm:$0xf]
        %v3826 = vld [vmem:[%s905 + $0x54] sm:$0xf]
        %v3827 = vld [vmem:[%s905 + $0x58] sm:$0xf]
        %v3828 = vld [vmem:[%s905 + $0x5c] sm:$0xf]
        %v3829 = vld [vmem:[%s905 + $0x60] sm:$0xf]
        %v3830 = vld [vmem:[%s905 + $0x64] sm:$0xf]
        %v3831 = vld [vmem:[%s905 + $0x68] sm:$0xf]
        %v3832 = vld [vmem:[%s905 + $0x6c] sm:$0xf]
        %v3833 = vld [vmem:[%s905 + $0x70] sm:$0xf]
        %v3834 = vld [vmem:[%s905 + $0x74] sm:$0xf]
        %v3835 = vld [vmem:[%s905 + $0x78] sm:$0xf]
        %v3836 = vld [vmem:[%s905 + $0x7c] sm:$0xf]
        %v3837 = vld [vmem:[%s914] sm:$0x3]
        %v3838 = vpack.c.bf16 %v3802, %v3801
        %v3839 = vpack.c.bf16 %v3804, %v3803
        %v3841 = vlaneseq
        %v3842 = vshrl.u32 %v3841, 7
        %v3843 = vsub.s32 0, %v3842
        %v3844 = vrot.slane %v3837, %v3843
        %v3845 = vlaneseq
        %v3846 = vshrl.u32 %v3845, 7
        %v3847 = vsub.s32 1, %v3846
        %v3848 = vrot.slane %v3837, %v3847
        %v3883 = vunpack.c.l.b16 %v3805
        %v3884 = vunpack.c.l.b16 %v3806
        %v3885 = vunpack.c.l.b16 %v3807
        %v3886 = vunpack.c.l.b16 %v3808
        %v3887 = vunpack.c.l.b16 %v3809
        %v3888 = vunpack.c.l.b16 %v3810
        %v3889 = vunpack.c.l.b16 %v3811
        %v3890 = vunpack.c.l.b16 %v3812
        %v3891 = vunpack.c.l.b16 %v3813
        %v3892 = vunpack.c.l.b16 %v3814
        %v3893 = vunpack.c.l.b16 %v3815
        %v3894 = vunpack.c.l.b16 %v3816
        %v3895 = vunpack.c.l.b16 %v3817
        %v3896 = vunpack.c.l.b16 %v3818
        %v3897 = vunpack.c.l.b16 %v3819
        %v3898 = vunpack.c.l.b16 %v3820
        %v3899 = vunpack.c.l.b16 %v3821
        %v3900 = vunpack.c.l.b16 %v3822
        %v3901 = vunpack.c.l.b16 %v3823
        %v3902 = vunpack.c.l.b16 %v3824
        %v3903 = vunpack.c.l.b16 %v3825
        %v3904 = vunpack.c.l.b16 %v3826
        %v3905 = vunpack.c.l.b16 %v3827
        %v3906 = vunpack.c.l.b16 %v3828
        %v3907 = vunpack.c.l.b16 %v3829
        %v3908 = vunpack.c.l.b16 %v3830
        %v3909 = vunpack.c.l.b16 %v3831
        %v3910 = vunpack.c.l.b16 %v3832
        %v3911 = vunpack.c.l.b16 %v3833
        %v3912 = vunpack.c.l.b16 %v3834
        %v3913 = vunpack.c.l.b16 %v3835
        %v3914 = vunpack.c.l.b16 %v3836
        %v3915 = vpack.c.b16 %v3884, %v3883
        %v3916 = vpack.c.b16 %v3886, %v3885
        %v3917 = vpack.c.b16 %v3888, %v3887
        %v3918 = vpack.c.b16 %v3890, %v3889
        %v3919 = vpack.c.b16 %v3892, %v3891
        %v3920 = vpack.c.b16 %v3894, %v3893
        %v3921 = vpack.c.b16 %v3896, %v3895
        %v3922 = vpack.c.b16 %v3898, %v3897
        %v3923 = vpack.c.b16 %v3900, %v3899
        %v3924 = vpack.c.b16 %v3902, %v3901
        %v3925 = vpack.c.b16 %v3904, %v3903
        %v3926 = vpack.c.b16 %v3906, %v3905
        %v3927 = vpack.c.b16 %v3908, %v3907
        %v3928 = vpack.c.b16 %v3910, %v3909
        %v3929 = vpack.c.b16 %v3912, %v3911
        %v3930 = vpack.c.b16 %v3914, %v3913
        %3947 = vmatprep.subr.bf16.mxu0 0
        %3948 = vmatpush1.bf16.xpose.msra.mxu0 %v3915
        %3949 = vmatprep.subr.bf16.mxu0 0
        %3950 = vmatpush1.bf16.xpose.msra.mxu0 %v3916
        %3951 = vmatprep.subr.bf16.mxu0 0
        %3952 = vmatpush1.bf16.xpose.msra.mxu0 %v3917
        %3953 = vmatprep.subr.bf16.mxu0 0
        %3954 = vmatpush1.bf16.xpose.msra.mxu0 %v3918
        %3955 = vmatprep.subr.bf16.mxu0 0
        %3956 = vmatpush1.bf16.xpose.msra.mxu0 %v3919
        %3957 = vmatprep.subr.bf16.mxu0 0
        %3958 = vmatpush1.bf16.xpose.msra.mxu0 %v3920
        %3959 = vmatprep.subr.bf16.mxu0 0
        %3960 = vmatpush1.bf16.xpose.msra.mxu0 %v3921
        %3961 = vmatprep.subr.bf16.mxu0 0
        %3962 = vmatpush1.bf16.xpose.msra.mxu0 %v3922
        %3963 = vmatprep.subr.bf16.mxu0 0
        %3964 = vmatpush1.bf16.xpose.msra.mxu0 %v3923
        %3965 = vmatprep.subr.bf16.mxu0 0
        %3966 = vmatpush1.bf16.xpose.msra.mxu0 %v3924
        %3967 = vmatprep.subr.bf16.mxu0 0
        %3968 = vmatpush1.bf16.xpose.msra.mxu0 %v3925
        %3969 = vmatprep.subr.bf16.mxu0 0
        %3970 = vmatpush1.bf16.xpose.msra.mxu0 %v3926
        %3971 = vmatprep.subr.bf16.mxu0 0
        %3972 = vmatpush1.bf16.xpose.msra.mxu0 %v3927
        %3973 = vmatprep.subr.bf16.mxu0 0
        %3974 = vmatpush1.bf16.xpose.msra.mxu0 %v3928
        %3975 = vmatprep.subr.bf16.mxu0 0
        %3976 = vmatpush1.bf16.xpose.msra.mxu0 %v3929
        %3977 = vmatprep.subr.bf16.mxu0 0
        %3978 = vmatpush1.bf16.xpose.msra.mxu0 %v3930
        %3979 = vmatprep.mubr.bf16.mxu0 0
        %3980 = vmatmul.mubr.bf16.gmra.mrb[0].mxu0 %v3838
        %v3981 = vpop.f32.mrb[0].mxu0
        %v3982 = vadd.f32 %v3844, %v3981
        %v3983 = vpop.f32.mrb[0].mxu0
        %v3984 = vadd.f32 %v3848, %v3983
        %v3985 = vpop.f32.mrb[0].mxu0
        %v3986 = vadd.f32 %v3844, %v3985
        %v3987 = vpop.f32.mrb[0].mxu0
        %v3988 = vadd.f32 %v3848, %v3987
        %3989 = vmatprep.mubr.bf16.mxu0 0
        %3990 = vmatmul.mubr.bf16.gmra.mrb[0].mxu0 %v3839
        %v3991 = vpop.f32.mrb[0].mxu0
        %v3992 = vadd.f32 %v3844, %v3991
        %v3993 = vpop.f32.mrb[0].mxu0
        %v3994 = vadd.f32 %v3848, %v3993
        %v3995 = vpop.f32.mrb[0].mxu0
        %v3996 = vadd.f32 %v3844, %v3995
        %v3997 = vpop.f32.mrb[0].mxu0
        %v3998 = vadd.f32 %v3848, %v3997
        %3999 = vdwg.mxu0
        %v4000 = vadd.f32 %v3637, %v3982
        %v4001 = vadd.f32 %v3638, %v3984
        %v4002 = vadd.f32 %v3639, %v3986
        %v4003 = vadd.f32 %v3640, %v3988
        %v4004 = vadd.f32 %v3641, %v3992
        %v4005 = vadd.f32 %v3642, %v3994
        %v4006 = vadd.f32 %v3643, %v3996
        %v4007 = vadd.f32 %v3644, %v3998
        %v4008 = vld [vmem:[%s923] sm:$0x3]
        %v4009 = vld [vmem:[%s932] sm:$0x3]
        %v4010 = vadd.f32 %v4000, %v4001
        %4011 = vadd.xlane.f32.xlu0 %v4010
        %v4012 = vpop.xlane.xlu0 %4011
        %v4013 = vadd.f32 %v4002, %v4003
        %4014 = vadd.xlane.f32.xlu0 %v4013
        %v4015 = vpop.xlane.xlu0 %4014
        %v4016 = vadd.f32 %v4004, %v4005
        %4017 = vadd.xlane.f32.xlu0 %v4016
        %v4018 = vpop.xlane.xlu0 %4017
        %v4019 = vadd.f32 %v4006, %v4007
        %4020 = vadd.xlane.f32.xlu0 %v4019
        %v4021 = vpop.xlane.xlu0 %4020
        %v4022 = vmul.f32 %v4012, %v3554
        %v4023 = vmul.f32 %v4015, %v3554
        %v4024 = vmul.f32 %v4018, %v3554
        %v4025 = vmul.f32 %v4021, %v3554
        %v4026 = vsub.f32 %v4000, %v4022
        %v4027 = vsub.f32 %v4001, %v4022
        %v4028 = vsub.f32 %v4002, %v4023
        %v4029 = vsub.f32 %v4003, %v4023
        %v4030 = vsub.f32 %v4004, %v4024
        %v4031 = vsub.f32 %v4005, %v4024
        %v4032 = vsub.f32 %v4006, %v4025
        %v4033 = vsub.f32 %v4007, %v4025
        %v4034 = vmul.f32 %v4026, %v4026
        %v4035 = vmul.f32 %v4027, %v4027
        %v4036 = vmul.f32 %v4028, %v4028
        %v4037 = vmul.f32 %v4029, %v4029
        %v4038 = vmul.f32 %v4030, %v4030
        %v4039 = vmul.f32 %v4031, %v4031
        %v4040 = vmul.f32 %v4032, %v4032
        %v4041 = vmul.f32 %v4033, %v4033
        %v4042 = vadd.f32 %v4034, %v4035
        %4043 = vadd.xlane.f32.xlu0 %v4042
        %v4044 = vpop.xlane.xlu0 %4043
        %v4045 = vadd.f32 %v4036, %v4037
        %4046 = vadd.xlane.f32.xlu0 %v4045
        %v4047 = vpop.xlane.xlu0 %4046
        %v4048 = vadd.f32 %v4038, %v4039
        %4049 = vadd.xlane.f32.xlu0 %v4048
        %v4050 = vpop.xlane.xlu0 %4049
        %v4051 = vadd.f32 %v4040, %v4041
        %4052 = vadd.xlane.f32.xlu0 %v4051
        %v4053 = vpop.xlane.xlu0 %4052
        %v4054 = vmul.f32 %v4044, %v3554
        %v4055 = vmul.f32 %v4047, %v3554
        %v4056 = vmul.f32 %v4050, %v3554
        %v4057 = vmul.f32 %v4053, %v3554
        %v4058 = vadd.f32 %v4054, 1e-05
        %v4059 = vadd.f32 %v4055, 1e-05
        %v4060 = vadd.f32 %v4056, 1e-05
        %v4061 = vadd.f32 %v4057, 1e-05
        %v4062 = vrsqrt.pop %v4058
        %v4063 = vrsqrt.pop %v4059
        %v4064 = vrsqrt.pop %v4060
        %v4065 = vrsqrt.pop %v4061
        %v4066 = vmul.f32 %v4026, %v4062
        %v4067 = vmul.f32 %v4027, %v4062
        %v4068 = vmul.f32 %v4028, %v4063
        %v4069 = vmul.f32 %v4029, %v4063
        %v4070 = vmul.f32 %v4030, %v4064
        %v4071 = vmul.f32 %v4031, %v4064
        %v4072 = vmul.f32 %v4032, %v4065
        %v4073 = vmul.f32 %v4033, %v4065
        %v4075 = vlaneseq
        %v4076 = vshrl.u32 %v4075, 7
        %v4077 = vsub.s32 0, %v4076
        %v4078 = vrot.slane %v4008, %v4077
        %v4079 = vlaneseq
        %v4080 = vshrl.u32 %v4079, 7
        %v4081 = vsub.s32 1, %v4080
        %v4082 = vrot.slane %v4008, %v4081
        %v4085 = vmul.f32 %v4066, %v4078
        %v4086 = vmul.f32 %v4067, %v4082
        %v4087 = vmul.f32 %v4068, %v4078
        %v4088 = vmul.f32 %v4069, %v4082
        %v4089 = vmul.f32 %v4070, %v4078
        %v4090 = vmul.f32 %v4071, %v4082
        %v4091 = vmul.f32 %v4072, %v4078
        %v4092 = vmul.f32 %v4073, %v4082
        %v4094 = vlaneseq
        %v4095 = vshrl.u32 %v4094, 7
        %v4096 = vsub.s32 0, %v4095
        %v4097 = vrot.slane %v4009, %v4096
        %v4098 = vlaneseq
        %v4099 = vshrl.u32 %v4098, 7
        %v4100 = vsub.s32 1, %v4099
        %v4101 = vrot.slane %v4009, %v4100
        %v4104 = vadd.f32 %v4085, %v4097
        %v4105 = vadd.f32 %v4086, %v4101
        %v4106 = vadd.f32 %v4087, %v4097
        %v4107 = vadd.f32 %v4088, %v4101
        %v4108 = vadd.f32 %v4089, %v4097
        %v4109 = vadd.f32 %v4090, %v4101
        %v4110 = vadd.f32 %v4091, %v4097
        %v4111 = vadd.f32 %v4092, %v4101
        %4112 = vst [vmem:[#allocation2] sm:$0xff] %v4104
        %4113 = vst [vmem:[#allocation2 + $0x8] sm:$0xff] %v4105
        %4114 = vst [vmem:[#allocation2 + $0x10] sm:$0xff] %v4106
        %4115 = vst [vmem:[#allocation2 + $0x18] sm:$0xff] %v4107
        %4116 = vst [vmem:[#allocation2 + $0x20] sm:$0xff] %v4108
        %4117 = vst [vmem:[#allocation2 + $0x28] sm:$0xff] %v4109
        %4118 = vst [vmem:[#allocation2 + $0x30] sm:$0xff] %v4110
        %4119 = vst [vmem:[#allocation2 + $0x38] sm:$0xff] %v4111
        %p4120 = scmp.eq.s32.totalorder %s34, 5
        // Predicated region
        $region169: #{encoder_only_forward.1} parent=91 // pred_check
          %p4121 = pneg %p4120
        $region170: #{encoder_only_forward.1} parent=91 // pred_check_branch
          %4123 = sbr.rel (%p4121) target = $region172
        $region171: #{encoder_only_forward.1} parent=91 // pred_region
          %v4124 = vld [vmem:[#allocation20] sm:$0xff]
          %v4125 = vld [vmem:[#allocation20 + $0x8] sm:$0xff]
          %v4126 = vld [vmem:[#allocation20 + $0x10] sm:$0xff]
          %v4127 = vld [vmem:[#allocation20 + $0x18] sm:$0xff]
          %v4128 = vld [vmem:[#allocation20 + $0x20] sm:$0xff]
          %v4129 = vld [vmem:[#allocation20 + $0x28] sm:$0xff]
          %v4130 = vld [vmem:[#allocation20 + $0x30] sm:$0xff]
          %v4131 = vld [vmem:[#allocation20 + $0x38] sm:$0xff]
          %v4132 = vld [vmem:[#allocation20 + $0x40] sm:$0xff]
          %v4133 = vld [vmem:[#allocation20 + $0x48] sm:$0xff]
          %v4134 = vld [vmem:[#allocation20 + $0x50] sm:$0xff]
          %v4135 = vld [vmem:[#allocation20 + $0x58] sm:$0xff]
          %v4136 = vld [vmem:[#allocation20 + $0x60] sm:$0xff]
          %v4137 = vld [vmem:[#allocation20 + $0x68] sm:$0xff]
          %v4138 = vld [vmem:[#allocation20 + $0x70] sm:$0xff]
          %v4139 = vld [vmem:[#allocation20 + $0x78] sm:$0xff]
          %v4140 = vld [vmem:[#allocation20 + $0x80] sm:$0xff]
          %v4141 = vld [vmem:[#allocation20 + $0x88] sm:$0xff]
          %v4142 = vld [vmem:[#allocation20 + $0x90] sm:$0xff]
          %v4143 = vld [vmem:[#allocation20 + $0x98] sm:$0xff]
          %v4144 = vld [vmem:[#allocation20 + $0xa0] sm:$0xff]
          %v4145 = vld [vmem:[#allocation20 + $0xa8] sm:$0xff]
          %v4146 = vld [vmem:[#allocation20 + $0xb0] sm:$0xff]
          %v4147 = vld [vmem:[#allocation20 + $0xb8] sm:$0xff]
          %v4148 = vld [vmem:[#allocation20 + $0xc0] sm:$0xff]
          %v4149 = vld [vmem:[#allocation20 + $0xc8] sm:$0xff]
          %v4150 = vld [vmem:[#allocation20 + $0xd0] sm:$0xff]
          %v4151 = vld [vmem:[#allocation20 + $0xd8] sm:$0xff]
          %v4152 = vld [vmem:[#allocation20 + $0xe0] sm:$0xff]
          %v4153 = vld [vmem:[#allocation20 + $0xe8] sm:$0xff]
          %v4154 = vld [vmem:[#allocation20 + $0xf0] sm:$0xff]
          %v4155 = vld [vmem:[#allocation20 + $0xf8] sm:$0xff]
          %v4156 = vld [vmem:[#allocation20 + $0x100] sm:$0xff]
          %v4157 = vld [vmem:[#allocation20 + $0x108] sm:$0xff]
          %v4158 = vld [vmem:[#allocation20 + $0x110] sm:$0xff]
          %v4159 = vld [vmem:[#allocation20 + $0x118] sm:$0xff]
          %v4160 = vld [vmem:[#allocation20 + $0x120] sm:$0xff]
          %v4161 = vld [vmem:[#allocation20 + $0x128] sm:$0xff]
          %v4162 = vld [vmem:[#allocation20 + $0x130] sm:$0xff]
          %v4163 = vld [vmem:[#allocation20 + $0x138] sm:$0xff]
          %v4164 = vld [vmem:[#allocation20 + $0x140] sm:$0xff]
          %v4165 = vld [vmem:[#allocation20 + $0x148] sm:$0xff]
          %v4166 = vld [vmem:[#allocation20 + $0x150] sm:$0xff]
          %v4167 = vld [vmem:[#allocation20 + $0x158] sm:$0xff]
          %v4168 = vld [vmem:[#allocation20 + $0x160] sm:$0xff]
          %v4169 = vld [vmem:[#allocation20 + $0x168] sm:$0xff]
          %v4170 = vld [vmem:[#allocation20 + $0x170] sm:$0xff]
          %v4171 = vld [vmem:[#allocation20 + $0x178] sm:$0xff]
          %v4172 = vld [vmem:[#allocation20 + $0x180] sm:$0xff]
          %v4173 = vld [vmem:[#allocation20 + $0x188] sm:$0xff]
          %v4174 = vld [vmem:[#allocation20 + $0x190] sm:$0xff]
          %v4175 = vld [vmem:[#allocation20 + $0x198] sm:$0xff]
          %v4176 = vld [vmem:[#allocation20 + $0x1a0] sm:$0xff]
          %v4177 = vld [vmem:[#allocation20 + $0x1a8] sm:$0xff]
          %v4178 = vld [vmem:[#allocation20 + $0x1b0] sm:$0xff]
          %v4179 = vld [vmem:[#allocation20 + $0x1b8] sm:$0xff]
          %v4180 = vld [vmem:[#allocation20 + $0x1c0] sm:$0xff]
          %v4181 = vld [vmem:[#allocation20 + $0x1c8] sm:$0xff]
          %v4182 = vld [vmem:[#allocation20 + $0x1d0] sm:$0xff]
          %v4183 = vld [vmem:[#allocation20 + $0x1d8] sm:$0xff]
          %v4184 = vld [vmem:[#allocation20 + $0x1e0] sm:$0xff]
          %v4185 = vld [vmem:[#allocation20 + $0x1e8] sm:$0xff]
          %v4186 = vld [vmem:[#allocation20 + $0x1f0] sm:$0xff]
          %v4187 = vld [vmem:[#allocation20 + $0x1f8] sm:$0xff]
          %v4188 = vld [vmem:[#allocation20 + $0x200] sm:$0xff]
          %v4189 = vld [vmem:[#allocation20 + $0x208] sm:$0xff]
          %v4190 = vld [vmem:[#allocation20 + $0x210] sm:$0xff]
          %v4191 = vld [vmem:[#allocation20 + $0x218] sm:$0xff]
          %v4192 = vld [vmem:[#allocation20 + $0x220] sm:$0xff]
          %v4193 = vld [vmem:[#allocation20 + $0x228] sm:$0xff]
          %v4194 = vld [vmem:[#allocation20 + $0x230] sm:$0xff]
          %v4195 = vld [vmem:[#allocation20 + $0x238] sm:$0xff]
          %v4196 = vld [vmem:[#allocation20 + $0x240] sm:$0xff]
          %v4197 = vld [vmem:[#allocation20 + $0x248] sm:$0xff]
          %v4198 = vld [vmem:[#allocation20 + $0x250] sm:$0xff]
          %v4199 = vld [vmem:[#allocation20 + $0x258] sm:$0xff]
          %v4200 = vld [vmem:[#allocation20 + $0x260] sm:$0xff]
          %v4201 = vld [vmem:[#allocation20 + $0x268] sm:$0xff]
          %v4202 = vld [vmem:[#allocation20 + $0x270] sm:$0xff]
          %v4203 = vld [vmem:[#allocation20 + $0x278] sm:$0xff]
          %v4204 = vld [vmem:[#allocation20 + $0x280] sm:$0xff]
          %v4205 = vld [vmem:[#allocation20 + $0x288] sm:$0xff]
          %v4206 = vld [vmem:[#allocation20 + $0x290] sm:$0xff]
          %v4207 = vld [vmem:[#allocation20 + $0x298] sm:$0xff]
          %v4208 = vld [vmem:[#allocation20 + $0x2a0] sm:$0xff]
          %v4209 = vld [vmem:[#allocation20 + $0x2a8] sm:$0xff]
          %v4210 = vld [vmem:[#allocation20 + $0x2b0] sm:$0xff]
          %v4211 = vld [vmem:[#allocation20 + $0x2b8] sm:$0xff]
          %v4212 = vld [vmem:[#allocation20 + $0x2c0] sm:$0xff]
          %v4213 = vld [vmem:[#allocation20 + $0x2c8] sm:$0xff]
          %v4214 = vld [vmem:[#allocation20 + $0x2d0] sm:$0xff]
          %v4215 = vld [vmem:[#allocation20 + $0x2d8] sm:$0xff]
          %v4216 = vld [vmem:[#allocation20 + $0x2e0] sm:$0xff]
          %v4217 = vld [vmem:[#allocation20 + $0x2e8] sm:$0xff]
          %v4218 = vld [vmem:[#allocation20 + $0x2f0] sm:$0xff]
          %v4219 = vld [vmem:[#allocation20 + $0x2f8] sm:$0xff]
          %v4220 = vld [vmem:[#allocation20 + $0x300] sm:$0xff]
          %v4221 = vld [vmem:[#allocation20 + $0x308] sm:$0xff]
          %v4222 = vld [vmem:[#allocation20 + $0x310] sm:$0xff]
          %v4223 = vld [vmem:[#allocation20 + $0x318] sm:$0xff]
          %v4224 = vld [vmem:[#allocation20 + $0x320] sm:$0xff]
          %v4225 = vld [vmem:[#allocation20 + $0x328] sm:$0xff]
          %v4226 = vld [vmem:[#allocation20 + $0x330] sm:$0xff]
          %v4227 = vld [vmem:[#allocation20 + $0x338] sm:$0xff]
          %v4228 = vld [vmem:[#allocation20 + $0x340] sm:$0xff]
          %v4229 = vld [vmem:[#allocation20 + $0x348] sm:$0xff]
          %v4230 = vld [vmem:[#allocation20 + $0x350] sm:$0xff]
          %v4231 = vld [vmem:[#allocation20 + $0x358] sm:$0xff]
          %v4232 = vld [vmem:[#allocation20 + $0x360] sm:$0xff]
          %v4233 = vld [vmem:[#allocation20 + $0x368] sm:$0xff]
          %v4234 = vld [vmem:[#allocation20 + $0x370] sm:$0xff]
          %v4235 = vld [vmem:[#allocation20 + $0x378] sm:$0xff]
          %v4236 = vld [vmem:[#allocation20 + $0x380] sm:$0xff]
          %v4237 = vld [vmem:[#allocation20 + $0x388] sm:$0xff]
          %v4238 = vld [vmem:[#allocation20 + $0x390] sm:$0xff]
          %v4239 = vld [vmem:[#allocation20 + $0x398] sm:$0xff]
          %v4240 = vld [vmem:[#allocation20 + $0x3a0] sm:$0xff]
          %v4241 = vld [vmem:[#allocation20 + $0x3a8] sm:$0xff]
          %v4242 = vld [vmem:[#allocation20 + $0x3b0] sm:$0xff]
          %v4243 = vld [vmem:[#allocation20 + $0x3b8] sm:$0xff]
          %v4244 = vld [vmem:[#allocation20 + $0x3c0] sm:$0xff]
          %v4245 = vld [vmem:[#allocation20 + $0x3c8] sm:$0xff]
          %v4246 = vld [vmem:[#allocation20 + $0x3d0] sm:$0xff]
          %v4247 = vld [vmem:[#allocation20 + $0x3d8] sm:$0xff]
          %v4248 = vld [vmem:[#allocation20 + $0x3e0] sm:$0xff]
          %v4249 = vld [vmem:[#allocation20 + $0x3e8] sm:$0xff]
          %v4250 = vld [vmem:[#allocation20 + $0x3f0] sm:$0xff]
          %v4251 = vld [vmem:[#allocation20 + $0x3f8] sm:$0xff]
          %v4252 = vld [vmem:[#allocation21] sm:$0xff]
          %v4253 = vpack.c.bf16 %v4104, %v4104
          %v4254 = vpack.c.bf16 %v4105, %v4105
          %v4255 = vpack.c.bf16 %v4108, %v4108
          %v4256 = vpack.c.bf16 %v4109, %v4109
          %v4258 = vlaneseq
          %v4259 = vshrl.u32 %v4258, 7
          %v4260 = vsub.s32 0, %v4259
          %v4261 = vrot.slane %v4252, %v4260
          %v4262 = vlaneseq
          %v4263 = vshrl.u32 %v4262, 7
          %v4264 = vsub.s32 1, %v4263
          %v4265 = vrot.slane %v4252, %v4264
          %v4266 = vlaneseq
          %v4267 = vshrl.u32 %v4266, 7
          %v4268 = vsub.s32 2, %v4267
          %v4269 = vrot.slane %v4252, %v4268
          %v4270 = vlaneseq
          %v4271 = vshrl.u32 %v4270, 7
          %v4272 = vsub.s32 3, %v4271
          %v4273 = vrot.slane %v4252, %v4272
          %v4274 = vlaneseq
          %v4275 = vshrl.u32 %v4274, 7
          %v4276 = vsub.s32 4, %v4275
          %v4277 = vrot.slane %v4252, %v4276
          %v4278 = vlaneseq
          %v4279 = vshrl.u32 %v4278, 7
          %v4280 = vsub.s32 5, %v4279
          %v4281 = vrot.slane %v4252, %v4280
          %v4282 = vlaneseq
          %v4283 = vshrl.u32 %v4282, 7
          %v4284 = vsub.s32 6, %v4283
          %v4285 = vrot.slane %v4252, %v4284
          %v4286 = vlaneseq
          %v4287 = vshrl.u32 %v4286, 7
          %v4288 = vsub.s32 7, %v4287
          %v4289 = vrot.slane %v4252, %v4288
          %v4302 = vunpack.c.l.b16 %v4253
          %v4303 = vunpack.c.l.b16 %v4254
          %v4304 = vunpack.c.l.b16 %v4255
          %v4305 = vunpack.c.l.b16 %v4256
          %v4306 = vrot.slane %v4304, 7
          %vm4307 = vcmask 1041409
          %v4308 = vsel %vm4307, %v4306, %v4302
          %v4309 = vrot.slane %v4305, 7
          %v4310 = vsel %vm4307, %v4309, %v4303
          %v4311 = vpack.c.b16 %v4308, %v4308
          %v4312 = vpack.c.b16 %v4310, %v4310
          %v4443 = vunpack.c.l.b16 %v4124
          %v4444 = vunpack.c.h.b16 %v4124
          %v4445 = vunpack.c.l.b16 %v4125
          %v4446 = vunpack.c.h.b16 %v4125
          %v4447 = vunpack.c.l.b16 %v4126
          %v4448 = vunpack.c.h.b16 %v4126
          %v4449 = vunpack.c.l.b16 %v4127
          %v4450 = vunpack.c.h.b16 %v4127
          %v4451 = vunpack.c.l.b16 %v4128
          %v4452 = vunpack.c.h.b16 %v4128
          %v4453 = vunpack.c.l.b16 %v4129
          %v4454 = vunpack.c.h.b16 %v4129
          %v4455 = vunpack.c.l.b16 %v4130
          %v4456 = vunpack.c.h.b16 %v4130
          %v4457 = vunpack.c.l.b16 %v4131
          %v4458 = vunpack.c.h.b16 %v4131
          %v4459 = vunpack.c.l.b16 %v4132
          %v4460 = vunpack.c.h.b16 %v4132
          %v4461 = vunpack.c.l.b16 %v4133
          %v4462 = vunpack.c.h.b16 %v4133
          %v4463 = vunpack.c.l.b16 %v4134
          %v4464 = vunpack.c.h.b16 %v4134
          %v4465 = vunpack.c.l.b16 %v4135
          %v4466 = vunpack.c.h.b16 %v4135
          %v4467 = vunpack.c.l.b16 %v4136
          %v4468 = vunpack.c.h.b16 %v4136
          %v4469 = vunpack.c.l.b16 %v4137
          %v4470 = vunpack.c.h.b16 %v4137
          %v4471 = vunpack.c.l.b16 %v4138
          %v4472 = vunpack.c.h.b16 %v4138
          %v4473 = vunpack.c.l.b16 %v4139
          %v4474 = vunpack.c.h.b16 %v4139
          %v4475 = vunpack.c.l.b16 %v4140
          %v4476 = vunpack.c.h.b16 %v4140
          %v4477 = vunpack.c.l.b16 %v4141
          %v4478 = vunpack.c.h.b16 %v4141
          %v4479 = vunpack.c.l.b16 %v4142
          %v4480 = vunpack.c.h.b16 %v4142
          %v4481 = vunpack.c.l.b16 %v4143
          %v4482 = vunpack.c.h.b16 %v4143
          %v4483 = vunpack.c.l.b16 %v4144
          %v4484 = vunpack.c.h.b16 %v4144
          %v4485 = vunpack.c.l.b16 %v4145
          %v4486 = vunpack.c.h.b16 %v4145
          %v4487 = vunpack.c.l.b16 %v4146
          %v4488 = vunpack.c.h.b16 %v4146
          %v4489 = vunpack.c.l.b16 %v4147
          %v4490 = vunpack.c.h.b16 %v4147
          %v4491 = vunpack.c.l.b16 %v4148
          %v4492 = vunpack.c.h.b16 %v4148
          %v4493 = vunpack.c.l.b16 %v4149
          %v4494 = vunpack.c.h.b16 %v4149
          %v4495 = vunpack.c.l.b16 %v4150
          %v4496 = vunpack.c.h.b16 %v4150
          %v4497 = vunpack.c.l.b16 %v4151
          %v4498 = vunpack.c.h.b16 %v4151
          %v4499 = vunpack.c.l.b16 %v4152
          %v4500 = vunpack.c.h.b16 %v4152
          %v4501 = vunpack.c.l.b16 %v4153
          %v4502 = vunpack.c.h.b16 %v4153
          %v4503 = vunpack.c.l.b16 %v4154
          %v4504 = vunpack.c.h.b16 %v4154
          %v4505 = vunpack.c.l.b16 %v4155
          %v4506 = vunpack.c.h.b16 %v4155
          %v4507 = vunpack.c.l.b16 %v4156
          %v4508 = vunpack.c.h.b16 %v4156
          %v4509 = vunpack.c.l.b16 %v4157
          %v4510 = vunpack.c.h.b16 %v4157
          %v4511 = vunpack.c.l.b16 %v4158
          %v4512 = vunpack.c.h.b16 %v4158
          %v4513 = vunpack.c.l.b16 %v4159
          %v4514 = vunpack.c.h.b16 %v4159
          %v4515 = vunpack.c.l.b16 %v4160
          %v4516 = vunpack.c.h.b16 %v4160
          %v4517 = vunpack.c.l.b16 %v4161
          %v4518 = vunpack.c.h.b16 %v4161
          %v4519 = vunpack.c.l.b16 %v4162
          %v4520 = vunpack.c.h.b16 %v4162
          %v4521 = vunpack.c.l.b16 %v4163
          %v4522 = vunpack.c.h.b16 %v4163
          %v4523 = vunpack.c.l.b16 %v4164
          %v4524 = vunpack.c.h.b16 %v4164
          %v4525 = vunpack.c.l.b16 %v4165
          %v4526 = vunpack.c.h.b16 %v4165
          %v4527 = vunpack.c.l.b16 %v4166
          %v4528 = vunpack.c.h.b16 %v4166
          %v4529 = vunpack.c.l.b16 %v4167
          %v4530 = vunpack.c.h.b16 %v4167
          %v4531 = vunpack.c.l.b16 %v4168
          %v4532 = vunpack.c.h.b16 %v4168
          %v4533 = vunpack.c.l.b16 %v4169
          %v4534 = vunpack.c.h.b16 %v4169
          %v4535 = vunpack.c.l.b16 %v4170
          %v4536 = vunpack.c.h.b16 %v4170
          %v4537 = vunpack.c.l.b16 %v4171
          %v4538 = vunpack.c.h.b16 %v4171
          %v4539 = vunpack.c.l.b16 %v4172
          %v4540 = vunpack.c.h.b16 %v4172
          %v4541 = vunpack.c.l.b16 %v4173
          %v4542 = vunpack.c.h.b16 %v4173
          %v4543 = vunpack.c.l.b16 %v4174
          %v4544 = vunpack.c.h.b16 %v4174
          %v4545 = vunpack.c.l.b16 %v4175
          %v4546 = vunpack.c.h.b16 %v4175
          %v4547 = vunpack.c.l.b16 %v4176
          %v4548 = vunpack.c.h.b16 %v4176
          %v4549 = vunpack.c.l.b16 %v4177
          %v4550 = vunpack.c.h.b16 %v4177
          %v4551 = vunpack.c.l.b16 %v4178
          %v4552 = vunpack.c.h.b16 %v4178
          %v4553 = vunpack.c.l.b16 %v4179
          %v4554 = vunpack.c.h.b16 %v4179
          %v4555 = vunpack.c.l.b16 %v4180
          %v4556 = vunpack.c.h.b16 %v4180
          %v4557 = vunpack.c.l.b16 %v4181
          %v4558 = vunpack.c.h.b16 %v4181
          %v4559 = vunpack.c.l.b16 %v4182
          %v4560 = vunpack.c.h.b16 %v4182
          %v4561 = vunpack.c.l.b16 %v4183
          %v4562 = vunpack.c.h.b16 %v4183
          %v4563 = vunpack.c.l.b16 %v4184
          %v4564 = vunpack.c.h.b16 %v4184
          %v4565 = vunpack.c.l.b16 %v4185
          %v4566 = vunpack.c.h.b16 %v4185
          %v4567 = vunpack.c.l.b16 %v4186
          %v4568 = vunpack.c.h.b16 %v4186
          %v4569 = vunpack.c.l.b16 %v4187
          %v4570 = vunpack.c.h.b16 %v4187
          %v4571 = vunpack.c.l.b16 %v4188
          %v4572 = vunpack.c.h.b16 %v4188
          %v4573 = vunpack.c.l.b16 %v4189
          %v4574 = vunpack.c.h.b16 %v4189
          %v4575 = vunpack.c.l.b16 %v4190
          %v4576 = vunpack.c.h.b16 %v4190
          %v4577 = vunpack.c.l.b16 %v4191
          %v4578 = vunpack.c.h.b16 %v4191
          %v4579 = vunpack.c.l.b16 %v4192
          %v4580 = vunpack.c.h.b16 %v4192
          %v4581 = vunpack.c.l.b16 %v4193
          %v4582 = vunpack.c.h.b16 %v4193
          %v4583 = vunpack.c.l.b16 %v4194
          %v4584 = vunpack.c.h.b16 %v4194
          %v4585 = vunpack.c.l.b16 %v4195
          %v4586 = vunpack.c.h.b16 %v4195
          %v4587 = vunpack.c.l.b16 %v4196
          %v4588 = vunpack.c.h.b16 %v4196
          %v4589 = vunpack.c.l.b16 %v4197
          %v4590 = vunpack.c.h.b16 %v4197
          %v4591 = vunpack.c.l.b16 %v4198
          %v4592 = vunpack.c.h.b16 %v4198
          %v4593 = vunpack.c.l.b16 %v4199
          %v4594 = vunpack.c.h.b16 %v4199
          %v4595 = vunpack.c.l.b16 %v4200
          %v4596 = vunpack.c.h.b16 %v4200
          %v4597 = vunpack.c.l.b16 %v4201
          %v4598 = vunpack.c.h.b16 %v4201
          %v4599 = vunpack.c.l.b16 %v4202
          %v4600 = vunpack.c.h.b16 %v4202
          %v4601 = vunpack.c.l.b16 %v4203
          %v4602 = vunpack.c.h.b16 %v4203
          %v4603 = vunpack.c.l.b16 %v4204
          %v4604 = vunpack.c.h.b16 %v4204
          %v4605 = vunpack.c.l.b16 %v4205
          %v4606 = vunpack.c.h.b16 %v4205
          %v4607 = vunpack.c.l.b16 %v4206
          %v4608 = vunpack.c.h.b16 %v4206
          %v4609 = vunpack.c.l.b16 %v4207
          %v4610 = vunpack.c.h.b16 %v4207
          %v4611 = vunpack.c.l.b16 %v4208
          %v4612 = vunpack.c.h.b16 %v4208
          %v4613 = vunpack.c.l.b16 %v4209
          %v4614 = vunpack.c.h.b16 %v4209
          %v4615 = vunpack.c.l.b16 %v4210
          %v4616 = vunpack.c.h.b16 %v4210
          %v4617 = vunpack.c.l.b16 %v4211
          %v4618 = vunpack.c.h.b16 %v4211
          %v4619 = vunpack.c.l.b16 %v4212
          %v4620 = vunpack.c.h.b16 %v4212
          %v4621 = vunpack.c.l.b16 %v4213
          %v4622 = vunpack.c.h.b16 %v4213
          %v4623 = vunpack.c.l.b16 %v4214
          %v4624 = vunpack.c.h.b16 %v4214
          %v4625 = vunpack.c.l.b16 %v4215
          %v4626 = vunpack.c.h.b16 %v4215
          %v4627 = vunpack.c.l.b16 %v4216
          %v4628 = vunpack.c.h.b16 %v4216
          %v4629 = vunpack.c.l.b16 %v4217
          %v4630 = vunpack.c.h.b16 %v4217
          %v4631 = vunpack.c.l.b16 %v4218
          %v4632 = vunpack.c.h.b16 %v4218
          %v4633 = vunpack.c.l.b16 %v4219
          %v4634 = vunpack.c.h.b16 %v4219
          %v4635 = vunpack.c.l.b16 %v4220
          %v4636 = vunpack.c.h.b16 %v4220
          %v4637 = vunpack.c.l.b16 %v4221
          %v4638 = vunpack.c.h.b16 %v4221
          %v4639 = vunpack.c.l.b16 %v4222
          %v4640 = vunpack.c.h.b16 %v4222
          %v4641 = vunpack.c.l.b16 %v4223
          %v4642 = vunpack.c.h.b16 %v4223
          %v4643 = vunpack.c.l.b16 %v4224
          %v4644 = vunpack.c.h.b16 %v4224
          %v4645 = vunpack.c.l.b16 %v4225
          %v4646 = vunpack.c.h.b16 %v4225
          %v4647 = vunpack.c.l.b16 %v4226
          %v4648 = vunpack.c.h.b16 %v4226
          %v4649 = vunpack.c.l.b16 %v4227
          %v4650 = vunpack.c.h.b16 %v4227
          %v4651 = vunpack.c.l.b16 %v4228
          %v4652 = vunpack.c.h.b16 %v4228
          %v4653 = vunpack.c.l.b16 %v4229
          %v4654 = vunpack.c.h.b16 %v4229
          %v4655 = vunpack.c.l.b16 %v4230
          %v4656 = vunpack.c.h.b16 %v4230
          %v4657 = vunpack.c.l.b16 %v4231
          %v4658 = vunpack.c.h.b16 %v4231
          %v4659 = vunpack.c.l.b16 %v4232
          %v4660 = vunpack.c.h.b16 %v4232
          %v4661 = vunpack.c.l.b16 %v4233
          %v4662 = vunpack.c.h.b16 %v4233
          %v4663 = vunpack.c.l.b16 %v4234
          %v4664 = vunpack.c.h.b16 %v4234
          %v4665 = vunpack.c.l.b16 %v4235
          %v4666 = vunpack.c.h.b16 %v4235
          %v4667 = vunpack.c.l.b16 %v4236
          %v4668 = vunpack.c.h.b16 %v4236
          %v4669 = vunpack.c.l.b16 %v4237
          %v4670 = vunpack.c.h.b16 %v4237
          %v4671 = vunpack.c.l.b16 %v4238
          %v4672 = vunpack.c.h.b16 %v4238
          %v4673 = vunpack.c.l.b16 %v4239
          %v4674 = vunpack.c.h.b16 %v4239
          %v4675 = vunpack.c.l.b16 %v4240
          %v4676 = vunpack.c.h.b16 %v4240
          %v4677 = vunpack.c.l.b16 %v4241
          %v4678 = vunpack.c.h.b16 %v4241
          %v4679 = vunpack.c.l.b16 %v4242
          %v4680 = vunpack.c.h.b16 %v4242
          %v4681 = vunpack.c.l.b16 %v4243
          %v4682 = vunpack.c.h.b16 %v4243
          %v4683 = vunpack.c.l.b16 %v4244
          %v4684 = vunpack.c.h.b16 %v4244
          %v4685 = vunpack.c.l.b16 %v4245
          %v4686 = vunpack.c.h.b16 %v4245
          %v4687 = vunpack.c.l.b16 %v4246
          %v4688 = vunpack.c.h.b16 %v4246
          %v4689 = vunpack.c.l.b16 %v4247
          %v4690 = vunpack.c.h.b16 %v4247
          %v4691 = vunpack.c.l.b16 %v4248
          %v4692 = vunpack.c.h.b16 %v4248
          %v4693 = vunpack.c.l.b16 %v4249
          %v4694 = vunpack.c.h.b16 %v4249
          %v4695 = vunpack.c.l.b16 %v4250
          %v4696 = vunpack.c.h.b16 %v4250
          %v4697 = vunpack.c.l.b16 %v4251
          %v4698 = vunpack.c.h.b16 %v4251
          %v4699 = vpack.c.b16 %v4445, %v4443
          %v4700 = vpack.c.b16 %v4446, %v4444
          %v4701 = vpack.c.b16 %v4449, %v4447
          %v4702 = vpack.c.b16 %v4450, %v4448
          %v4703 = vpack.c.b16 %v4453, %v4451
          %v4704 = vpack.c.b16 %v4454, %v4452
          %v4705 = vpack.c.b16 %v4457, %v4455
          %v4706 = vpack.c.b16 %v4458, %v4456
          %v4707 = vpack.c.b16 %v4461, %v4459
          %v4708 = vpack.c.b16 %v4462, %v4460
          %v4709 = vpack.c.b16 %v4465, %v4463
          %v4710 = vpack.c.b16 %v4466, %v4464
          %v4711 = vpack.c.b16 %v4469, %v4467
          %v4712 = vpack.c.b16 %v4470, %v4468
          %v4713 = vpack.c.b16 %v4473, %v4471
          %v4714 = vpack.c.b16 %v4474, %v4472
          %v4715 = vpack.c.b16 %v4477, %v4475
          %v4716 = vpack.c.b16 %v4478, %v4476
          %v4717 = vpack.c.b16 %v4481, %v4479
          %v4718 = vpack.c.b16 %v4482, %v4480
          %v4719 = vpack.c.b16 %v4485, %v4483
          %v4720 = vpack.c.b16 %v4486, %v4484
          %v4721 = vpack.c.b16 %v4489, %v4487
          %v4722 = vpack.c.b16 %v4490, %v4488
          %v4723 = vpack.c.b16 %v4493, %v4491
          %v4724 = vpack.c.b16 %v4494, %v4492
          %v4725 = vpack.c.b16 %v4497, %v4495
          %v4726 = vpack.c.b16 %v4498, %v4496
          %v4727 = vpack.c.b16 %v4501, %v4499
          %v4728 = vpack.c.b16 %v4502, %v4500
          %v4729 = vpack.c.b16 %v4505, %v4503
          %v4730 = vpack.c.b16 %v4506, %v4504
          %v4731 = vpack.c.b16 %v4509, %v4507
          %v4732 = vpack.c.b16 %v4510, %v4508
          %v4733 = vpack.c.b16 %v4513, %v4511
          %v4734 = vpack.c.b16 %v4514, %v4512
          %v4735 = vpack.c.b16 %v4517, %v4515
          %v4736 = vpack.c.b16 %v4518, %v4516
          %v4737 = vpack.c.b16 %v4521, %v4519
          %v4738 = vpack.c.b16 %v4522, %v4520
          %v4739 = vpack.c.b16 %v4525, %v4523
          %v4740 = vpack.c.b16 %v4526, %v4524
          %v4741 = vpack.c.b16 %v4529, %v4527
          %v4742 = vpack.c.b16 %v4530, %v4528
          %v4743 = vpack.c.b16 %v4533, %v4531
          %v4744 = vpack.c.b16 %v4534, %v4532
          %v4745 = vpack.c.b16 %v4537, %v4535
          %v4746 = vpack.c.b16 %v4538, %v4536
          %v4747 = vpack.c.b16 %v4541, %v4539
          %v4748 = vpack.c.b16 %v4542, %v4540
          %v4749 = vpack.c.b16 %v4545, %v4543
          %v4750 = vpack.c.b16 %v4546, %v4544
          %v4751 = vpack.c.b16 %v4549, %v4547
          %v4752 = vpack.c.b16 %v4550, %v4548
          %v4753 = vpack.c.b16 %v4553, %v4551
          %v4754 = vpack.c.b16 %v4554, %v4552
          %v4755 = vpack.c.b16 %v4557, %v4555
          %v4756 = vpack.c.b16 %v4558, %v4556
          %v4757 = vpack.c.b16 %v4561, %v4559
          %v4758 = vpack.c.b16 %v4562, %v4560
          %v4759 = vpack.c.b16 %v4565, %v4563
          %v4760 = vpack.c.b16 %v4566, %v4564
          %v4761 = vpack.c.b16 %v4569, %v4567
          %v4762 = vpack.c.b16 %v4570, %v4568
          %v4763 = vpack.c.b16 %v4573, %v4571
          %v4764 = vpack.c.b16 %v4574, %v4572
          %v4765 = vpack.c.b16 %v4577, %v4575
          %v4766 = vpack.c.b16 %v4578, %v4576
          %v4767 = vpack.c.b16 %v4581, %v4579
          %v4768 = vpack.c.b16 %v4582, %v4580
          %v4769 = vpack.c.b16 %v4585, %v4583
          %v4770 = vpack.c.b16 %v4586, %v4584
          %v4771 = vpack.c.b16 %v4589, %v4587
          %v4772 = vpack.c.b16 %v4590, %v4588
          %v4773 = vpack.c.b16 %v4593, %v4591
          %v4774 = vpack.c.b16 %v4594, %v4592
          %v4775 = vpack.c.b16 %v4597, %v4595
          %v4776 = vpack.c.b16 %v4598, %v4596
          %v4777 = vpack.c.b16 %v4601, %v4599
          %v4778 = vpack.c.b16 %v4602, %v4600
          %v4779 = vpack.c.b16 %v4605, %v4603
          %v4780 = vpack.c.b16 %v4606, %v4604
          %v4781 = vpack.c.b16 %v4609, %v4607
          %v4782 = vpack.c.b16 %v4610, %v4608
          %v4783 = vpack.c.b16 %v4613, %v4611
          %v4784 = vpack.c.b16 %v4614, %v4612
          %v4785 = vpack.c.b16 %v4617, %v4615
          %v4786 = vpack.c.b16 %v4618, %v4616
          %v4787 = vpack.c.b16 %v4621, %v4619
          %v4788 = vpack.c.b16 %v4622, %v4620
          %v4789 = vpack.c.b16 %v4625, %v4623
          %v4790 = vpack.c.b16 %v4626, %v4624
          %v4791 = vpack.c.b16 %v4629, %v4627
          %v4792 = vpack.c.b16 %v4630, %v4628
          %v4793 = vpack.c.b16 %v4633, %v4631
          %v4794 = vpack.c.b16 %v4634, %v4632
          %v4795 = vpack.c.b16 %v4637, %v4635
          %v4796 = vpack.c.b16 %v4638, %v4636
          %v4797 = vpack.c.b16 %v4641, %v4639
          %v4798 = vpack.c.b16 %v4642, %v4640
          %v4799 = vpack.c.b16 %v4645, %v4643
          %v4800 = vpack.c.b16 %v4646, %v4644
          %v4801 = vpack.c.b16 %v4649, %v4647
          %v4802 = vpack.c.b16 %v4650, %v4648
          %v4803 = vpack.c.b16 %v4653, %v4651
          %v4804 = vpack.c.b16 %v4654, %v4652
          %v4805 = vpack.c.b16 %v4657, %v4655
          %v4806 = vpack.c.b16 %v4658, %v4656
          %v4807 = vpack.c.b16 %v4661, %v4659
          %v4808 = vpack.c.b16 %v4662, %v4660
          %v4809 = vpack.c.b16 %v4665, %v4663
          %v4810 = vpack.c.b16 %v4666, %v4664
          %v4811 = vpack.c.b16 %v4669, %v4667
          %v4812 = vpack.c.b16 %v4670, %v4668
          %v4813 = vpack.c.b16 %v4673, %v4671
          %v4814 = vpack.c.b16 %v4674, %v4672
          %v4815 = vpack.c.b16 %v4677, %v4675
          %v4816 = vpack.c.b16 %v4678, %v4676
          %v4817 = vpack.c.b16 %v4681, %v4679
          %v4818 = vpack.c.b16 %v4682, %v4680
          %v4819 = vpack.c.b16 %v4685, %v4683
          %v4820 = vpack.c.b16 %v4686, %v4684
          %v4821 = vpack.c.b16 %v4689, %v4687
          %v4822 = vpack.c.b16 %v4690, %v4688
          %v4823 = vpack.c.b16 %v4693, %v4691
          %v4824 = vpack.c.b16 %v4694, %v4692
          %v4825 = vpack.c.b16 %v4697, %v4695
          %v4826 = vpack.c.b16 %v4698, %v4696
          %4955 = vmatprep.subr.bf16.mxu0 %v4700
          %4956 = vmatpush1.bf16.xpose.msra.mxu0 %v4699
          %4957 = vmatprep.subr.bf16.mxu0 %v4702
          %4958 = vmatpush1.bf16.xpose.msra.mxu0 %v4701
          %4959 = vmatprep.subr.bf16.mxu0 %v4704
          %4960 = vmatpush1.bf16.xpose.msra.mxu0 %v4703
          %4961 = vmatprep.subr.bf16.mxu0 %v4706
          %4962 = vmatpush1.bf16.xpose.msra.mxu0 %v4705
          %4963 = vmatprep.subr.bf16.mxu0 %v4708
          %4964 = vmatpush1.bf16.xpose.msra.mxu0 %v4707
          %4965 = vmatprep.subr.bf16.mxu0 %v4710
          %4966 = vmatpush1.bf16.xpose.msra.mxu0 %v4709
          %4967 = vmatprep.subr.bf16.mxu0 %v4712
          %4968 = vmatpush1.bf16.xpose.msra.mxu0 %v4711
          %4969 = vmatprep.subr.bf16.mxu0 %v4714
          %4970 = vmatpush1.bf16.xpose.msra.mxu0 %v4713
          %4971 = vmatprep.subr.bf16.mxu0 %v4716
          %4972 = vmatpush1.bf16.xpose.msra.mxu0 %v4715
          %4973 = vmatprep.subr.bf16.mxu0 %v4718
          %4974 = vmatpush1.bf16.xpose.msra.mxu0 %v4717
          %4975 = vmatprep.subr.bf16.mxu0 %v4720
          %4976 = vmatpush1.bf16.xpose.msra.mxu0 %v4719
          %4977 = vmatprep.subr.bf16.mxu0 %v4722
          %4978 = vmatpush1.bf16.xpose.msra.mxu0 %v4721
          %4979 = vmatprep.subr.bf16.mxu0 %v4724
          %4980 = vmatpush1.bf16.xpose.msra.mxu0 %v4723
          %4981 = vmatprep.subr.bf16.mxu0 %v4726
          %4982 = vmatpush1.bf16.xpose.msra.mxu0 %v4725
          %4983 = vmatprep.subr.bf16.mxu0 %v4728
          %4984 = vmatpush1.bf16.xpose.msra.mxu0 %v4727
          %4985 = vmatprep.subr.bf16.mxu0 %v4730
          %4986 = vmatpush1.bf16.xpose.msra.mxu0 %v4729
          %4987 = vmatprep.mubr.bf16.mxu0 %v4312
          %4988 = vmatmul.mubr.bf16.gmra.mrb[0].mxu0 %v4311
          %v4989 = vpop.f32.mrb[0].mxu0
          %v4990 = vadd.f32 %v4261, %v4989
          %v4991 = vpop.f32.mrb[0].mxu0
          %v4992 = vadd.f32 %v4265, %v4991
          %v4993 = vpop.f32.mrb[0].mxu0
          %v4994 = vpop.f32.mrb[0].mxu0
          %4995 = vdwg.mxu0
          %4996 = vmatprep.subr.bf16.mxu0 %v4732
          %4997 = vmatpush1.bf16.xpose.msra.mxu0 %v4731
          %4998 = vmatprep.subr.bf16.mxu0 %v4734
          %4999 = vmatpush1.bf16.xpose.msra.mxu0 %v4733
          %5000 = vmatprep.subr.bf16.mxu0 %v4736
          %5001 = vmatpush1.bf16.xpose.msra.mxu0 %v4735
          %5002 = vmatprep.subr.bf16.mxu0 %v4738
          %5003 = vmatpush1.bf16.xpose.msra.mxu0 %v4737
          %5004 = vmatprep.subr.bf16.mxu0 %v4740
          %5005 = vmatpush1.bf16.xpose.msra.mxu0 %v4739
          %5006 = vmatprep.subr.bf16.mxu0 %v4742
          %5007 = vmatpush1.bf16.xpose.msra.mxu0 %v4741
          %5008 = vmatprep.subr.bf16.mxu0 %v4744
          %5009 = vmatpush1.bf16.xpose.msra.mxu0 %v4743
          %5010 = vmatprep.subr.bf16.mxu0 %v4746
          %5011 = vmatpush1.bf16.xpose.msra.mxu0 %v4745
          %5012 = vmatprep.subr.bf16.mxu0 %v4748
          %5013 = vmatpush1.bf16.xpose.msra.mxu0 %v4747
          %5014 = vmatprep.subr.bf16.mxu0 %v4750
          %5015 = vmatpush1.bf16.xpose.msra.mxu0 %v4749
          %5016 = vmatprep.subr.bf16.mxu0 %v4752
          %5017 = vmatpush1.bf16.xpose.msra.mxu0 %v4751
          %5018 = vmatprep.subr.bf16.mxu0 %v4754
          %5019 = vmatpush1.bf16.xpose.msra.mxu0 %v4753
          %5020 = vmatprep.subr.bf16.mxu0 %v4756
          %5021 = vmatpush1.bf16.xpose.msra.mxu0 %v4755
          %5022 = vmatprep.subr.bf16.mxu0 %v4758
          %5023 = vmatpush1.bf16.xpose.msra.mxu0 %v4757
          %5024 = vmatprep.subr.bf16.mxu0 %v4760
          %5025 = vmatpush1.bf16.xpose.msra.mxu0 %v4759
          %5026 = vmatprep.subr.bf16.mxu0 %v4762
          %5027 = vmatpush1.bf16.xpose.msra.mxu0 %v4761
          %5028 = vmatprep.mubr.bf16.mxu0 %v4312
          %5029 = vmatmul.mubr.bf16.gmra.mrb[0].mxu0 %v4311
          %v5030 = vpop.f32.mrb[0].mxu0
          %v5031 = vadd.f32 %v4269, %v5030
          %v5032 = vpop.f32.mrb[0].mxu0
          %v5033 = vadd.f32 %v4273, %v5032
          %v5034 = vpop.f32.mrb[0].mxu0
          %v5035 = vpop.f32.mrb[0].mxu0
          %5036 = vdwg.mxu0
          %5037 = vmatprep.subr.bf16.mxu0 %v4764
          %5038 = vmatpush1.bf16.xpose.msra.mxu0 %v4763
          %5039 = vmatprep.subr.bf16.mxu0 %v4766
          %5040 = vmatpush1.bf16.xpose.msra.mxu0 %v4765
          %5041 = vmatprep.subr.bf16.mxu0 %v4768
          %5042 = vmatpush1.bf16.xpose.msra.mxu0 %v4767
          %5043 = vmatprep.subr.bf16.mxu0 %v4770
          %5044 = vmatpush1.bf16.xpose.msra.mxu0 %v4769
          %5045 = vmatprep.subr.bf16.mxu0 %v4772
          %5046 = vmatpush1.bf16.xpose.msra.mxu0 %v4771
          %5047 = vmatprep.subr.bf16.mxu0 %v4774
          %5048 = vmatpush1.bf16.xpose.msra.mxu0 %v4773
          %5049 = vmatprep.subr.bf16.mxu0 %v4776
          %5050 = vmatpush1.bf16.xpose.msra.mxu0 %v4775
          %5051 = vmatprep.subr.bf16.mxu0 %v4778
          %5052 = vmatpush1.bf16.xpose.msra.mxu0 %v4777
          %5053 = vmatprep.subr.bf16.mxu0 %v4780
          %5054 = vmatpush1.bf16.xpose.msra.mxu0 %v4779
          %5055 = vmatprep.subr.bf16.mxu0 %v4782
          %5056 = vmatpush1.bf16.xpose.msra.mxu0 %v4781
          %5057 = vmatprep.subr.bf16.mxu0 %v4784
          %5058 = vmatpush1.bf16.xpose.msra.mxu0 %v4783
          %5059 = vmatprep.subr.bf16.mxu0 %v4786
          %5060 = vmatpush1.bf16.xpose.msra.mxu0 %v4785
          %5061 = vmatprep.subr.bf16.mxu0 %v4788
          %5062 = vmatpush1.bf16.xpose.msra.mxu0 %v4787
          %5063 = vmatprep.subr.bf16.mxu0 %v4790
          %5064 = vmatpush1.bf16.xpose.msra.mxu0 %v4789
          %5065 = vmatprep.subr.bf16.mxu0 %v4792
          %5066 = vmatpush1.bf16.xpose.msra.mxu0 %v4791
          %5067 = vmatprep.subr.bf16.mxu0 %v4794
          %5068 = vmatpush1.bf16.xpose.msra.mxu0 %v4793
          %5069 = vmatprep.mubr.bf16.mxu0 %v4312
          %5070 = vmatmul.mubr.bf16.gmra.mrb[0].mxu0 %v4311
          %v5071 = vpop.f32.mrb[0].mxu0
          %v5072 = vadd.f32 %v4277, %v5071
          %v5073 = vpop.f32.mrb[0].mxu0
          %v5074 = vadd.f32 %v4281, %v5073
          %v5075 = vpop.f32.mrb[0].mxu0
          %v5076 = vpop.f32.mrb[0].mxu0
          %5077 = vdwg.mxu0
          %5078 = vmatprep.subr.bf16.mxu0 %v4796
          %5079 = vmatpush1.bf16.xpose.msra.mxu0 %v4795
          %5080 = vmatprep.subr.bf16.mxu0 %v4798
          %5081 = vmatpush1.bf16.xpose.msra.mxu0 %v4797
          %5082 = vmatprep.subr.bf16.mxu0 %v4800
          %5083 = vmatpush1.bf16.xpose.msra.mxu0 %v4799
          %5084 = vmatprep.subr.bf16.mxu0 %v4802
          %5085 = vmatpush1.bf16.xpose.msra.mxu0 %v4801
          %5086 = vmatprep.subr.bf16.mxu0 %v4804
          %5087 = vmatpush1.bf16.xpose.msra.mxu0 %v4803
          %5088 = vmatprep.subr.bf16.mxu0 %v4806
          %5089 = vmatpush1.bf16.xpose.msra.mxu0 %v4805
          %5090 = vmatprep.subr.bf16.mxu0 %v4808
          %5091 = vmatpush1.bf16.xpose.msra.mxu0 %v4807
          %5092 = vmatprep.subr.bf16.mxu0 %v4810
          %5093 = vmatpush1.bf16.xpose.msra.mxu0 %v4809
          %5094 = vmatprep.subr.bf16.mxu0 %v4812
          %5095 = vmatpush1.bf16.xpose.msra.mxu0 %v4811
          %5096 = vmatprep.subr.bf16.mxu0 %v4814
          %5097 = vmatpush1.bf16.xpose.msra.mxu0 %v4813
          %5098 = vmatprep.subr.bf16.mxu0 %v4816
          %5099 = vmatpush1.bf16.xpose.msra.mxu0 %v4815
          %5100 = vmatprep.subr.bf16.mxu0 %v4818
          %5101 = vmatpush1.bf16.xpose.msra.mxu0 %v4817
          %5102 = vmatprep.subr.bf16.mxu0 %v4820
          %5103 = vmatpush1.bf16.xpose.msra.mxu0 %v4819
          %5104 = vmatprep.subr.bf16.mxu0 %v4822
          %5105 = vmatpush1.bf16.xpose.msra.mxu0 %v4821
          %5106 = vmatprep.subr.bf16.mxu0 %v4824
          %5107 = vmatpush1.bf16.xpose.msra.mxu0 %v4823
          %5108 = vmatprep.subr.bf16.mxu0 %v4826
          %5109 = vmatpush1.bf16.xpose.msra.mxu0 %v4825
          %5110 = vmatprep.mubr.bf16.mxu0 %v4312
          %5111 = vmatmul.mubr.bf16.gmra.mrb[0].mxu0 %v4311
          %v5112 = vpop.f32.mrb[0].mxu0
          %v5113 = vadd.f32 %v4285, %v5112
          %v5114 = vpop.f32.mrb[0].mxu0
          %v5115 = vadd.f32 %v4289, %v5114
          %v5116 = vpop.f32.mrb[0].mxu0
          %v5117 = vpop.f32.mrb[0].mxu0
          %5118 = vdwg.mxu0
          %v5119 = vmax.f32 %v4990, 0.0
          %v5120 = vmax.f32 %v4992, 0.0
          %v5121 = vmax.f32 %v5031, 0.0
          %v5122 = vmax.f32 %v5033, 0.0
          %v5123 = vmax.f32 %v5072, 0.0
          %v5124 = vmax.f32 %v5074, 0.0
          %v5125 = vmax.f32 %v5113, 0.0
          %v5126 = vmax.f32 %v5115, 0.0
          %v5127 = vld [vmem:[#allocation23] sm:$0xff]
          %v5128 = vld [vmem:[#allocation23 + $0x8] sm:$0xff]
          %v5129 = vld [vmem:[#allocation23 + $0x10] sm:$0xff]
          %v5130 = vld [vmem:[#allocation23 + $0x18] sm:$0xff]
          %v5131 = vld [vmem:[#allocation23 + $0x20] sm:$0xff]
          %v5132 = vld [vmem:[#allocation23 + $0x28] sm:$0xff]
          %v5133 = vld [vmem:[#allocation23 + $0x30] sm:$0xff]
          %v5134 = vld [vmem:[#allocation23 + $0x38] sm:$0xff]
          %v5135 = vld [vmem:[#allocation23 + $0x40] sm:$0xff]
          %v5136 = vld [vmem:[#allocation23 + $0x48] sm:$0xff]
          %v5137 = vld [vmem:[#allocation23 + $0x50] sm:$0xff]
          %v5138 = vld [vmem:[#allocation23 + $0x58] sm:$0xff]
          %v5139 = vld [vmem:[#allocation23 + $0x60] sm:$0xff]
          %v5140 = vld [vmem:[#allocation23 + $0x68] sm:$0xff]
          %v5141 = vld [vmem:[#allocation23 + $0x70] sm:$0xff]
          %v5142 = vld [vmem:[#allocation23 + $0x78] sm:$0xff]
          %v5143 = vld [vmem:[#allocation23 + $0x80] sm:$0xff]
          %v5144 = vld [vmem:[#allocation23 + $0x88] sm:$0xff]
          %v5145 = vld [vmem:[#allocation23 + $0x90] sm:$0xff]
          %v5146 = vld [vmem:[#allocation23 + $0x98] sm:$0xff]
          %v5147 = vld [vmem:[#allocation23 + $0xa0] sm:$0xff]
          %v5148 = vld [vmem:[#allocation23 + $0xa8] sm:$0xff]
          %v5149 = vld [vmem:[#allocation23 + $0xb0] sm:$0xff]
          %v5150 = vld [vmem:[#allocation23 + $0xb8] sm:$0xff]
          %v5151 = vld [vmem:[#allocation23 + $0xc0] sm:$0xff]
          %v5152 = vld [vmem:[#allocation23 + $0xc8] sm:$0xff]
          %v5153 = vld [vmem:[#allocation23 + $0xd0] sm:$0xff]
          %v5154 = vld [vmem:[#allocation23 + $0xd8] sm:$0xff]
          %v5155 = vld [vmem:[#allocation23 + $0xe0] sm:$0xff]
          %v5156 = vld [vmem:[#allocation23 + $0xe8] sm:$0xff]
          %v5157 = vld [vmem:[#allocation23 + $0xf0] sm:$0xff]
          %v5158 = vld [vmem:[#allocation23 + $0xf8] sm:$0xff]
          %v5159 = vld [vmem:[#allocation24] sm:$0x1]
          %v5160 = vpack.c.bf16 %v5119, %v5119
          %v5161 = vpack.c.bf16 %v5120, %v5120
          %v5162 = vpack.c.bf16 %v5121, %v5121
          %v5163 = vpack.c.bf16 %v5122, %v5122
          %v5164 = vpack.c.bf16 %v5123, %v5123
          %v5165 = vpack.c.bf16 %v5124, %v5124
          %v5166 = vpack.c.bf16 %v5125, %v5125
          %v5167 = vpack.c.bf16 %v5126, %v5126
          %v5169 = vlaneseq
          %v5170 = vshrl.u32 %v5169, 7
          %v5171 = vsub.s32 0, %v5170
          %v5172 = vrot.slane %v5159, %v5171
          %v5206 = vunpack.c.l.b16 %v5127
          %v5207 = vunpack.c.h.b16 %v5127
          %v5208 = vunpack.c.l.b16 %v5128
          %v5209 = vunpack.c.h.b16 %v5128
          %v5210 = vunpack.c.l.b16 %v5129
          %v5211 = vunpack.c.h.b16 %v5129
          %v5212 = vunpack.c.l.b16 %v5130
          %v5213 = vunpack.c.h.b16 %v5130
          %v5214 = vunpack.c.l.b16 %v5131
          %v5215 = vunpack.c.h.b16 %v5131
          %v5216 = vunpack.c.l.b16 %v5132
          %v5217 = vunpack.c.h.b16 %v5132
          %v5218 = vunpack.c.l.b16 %v5133
          %v5219 = vunpack.c.h.b16 %v5133
          %v5220 = vunpack.c.l.b16 %v5134
          %v5221 = vunpack.c.h.b16 %v5134
          %v5222 = vunpack.c.l.b16 %v5135
          %v5223 = vunpack.c.h.b16 %v5135
          %v5224 = vunpack.c.l.b16 %v5136
          %v5225 = vunpack.c.h.b16 %v5136
          %v5226 = vunpack.c.l.b16 %v5137
          %v5227 = vunpack.c.h.b16 %v5137
          %v5228 = vunpack.c.l.b16 %v5138
          %v5229 = vunpack.c.h.b16 %v5138
          %v5230 = vunpack.c.l.b16 %v5139
          %v5231 = vunpack.c.h.b16 %v5139
          %v5232 = vunpack.c.l.b16 %v5140
          %v5233 = vunpack.c.h.b16 %v5140
          %v5234 = vunpack.c.l.b16 %v5141
          %v5235 = vunpack.c.h.b16 %v5141
          %v5236 = vunpack.c.l.b16 %v5142
          %v5237 = vunpack.c.h.b16 %v5142
          %v5238 = vunpack.c.l.b16 %v5143
          %v5239 = vunpack.c.h.b16 %v5143
          %v5240 = vunpack.c.l.b16 %v5144
          %v5241 = vunpack.c.h.b16 %v5144
          %v5242 = vunpack.c.l.b16 %v5145
          %v5243 = vunpack.c.h.b16 %v5145
          %v5244 = vunpack.c.l.b16 %v5146
          %v5245 = vunpack.c.h.b16 %v5146
          %v5246 = vunpack.c.l.b16 %v5147
          %v5247 = vunpack.c.h.b16 %v5147
          %v5248 = vunpack.c.l.b16 %v5148
          %v5249 = vunpack.c.h.b16 %v5148
          %v5250 = vunpack.c.l.b16 %v5149
          %v5251 = vunpack.c.h.b16 %v5149
          %v5252 = vunpack.c.l.b16 %v5150
          %v5253 = vunpack.c.h.b16 %v5150
          %v5254 = vunpack.c.l.b16 %v5151
          %v5255 = vunpack.c.h.b16 %v5151
          %v5256 = vunpack.c.l.b16 %v5152
          %v5257 = vunpack.c.h.b16 %v5152
          %v5258 = vunpack.c.l.b16 %v5153
          %v5259 = vunpack.c.h.b16 %v5153
          %v5260 = vunpack.c.l.b16 %v5154
          %v5261 = vunpack.c.h.b16 %v5154
          %v5262 = vunpack.c.l.b16 %v5155
          %v5263 = vunpack.c.h.b16 %v5155
          %v5264 = vunpack.c.l.b16 %v5156
          %v5265 = vunpack.c.h.b16 %v5156
          %v5266 = vunpack.c.l.b16 %v5157
          %v5267 = vunpack.c.h.b16 %v5157
          %v5268 = vunpack.c.l.b16 %v5158
          %v5269 = vunpack.c.h.b16 %v5158
          %v5270 = vpack.c.b16 %v5214, %v5206
          %v5271 = vpack.c.b16 %v5215, %v5207
          %v5272 = vpack.c.b16 %v5216, %v5208
          %v5273 = vpack.c.b16 %v5217, %v5209
          %v5274 = vpack.c.b16 %v5218, %v5210
          %v5275 = vpack.c.b16 %v5219, %v5211
          %v5276 = vpack.c.b16 %v5220, %v5212
          %v5277 = vpack.c.b16 %v5221, %v5213
          %v5278 = vpack.c.b16 %v5230, %v5222
          %v5279 = vpack.c.b16 %v5231, %v5223
          %v5280 = vpack.c.b16 %v5232, %v5224
          %v5281 = vpack.c.b16 %v5233, %v5225
          %v5282 = vpack.c.b16 %v5234, %v5226
          %v5283 = vpack.c.b16 %v5235, %v5227
          %v5284 = vpack.c.b16 %v5236, %v5228
          %v5285 = vpack.c.b16 %v5237, %v5229
          %v5286 = vpack.c.b16 %v5246, %v5238
          %v5287 = vpack.c.b16 %v5247, %v5239
          %v5288 = vpack.c.b16 %v5248, %v5240
          %v5289 = vpack.c.b16 %v5249, %v5241
          %v5290 = vpack.c.b16 %v5250, %v5242
          %v5291 = vpack.c.b16 %v5251, %v5243
          %v5292 = vpack.c.b16 %v5252, %v5244
          %v5293 = vpack.c.b16 %v5253, %v5245
          %v5294 = vpack.c.b16 %v5262, %v5254
          %v5295 = vpack.c.b16 %v5263, %v5255
          %v5296 = vpack.c.b16 %v5264, %v5256
          %v5297 = vpack.c.b16 %v5265, %v5257
          %v5298 = vpack.c.b16 %v5266, %v5258
          %v5299 = vpack.c.b16 %v5267, %v5259
          %v5300 = vpack.c.b16 %v5268, %v5260
          %v5301 = vpack.c.b16 %v5269, %v5261
          %5334 = vmatprep.subr.bf16.mxu0 %v5271
          %5335 = vmatpush1.bf16.xpose.msra.mxu0 %v5270
          %5336 = vmatprep.subr.bf16.mxu0 %v5279
          %5337 = vmatpush1.bf16.xpose.msra.mxu0 %v5278
          %5338 = vmatprep.subr.bf16.mxu0 %v5287
          %5339 = vmatpush1.bf16.xpose.msra.mxu0 %v5286
          %5340 = vmatprep.subr.bf16.mxu0 %v5295
          %5341 = vmatpush1.bf16.xpose.msra.mxu0 %v5294
          %5342 = vmatprep.subr.bf16.mxu0 0
          %5343 = vmatpush1.bf16.xpose.msra.mxu0 0
          %5344 = vmatprep.subr.bf16.mxu0 0
          %5345 = vmatpush1.bf16.xpose.msra.mxu0 0
          %5346 = vmatprep.subr.bf16.mxu0 0
          %5347 = vmatpush1.bf16.xpose.msra.mxu0 0
          %5348 = vmatprep.subr.bf16.mxu0 0
          %5349 = vmatpush1.bf16.xpose.msra.mxu0 0
          %5350 = vmatprep.subr.bf16.mxu0 0
          %5351 = vmatpush1.bf16.xpose.msra.mxu0 0
          %5352 = vmatprep.subr.bf16.mxu0 0
          %5353 = vmatpush1.bf16.xpose.msra.mxu0 0
          %5354 = vmatprep.subr.bf16.mxu0 0
          %5355 = vmatpush1.bf16.xpose.msra.mxu0 0
          %5356 = vmatprep.subr.bf16.mxu0 0
          %5357 = vmatpush1.bf16.xpose.msra.mxu0 0
          %5358 = vmatprep.subr.bf16.mxu0 0
          %5359 = vmatpush1.bf16.xpose.msra.mxu0 0
          %5360 = vmatprep.subr.bf16.mxu0 0
          %5361 = vmatpush1.bf16.xpose.msra.mxu0 0
          %5362 = vmatprep.subr.bf16.mxu0 0
          %5363 = vmatpush1.bf16.xpose.msra.mxu0 0
          %5364 = vmatprep.subr.bf16.mxu0 0
          %5365 = vmatpush1.bf16.xpose.msra.mxu0 0
          %5366 = vmatprep.mubr.bf16.mxu0 %v5161
          %5367 = vmatmul.mubr.bf16.gmra.mrb[0].mxu0 %v5160
          %v5368 = vpop.f32.mrb[0].mxu0
          %v5369 = vadd.f32 %v5172, %v5368
          %v5370 = vpop.f32.mrb[0].mxu0
          %v5371 = vpop.f32.mrb[0].mxu0
          %v5372 = vpop.f32.mrb[0].mxu0
          %5373 = vdwg.mxu0
          %5374 = vmatprep.subr.bf16.mxu0 %v5273
          %5375 = vmatpush1.bf16.xpose.msra.mxu0 %v5272
          %5376 = vmatprep.subr.bf16.mxu0 %v5281
          %5377 = vmatpush1.bf16.xpose.msra.mxu0 %v5280
          %5378 = vmatprep.subr.bf16.mxu0 %v5289
          %5379 = vmatpush1.bf16.xpose.msra.mxu0 %v5288
          %5380 = vmatprep.subr.bf16.mxu0 %v5297
          %5381 = vmatpush1.bf16.xpose.msra.mxu0 %v5296
          %5382 = vmatprep.subr.bf16.mxu0 0
          %5383 = vmatpush1.bf16.xpose.msra.mxu0 0
          %5384 = vmatprep.subr.bf16.mxu0 0
          %5385 = vmatpush1.bf16.xpose.msra.mxu0 0
          %5386 = vmatprep.subr.bf16.mxu0 0
          %5387 = vmatpush1.bf16.xpose.msra.mxu0 0
          %5388 = vmatprep.subr.bf16.mxu0 0
          %5389 = vmatpush1.bf16.xpose.msra.mxu0 0
          %5390 = vmatprep.subr.bf16.mxu0 0
          %5391 = vmatpush1.bf16.xpose.msra.mxu0 0
          %5392 = vmatprep.subr.bf16.mxu0 0
          %5393 = vmatpush1.bf16.xpose.msra.mxu0 0
          %5394 = vmatprep.subr.bf16.mxu0 0
          %5395 = vmatpush1.bf16.xpose.msra.mxu0 0
          %5396 = vmatprep.subr.bf16.mxu0 0
          %5397 = vmatpush1.bf16.xpose.msra.mxu0 0
          %5398 = vmatprep.subr.bf16.mxu0 0
          %5399 = vmatpush1.bf16.xpose.msra.mxu0 0
          %5400 = vmatprep.subr.bf16.mxu0 0
          %5401 = vmatpush1.bf16.xpose.msra.mxu0 0
          %5402 = vmatprep.subr.bf16.mxu0 0
          %5403 = vmatpush1.bf16.xpose.msra.mxu0 0
          %5404 = vmatprep.subr.bf16.mxu0 0
          %5405 = vmatpush1.bf16.xpose.msra.mxu0 0
          %5406 = vmatprep.mubr.bf16.mxu0 %v5163
          %5407 = vmatmul.mubr.bf16.gmra.mrb[0].mxu0 %v5162
          %v5408 = vpop.f32.mrb[0].mxu0
          %v5409 = vadd.f32 %v5369, %v5408
          %v5410 = vpop.f32.mrb[0].mxu0
          %v5411 = vpop.f32.mrb[0].mxu0
          %v5412 = vpop.f32.mrb[0].mxu0
          %5413 = vdwg.mxu0
          %5414 = vmatprep.subr.bf16.mxu0 %v5275
          %5415 = vmatpush1.bf16.xpose.msra.mxu0 %v5274
          %5416 = vmatprep.subr.bf16.mxu0 %v5283
          %5417 = vmatpush1.bf16.xpose.msra.mxu0 %v5282
          %5418 = vmatprep.subr.bf16.mxu0 %v5291
          %5419 = vmatpush1.bf16.xpose.msra.mxu0 %v5290
          %5420 = vmatprep.subr.bf16.mxu0 %v5299
          %5421 = vmatpush1.bf16.xpose.msra.mxu0 %v5298
          %5422 = vmatprep.subr.bf16.mxu0 0
          %5423 = vmatpush1.bf16.xpose.msra.mxu0 0
          %5424 = vmatprep.subr.bf16.mxu0 0
          %5425 = vmatpush1.bf16.xpose.msra.mxu0 0
          %5426 = vmatprep.subr.bf16.mxu0 0
          %5427 = vmatpush1.bf16.xpose.msra.mxu0 0
          %5428 = vmatprep.subr.bf16.mxu0 0
          %5429 = vmatpush1.bf16.xpose.msra.mxu0 0
          %5430 = vmatprep.subr.bf16.mxu0 0
          %5431 = vmatpush1.bf16.xpose.msra.mxu0 0
          %5432 = vmatprep.subr.bf16.mxu0 0
          %5433 = vmatpush1.bf16.xpose.msra.mxu0 0
          %5434 = vmatprep.subr.bf16.mxu0 0
          %5435 = vmatpush1.bf16.xpose.msra.mxu0 0
          %5436 = vmatprep.subr.bf16.mxu0 0
          %5437 = vmatpush1.bf16.xpose.msra.mxu0 0
          %5438 = vmatprep.subr.bf16.mxu0 0
          %5439 = vmatpush1.bf16.xpose.msra.mxu0 0
          %5440 = vmatprep.subr.bf16.mxu0 0
          %5441 = vmatpush1.bf16.xpose.msra.mxu0 0
          %5442 = vmatprep.subr.bf16.mxu0 0
          %5443 = vmatpush1.bf16.xpose.msra.mxu0 0
          %5444 = vmatprep.subr.bf16.mxu0 0
          %5445 = vmatpush1.bf16.xpose.msra.mxu0 0
          %5446 = vmatprep.mubr.bf16.mxu0 %v5165
          %5447 = vmatmul.mubr.bf16.gmra.mrb[0].mxu0 %v5164
          %v5448 = vpop.f32.mrb[0].mxu0
          %v5449 = vadd.f32 %v5409, %v5448
          %v5450 = vpop.f32.mrb[0].mxu0
          %v5451 = vpop.f32.mrb[0].mxu0
          %v5452 = vpop.f32.mrb[0].mxu0
          %5453 = vdwg.mxu0
          %5454 = vmatprep.subr.bf16.mxu0 %v5277
          %5455 = vmatpush1.bf16.xpose.msra.mxu0 %v5276
          %5456 = vmatprep.subr.bf16.mxu0 %v5285
          %5457 = vmatpush1.bf16.xpose.msra.mxu0 %v5284
          %5458 = vmatprep.subr.bf16.mxu0 %v5293
          %5459 = vmatpush1.bf16.xpose.msra.mxu0 %v5292
          %5460 = vmatprep.subr.bf16.mxu0 %v5301
          %5461 = vmatpush1.bf16.xpose.msra.mxu0 %v5300
          %5462 = vmatprep.subr.bf16.mxu0 0
          %5463 = vmatpush1.bf16.xpose.msra.mxu0 0
          %5464 = vmatprep.subr.bf16.mxu0 0
          %5465 = vmatpush1.bf16.xpose.msra.mxu0 0
          %5466 = vmatprep.subr.bf16.mxu0 0
          %5467 = vmatpush1.bf16.xpose.msra.mxu0 0
          %5468 = vmatprep.subr.bf16.mxu0 0
          %5469 = vmatpush1.bf16.xpose.msra.mxu0 0
          %5470 = vmatprep.subr.bf16.mxu0 0
          %5471 = vmatpush1.bf16.xpose.msra.mxu0 0
          %5472 = vmatprep.subr.bf16.mxu0 0
          %5473 = vmatpush1.bf16.xpose.msra.mxu0 0
          %5474 = vmatprep.subr.bf16.mxu0 0
          %5475 = vmatpush1.bf16.xpose.msra.mxu0 0
          %5476 = vmatprep.subr.bf16.mxu0 0
          %5477 = vmatpush1.bf16.xpose.msra.mxu0 0
          %5478 = vmatprep.subr.bf16.mxu0 0
          %5479 = vmatpush1.bf16.xpose.msra.mxu0 0
          %5480 = vmatprep.subr.bf16.mxu0 0
          %5481 = vmatpush1.bf16.xpose.msra.mxu0 0
          %5482 = vmatprep.subr.bf16.mxu0 0
          %5483 = vmatpush1.bf16.xpose.msra.mxu0 0
          %5484 = vmatprep.subr.bf16.mxu0 0
          %5485 = vmatpush1.bf16.xpose.msra.mxu0 0
          %5486 = vmatprep.mubr.bf16.mxu0 %v5167
          %5487 = vmatmul.mubr.bf16.gmra.mrb[0].mxu0 %v5166
          %v5488 = vpop.f32.mrb[0].mxu0
          %v5489 = vadd.f32 %v5449, %v5488
          %v5490 = vpop.f32.mrb[0].mxu0
          %v5491 = vpop.f32.mrb[0].mxu0
          %v5492 = vpop.f32.mrb[0].mxu0
          %5493 = vdwg.mxu0
          %vm5494 = vcmask 517120
          %5495 = vst.msk [vmem:[#allocation26] sm:$0x3] %vm5494, %v5489
        $region172: #{encoder_only_forward.1} parent=91 // pred_fallthru
          _
        // Predicated region
        $region173: #{encoder_only_forward.1} parent=91 // pred_check
          %p5496 = pneg %p485
        $region174: #{encoder_only_forward.1} parent=91 // pred_check_branch
          %5498 = sbr.rel (%p5496) target = $region176
        $region175: #{encoder_only_forward.1} parent=91 // pred_region
          %s5500 = ssub.s32 32, 32
          %5501 = vsyncadd [#allocation5], %s5500
          %s5503 = sshll.u32 [#allocation26], 4
          %s5504 = int_to_ptr.vmem [resolvable:$true] %s5503
          %5506 = dma.vmem_to_hbm [thread:$0]  %s5504, 32, %s18, [#allocation5]
        $region176: #{encoder_only_forward.1} parent=91 // pred_fallthru
          _
        // Predicated region
        $region177: #{encoder_only_forward.1} parent=91 // pred_check
          %p5507 = pneg %p485
        $region178: #{encoder_only_forward.1} parent=91 // pred_check_branch
          %5509 = sbr.rel (%p5507) target = $region180
        $region179: #{encoder_only_forward.1} parent=91 // pred_region
          %5510 = dma.done [#allocation5], 32
        $region180: #{encoder_only_forward.1} parent=91 // pred_fallthru
          _
      $region92: #{encoder_only_forward.1} parent=5 // pred_fallthru
        _
      %p5511 = scmp.le.s32.totalorder 2, %s29
      // Predicated region
      $region181: #{encoder_only_forward.1} parent=5 // pred_check
        %p5512 = pneg %p5511
      $region182: #{encoder_only_forward.1} parent=5 // pred_check_branch
        %5514 = sbr.rel (%p5512) target = $region184
      $region183: #{encoder_only_forward.1} parent=5 // pred_region
        %s5515 = ssub.s32 %s29, 2
      $region184: #{encoder_only_forward.1} parent=5 // pred_fallthru
        _
    $region6: #{encoder_only_forward.1} parent=1 // loop_footer
      %s33 = sadd.s32 1, %s29
    $region7: #{encoder_only_forward.1} parent=1 // loop_footer_branch
      %28 = sbr.rel target = $region3
    $region8: #{encoder_only_forward.1} parent=1 // loop_exit
      _
    %5516 = vsyncpa [#allocation4], 1
    %s5517 = scalar_lea.sflag [#allocation4], 1
    %5518 = vsyncpa %s5517, 1
    %5519 = vsyncpa [#allocation7], 1
    %5520 = vsyncpa [#allocation22], 1
    %5521 = vsyncpa [#allocation25], 1
    %5522 = vsyncpa [#allocation5], 1
    %s5523 = scalar_lea.sflag [#allocation5], 1
    %5524 = vsyncpa %s5523, 1

</llo_original>
